<compile_context>
chip_gen: v7x
topology: tpu7x:2x2x1
jax: 0.10.0
libtpu: 0.0.40
codegen_flags: <defaults>
</compile_context>

<pallas_src>
import functools
import numpy as np
import jax
import jax.numpy as jnp
from jax.experimental import pallas as pl
from jax.experimental.pallas import tpu as pltpu


def _round_up(x, m):
    return ((x + m - 1) // m) * m


# --------------------------- hardware-aware knobs ---------------------------

@functools.lru_cache(maxsize=None)
def _vmem_limit_bytes():
    """Generation-aware scoped-VMEM budget with headroom for Mosaic scratch."""
    cap = 64 * 1024 * 1024  # conservative fallback (safe on v7x's 64 MiB/TC)
    try:
        info = pltpu.get_tpu_info()
        cap = int(getattr(info, "vmem_capacity_bytes", cap)) or cap
    except Exception:
        pass
    # ~25% headroom for the compiler's internal matmul temporaries.
    return max(32 * 1024 * 1024, (cap * 3) // 4)


@functools.lru_cache(maxsize=None)
def _buffered_mode(n):
    """Return pl.Buffered(n) iff this JAX/libtpu supports pipeline_mode (probed
    with a tiny eager pallas_call); otherwise None (plain double buffering)."""
    try:
        mode = pl.Buffered(n)

        def k(x_ref, w_ref, o_ref):
            o_ref[...] = x_ref[...] + w_ref[...]

        x = jnp.zeros((32, 128), jnp.float32)
        w = jnp.ones((8, 128), jnp.float32)
        out = pl.pallas_call(
            k,
            out_shape=jax.ShapeDtypeStruct((32, 128), jnp.float32),
            grid=(4,),
            in_specs=[pl.BlockSpec((8, 128), lambda i: (i, 0)),
                      pl.BlockSpec((8, 128), lambda i: (0, 0),
                                   pipeline_mode=mode)],
            out_specs=pl.BlockSpec((8, 128), lambda i: (i, 0)),
        )(x, w)
        out = jax.block_until_ready(out)
        if not bool(jnp.all(out == 1.0)):
            return None
        return mode
    except Exception:
        return None


def _pick_tm(m, c):
    """Row-tile: biggest tile that fits; channel-aware cap; no forced split of
    small M (single-TC chips would just pay per-step grid overhead)."""
    cap = 256 if c >= 512 else 512
    if m <= cap:
        return m
    return cap


# ------------------------------- Pallas kernel -------------------------------

def _stage_kernel(x_ref, wt_ref, wres_ref, b_ref, o_ref, acc_ref, *,
                  n_pre, n_pos):
    """Fused PreExtraction (transfer + pre res-blocks + max over k neighbours)
    + PosExtraction res-blocks, for one row block.

    Grid = (row_blocks, k).  Axis 1 is a reduction over the k neighbours with a
    VMEM running-max accumulator; pos blocks + the output store run on kk==last.
    BatchNorm is folded into the (bf16) weights; accumulation/epilogue are f32.
    """
    kk = pl.program_id(1)

    def res_block(h, j):
        # ConvBNReLURes1D (groups=1, res_expansion=1):  act(net2(net1(h)) + h)
        w1 = wres_ref[2 * j]
        w2 = wres_ref[2 * j + 1]
        b1 = b_ref[1 + 2 * j: 2 + 2 * j, :]
        b2 = b_ref[2 + 2 * j: 3 + 2 * j, :]
        hh = jnp.dot(h.astype(w1.dtype), w1, preferred_element_type=jnp.float32)
        hh = jnp.maximum(hh + b1, 0.0)
        y = jnp.dot(hh.astype(w2.dtype), w2, preferred_element_type=jnp.float32)
        return jnp.maximum(y + b2 + h, 0.0)

    # transfer: ConvBNReLU1D (K zero-padded to a lane multiple at build time)
    h = jnp.dot(x_ref[...], wt_ref[...], preferred_element_type=jnp.float32)
    h = jnp.maximum(h + b_ref[0:1, :], 0.0)
    for j in range(n_pre):
        h = res_block(h, j)

    # running max over k (== F.adaptive_max_pool1d(., 1)); direct write at kk==0
    @pl.when(kk == 0)
    def _():
        acc_ref[...] = h

    @pl.when(kk > 0)
    def _():
        acc_ref[...] = jnp.maximum(acc_ref[...], h)

    # PosExtraction res-blocks + store, only on the last neighbour
    @pl.when(kk == pl.num_programs(1) - 1)
    def _():
        y = acc_ref[...]
        for j in range(n_pre, n_pre + n_pos):
            y = res_block(y, j)
        o_ref[...] = y.astype(o_ref.dtype)


def fused_stage(gp, wt, wres, bias_all, *, n_pre, n_pos,
                out_dtype=jnp.bfloat16):
    """gp: (k, M=B*S, din_pad) bf16 grouped features -> (M, C) features."""
    k, M, din_pad = gp.shape
    C = wt.shape[1]
    TM = _pick_tm(M, C)
    wbuf = _buffered_mode(1)   # resident weights: single buffer saves VMEM
    ibuf = _buffered_mode(3)   # deeper input buffer hides the long kk==last step

    def const_spec(shape):
        zero = (0,) * len(shape)
        if wbuf is not None:
            return pl.BlockSpec(shape, lambda i, kk: zero, pipeline_mode=wbuf)
        return pl.BlockSpec(shape, lambda i, kk: zero)

    if ibuf is not None:
        gp_spec = pl.BlockSpec((None, TM, din_pad), lambda i, kk: (kk, i, 0),
                               pipeline_mode=ibuf)
    else:
        gp_spec = pl.BlockSpec((None, TM, din_pad), lambda i, kk: (kk, i, 0))

    # TODO(synk): on v7x, try pltpu.CORE_PARALLEL on the row axis (2 TCs).
    return pl.pallas_call(
        functools.partial(_stage_kernel, n_pre=n_pre, n_pos=n_pos),
        out_shape=jax.ShapeDtypeStruct((M, C), out_dtype),
        grid=(pl.cdiv(M, TM), k),
        in_specs=[gp_spec,
                  const_spec(wt.shape),
                  const_spec(wres.shape),
                  const_spec(bias_all.shape)],
        out_specs=pl.BlockSpec((TM, C), lambda i, kk: (i, 0)),
        scratch_shapes=[pltpu.VMEM((TM, C), jnp.float32)],
        compiler_params=pltpu.CompilerParams(
            dimension_semantics=("parallel", "arbitrary"),
            vmem_limit_bytes=_vmem_limit_bytes()),
    )(gp, wt, wres, bias_all)


# --------------------------- JAX glue (LocalGrouper) ---------------------------

def index_points(points, idx):
    # points: (B, N, C), idx: (B, S) -> (B, S, C)
    return jax.vmap(lambda p, i: p[i])(points, idx)


def farthest_point_sample(xyz, S):
    # TODO(synk): torch_cluster.fps uses a random start point; we start at index
    # 0 deterministically.  For large N this serial loop dominates wall clock —
    # make it a Pallas kernel with xyz + running min-dist resident in VMEM.
    B, N, _ = xyz.shape

    def one(pts):
        def body(i, carry):
            idxs, dists, last = carry
            d = jnp.sum((pts - pts[last]) ** 2, axis=-1)
            dists = jnp.minimum(dists, d)
            nxt = jnp.argmax(dists).astype(jnp.int32)
            return idxs.at[i].set(nxt), dists, nxt

        idxs0 = jnp.zeros((S,), jnp.int32)
        dists0 = jnp.full((N,), jnp.inf, jnp.float32)
        idxs, _, _ = jax.lax.fori_loop(1, S, body, (idxs0, dists0, jnp.int32(0)))
        return idxs

    return jax.vmap(one)(xyz)


def knn_idx(xyz, new_xyz, k):
    d2 = jnp.sum((new_xyz[:, :, None, :] - xyz[:, None, :, :]) ** 2, axis=-1)
    _, idx = jax.lax.top_k(-d2, k)
    return idx


def local_grouper(xyz, points, S, k, alpha, beta, din_pad):
    """use_xyz=True, normalize='anchor'.  Returns new_xyz (B,S,3) and grouped
    features in neighbour-major layout (k, B, S, din_pad) bf16 — the gathers
    produce this layout directly, so no HBM transpose of the big tensor."""
    B = xyz.shape[0]
    D = points.shape[-1]
    fps_idx = farthest_point_sample(xyz, S)
    new_xyz = index_points(xyz, fps_idx)                              # (B,S,3)
    new_points = index_points(points, fps_idx).astype(jnp.float32)    # (B,S,D)
    idx = knn_idx(xyz, new_xyz, k)                                    # (B,S,k)
    idx_k = jnp.transpose(idx, (2, 0, 1))                             # (k,B,S) tiny
    grouped_xyz = jax.vmap(lambda ii: index_points(xyz, ii))(idx_k)       # (k,B,S,3)
    grouped_pts = jax.vmap(lambda ii: index_points(points, ii))(idx_k)    # (k,B,S,D)
    grouped = jnp.concatenate(
        [grouped_pts.astype(jnp.float32), grouped_xyz], axis=-1)      # (k,B,S,D+3)
    mean = jnp.concatenate([new_points, new_xyz], axis=-1)[None]      # (1,B,S,D+3)
    diff = grouped - mean
    std = jnp.std(diff, axis=(0, 2, 3), ddof=1)                       # per-batch
    grouped = diff / (std[None, :, None, None] + 1e-5)
    grouped = alpha * grouped + beta
    rep = jnp.broadcast_to(new_points[None], (k, B, S, D))
    parts = [grouped, rep]
    pad = din_pad - (grouped.shape[-1] + D)
    if pad > 0:   # K-padding of the transfer matmul, folded into this concat
        parts.append(jnp.zeros((k, B, S, pad), jnp.float32))
    feat = jnp.concatenate(parts, axis=-1).astype(jnp.bfloat16)
    return new_xyz, feat


# --------------------------- parameter construction ---------------------------

def init_bn(key, c):
    ks = jax.random.split(key, 4)
    gamma = 1.0 + 0.1 * jax.random.normal(ks[0], (c,), jnp.float32)
    beta = 0.1 * jax.random.normal(ks[1], (c,), jnp.float32)
    rmean = 0.1 * jax.random.normal(ks[2], (c,), jnp.float32)
    rvar = jax.random.uniform(ks[3], (c,), jnp.float32, 0.5, 1.5)
    scale = gamma / jnp.sqrt(rvar + 1e-5)
    shift = beta - rmean * scale
    return scale, shift


def init_conv_bn_folded(key, cin, cout, use_bias):
    # Conv1d(k=1)+BatchNorm1d folded (eval): w' = w*scale, b' = b*scale+shift
    k1, k2, k3 = jax.random.split(key, 3)
    w = jax.random.normal(k1, (cin, cout), jnp.float32) / np.sqrt(cin)
    b = (0.05 * jax.random.normal(k2, (cout,), jnp.float32)
         if use_bias else jnp.zeros((cout,), jnp.float32))
    scale, shift = init_bn(k3, cout)
    return w * scale[None, :], b * scale + shift


def init_linear_bn_folded(key, cin, cout):
    k1, k2, k3 = jax.random.split(key, 3)
    w = jax.random.normal(k1, (cin, cout), jnp.float32) / np.sqrt(cin)
    b = 0.05 * jax.random.normal(k2, (cout,), jnp.float32)
    scale, shift = init_bn(k3, cout)
    return w * scale[None, :], b * scale + shift


def init_linear(key, cin, cout):
    k1, k2 = jax.random.split(key)
    w = jax.random.normal(k1, (cin, cout), jnp.float32) / np.sqrt(cin)
    b = 0.05 * jax.random.normal(k2, (cout,), jnp.float32)
    return w, b


def build_pointmlp_params(key, *, num_classes, points, embed_dim,
                          dim_expansion, pre_blocks, pos_blocks,
                          k_neighbors, reducers, bias=False, use_xyz=True):
    keys = iter(jax.random.split(key, 256))
    params = {'embedding': init_conv_bn_folded(next(keys), 3, embed_dim, bias)}
    stages, stage_cfg = [], []
    last_channel = embed_dim
    anchor_points = points
    for i in range(len(pre_blocks)):
        out_channel = last_channel * dim_expansion[i]
        anchor_points //= reducers[i]
        add = 3 if use_xyz else 0
        din = 2 * last_channel + add
        din_pad = _round_up(din, 128)
        n_pre, n_pos = pre_blocks[i], pos_blocks[i]
        wt, bt = init_conv_bn_folded(next(keys), din, out_channel, bias)
        wt = jnp.concatenate(
            [wt, jnp.zeros((din_pad - din, out_channel), jnp.float32)], axis=0)
        res_ws, res_bs = [], []
        for _ in range(n_pre + n_pos):
            w1, b1 = init_conv_bn_folded(next(keys), out_channel, out_channel, bias)
            w2, b2 = init_conv_bn_folded(next(keys), out_channel, out_channel, bias)
            res_ws += [w1, w2]
            res_bs += [b1, b2]
        stages.append({
            'alpha': jnp.ones((1, 1, 1, last_channel + add), jnp.float32),
            'beta': jnp.zeros((1, 1, 1, last_channel + add), jnp.float32),
            'wt': wt.astype(jnp.bfloat16),                    # (din_pad, C)
            'wres': jnp.stack(res_ws).astype(jnp.bfloat16),   # (2*nres, C, C)
            'bias': jnp.stack([bt] + res_bs),                 # (1+2*nres, C) f32
        })
        stage_cfg.append(dict(S=anchor_points, k=k_neighbors[i], din=din,
                              din_pad=din_pad, C=out_channel,
                              n_pre=n_pre, n_pos=n_pos))
        last_channel = out_channel
    params['stages'] = stages
    params['cls1'] = init_linear_bn_folded(next(keys), last_channel, 512)
    params['cls2'] = init_linear_bn_folded(next(keys), 512, 256)
    params['cls3'] = init_linear(next(keys), 256, num_classes)
    return params, stage_cfg


# ----------------------------------- forward -----------------------------------

def make_forward(stage_cfg):
    """stage_cfg: static per-stage config.  Returns a jitted forward fn."""
    # Prime hardware probes outside the jit trace (cached afterwards).
    _vmem_limit_bytes()
    _buffered_mode(1)
    _buffered_mode(3)
    n_stage = len(stage_cfg)

    def forward(params, x):
        B, N, _ = x.shape
        xyz = x
        # 3->E embedding (K=3: MXU near-idle) — left to XLA per perf review.
        we, be = params['embedding']
        feat = jnp.maximum(x.reshape(B * N, 3) @ we + be, 0.0)
        feat = feat.reshape(B, N, -1).astype(jnp.bfloat16)
        for si in range(n_stage):
            cfg = stage_cfg[si]
            st = params['stages'][si]
            xyz, gp = local_grouper(xyz, feat, cfg['S'], cfg['k'],
                                    st['alpha'], st['beta'], cfg['din_pad'])
            # (k, B, S, din_pad) -> (k, B*S, din_pad): contiguous, zero-copy.
            gp = gp.reshape(cfg['k'], B * cfg['S'], cfg['din_pad'])
            h = fused_stage(gp, st['wt'], st['wres'], st['bias'],
                            n_pre=cfg['n_pre'], n_pos=cfg['n_pos'])
            feat = h.reshape(B, cfg['S'], -1)
        # global max over anchor points + classifier head (tiny) -> XLA.
        g = jnp.max(feat.astype(jnp.float32), axis=1)
        w1, b1 = params['cls1']
        w2, b2 = params['cls2']
        w3, b3 = params['cls3']
        y = jnp.maximum(g @ w1 + b1, 0.0)     # Linear+BN(folded)+ReLU, Dropout=id
        y = jnp.maximum(y @ w2 + b2, 0.0)
        return y @ w3 + b3

    return jax.jit(forward)


if __name__ == "__main__":
    key = jax.random.PRNGKey(0)
    kx, kp = jax.random.split(key)
    info = {'num_classes': 10, 'max_points': 32, 'stacks': 1}
    B = 2
    N = info['max_points'] * info['stacks']             # 32 points
    x = jax.random.normal(kx, (B, N, 3), jnp.float32)   # PyTorch input: (B, N, 3)

    # Small but lane-dense config: stage channels 128 / 256 (>=128 lanes).
    params, stage_cfg = build_pointmlp_params(
        kp,
        num_classes=info['num_classes'],
        points=N,
        embed_dim=64,
        dim_expansion=[2, 2],
        pre_blocks=[2, 2],
        pos_blocks=[2, 2],
        k_neighbors=[4, 4],
        reducers=[2, 2],
        bias=False,
    )

    forward = make_forward(stage_cfg)
    y = jax.block_until_ready(forward(params, x))
    assert y.shape == (B, info['num_classes']) and y.dtype == jnp.float32
    print("KERNEL_OK")
</pallas_src>

<mosaic_0001>
module attributes {stable_mosaic.version = 11 : i64} {
  func.func @k(%arg0: i32, %arg1: memref<8x128xf32, #tpu.memory_space<vmem>>, %arg2: memref<8x128xf32, #tpu.memory_space<vmem>>, %arg3: memref<8x128xf32, #tpu.memory_space<vmem>>) attributes {dimension_semantics = [#tpu.dimension_semantics<arbitrary>], iteration_bounds = array<i64: 4>, scalar_prefetch = 0 : i64, scratch_operands = 0 : i64, tpu.core_type = #tpu.core_type<tc>, window_params = [{transform_indices = @transform_0, window_bounds = array<i64: 8, 128>}, {pipeline_mode = #tpu.pipeline_mode<synchronous>, transform_indices = @transform_1, window_bounds = array<i64: 8, 128>}, {transform_indices = @transform_2, window_bounds = array<i64: 8, 128>}]} {
    %c0 = arith.constant 0 : index
    %c0_0 = arith.constant 0 : index
    %0 = vector.load %arg1[%c0, %c0_0] : memref<8x128xf32, #tpu.memory_space<vmem>>, vector<8x128xf32>
    %c0_1 = arith.constant 0 : index
    %c0_2 = arith.constant 0 : index
    %1 = vector.load %arg2[%c0_1, %c0_2] : memref<8x128xf32, #tpu.memory_space<vmem>>, vector<8x128xf32>
    %2 = arith.addf %0, %1 : vector<8x128xf32>
    %c0_3 = arith.constant 0 : index
    %c0_4 = arith.constant 0 : index
    %3 = vector.load %arg3[%c0_3, %c0_4] : memref<8x128xf32, #tpu.memory_space<vmem>>, vector<8x128xf32>
    tpu.vector_store %arg3[%c0_3, %c0_4], %2 {strides = array<i32>} : memref<8x128xf32, #tpu.memory_space<vmem>>, vector<8x128xf32>,
    return
  }
  func.func @transform_0(%arg0: i32) -> (i32, i32) {
    %c0_i32 = arith.constant 0 : i32
    %c0_i32_0 = arith.constant 0 : i32
    return %arg0, %c0_i32 : i32, i32
  }
  func.func @transform_1(%arg0: i32) -> (i32, i32) {
    %c0_i32 = arith.constant 0 : i32
    %c0_i32_0 = arith.constant 0 : i32
    %c0_i32_1 = arith.constant 0 : i32
    return %c0_i32, %c0_i32_0 : i32, i32
  }
  func.func @transform_2(%arg0: i32) -> (i32, i32) {
    %c0_i32 = arith.constant 0 : i32
    %c0_i32_0 = arith.constant 0 : i32
    return %arg0, %c0_i32 : i32, i32
  }
}

module attributes {stable_mosaic.version = 11 : i64} {
  func.func @k(%arg0: i32, %arg1: memref<8x128xf32, #tpu.memory_space<vmem>>, %arg2: memref<8x128xf32, #tpu.memory_space<vmem>>, %arg3: memref<8x128xf32, #tpu.memory_space<vmem>>) attributes {dimension_semantics = [#tpu.dimension_semantics<arbitrary>], iteration_bounds = array<i64: 4>, scalar_prefetch = 0 : i64, scratch_operands = 0 : i64, tpu.core_type = #tpu.core_type<tc>, window_params = [{transform_indices = @transform_0, window_bounds = array<i64: 8, 128>}, {pipeline_mode = #tpu.pipeline_mode<synchronous>, transform_indices = @transform_1, window_bounds = array<i64: 8, 128>}, {transform_indices = @transform_2, window_bounds = array<i64: 8, 128>}]} {
    %c0 = arith.constant 0 : index
    %c0_0 = arith.constant 0 : index
    %0 = vector.load %arg1[%c0, %c0_0] : memref<8x128xf32, #tpu.memory_space<vmem>>, vector<8x128xf32>
    %c0_1 = arith.constant 0 : index
    %c0_2 = arith.constant 0 : index
    %1 = vector.load %arg2[%c0_1, %c0_2] : memref<8x128xf32, #tpu.memory_space<vmem>>, vector<8x128xf32>
    %2 = arith.addf %0, %1 : vector<8x128xf32>
    %c0_3 = arith.constant 0 : index
    %c0_4 = arith.constant 0 : index
    %3 = vector.load %arg3[%c0_3, %c0_4] : memref<8x128xf32, #tpu.memory_space<vmem>>, vector<8x128xf32>
    tpu.vector_store %arg3[%c0_3, %c0_4], %2 {strides = array<i32>} : memref<8x128xf32, #tpu.memory_space<vmem>>, vector<8x128xf32>,
    return
  }
  func.func @transform_0(%arg0: i32) -> (i32, i32) {
    %c0_i32 = arith.constant 0 : i32
    %c0_i32_0 = arith.constant 0 : i32
    return %arg0, %c0_i32 : i32, i32
  }
  func.func @transform_1(%arg0: i32) -> (i32, i32) {
    %c0_i32 = arith.constant 0 : i32
    %c0_i32_0 = arith.constant 0 : i32
    %c0_i32_1 = arith.constant 0 : i32
    return %c0_i32, %c0_i32_0 : i32, i32
  }
  func.func @transform_2(%arg0: i32) -> (i32, i32) {
    %c0_i32 = arith.constant 0 : i32
    %c0_i32_0 = arith.constant 0 : i32
    return %arg0, %c0_i32 : i32, i32
  }
}

module attributes {stable_mosaic.version = 11 : i64} {
  func.func @_stage_kernel(%arg0: i32, %arg1: i32, %arg2: memref<1x32x256xbf16, #tpu.memory_space<vmem>>, %arg3: memref<256x128xbf16, #tpu.memory_space<vmem>>, %arg4: memref<8x128x128xbf16, #tpu.memory_space<vmem>>, %arg5: memref<9x128xf32, #tpu.memory_space<vmem>>, %arg6: memref<32x128xbf16, #tpu.memory_space<vmem>>, %arg7: memref<32x128xf32, #tpu.memory_space<vmem>>) attributes {dimension_semantics = [#tpu.dimension_semantics<parallel>, #tpu.dimension_semantics<arbitrary>], iteration_bounds = array<i64: 1, 4>, scalar_prefetch = 0 : i64, scratch_operands = 1 : i64, tpu.core_type = #tpu.core_type<tc>, window_params = [{transform_indices = @transform_0, window_bounds = array<i64: 1, 32, 256>}, {pipeline_mode = #tpu.pipeline_mode<synchronous>, transform_indices = @transform_1, window_bounds = array<i64: 256, 128>}, {pipeline_mode = #tpu.pipeline_mode<synchronous>, transform_indices = @transform_2, window_bounds = array<i64: 8, 128, 128>}, {pipeline_mode = #tpu.pipeline_mode<synchronous>, transform_indices = @transform_3, window_bounds = array<i64: 9, 128>}, {transform_indices = @transform_4, window_bounds = array<i64: 32, 128>}]} {
    %c0 = arith.constant 0 : index
    %c0_0 = arith.constant 0 : index
    %c0_1 = arith.constant 0 : index
    %0 = vector.load %arg2[%c0, %c0_0, %c0_1] : memref<1x32x256xbf16, #tpu.memory_space<vmem>>, vector<1x32x256xbf16>
    %1 = vector.shape_cast %0 : vector<1x32x256xbf16> to vector<32x256xbf16>
    %c0_2 = arith.constant 0 : index
    %c0_3 = arith.constant 0 : index
    %2 = vector.load %arg3[%c0_2, %c0_3] : memref<256x128xbf16, #tpu.memory_space<vmem>>, vector<256x128xbf16>
    %cst = arith.constant dense<0.000000e+00> : vector<32x128xf32>
    %3 = tpu.matmul %1, %2, %cst {dimension_numbers = #tpu.dot_dimension_numbers<[1], [0], [0], [1], [0, 0, 1, 1], [], []>} : vector<32x256xbf16>, vector<256x128xbf16>, vector<32x128xf32> -> vector<32x128xf32>
    %c0_4 = arith.constant 0 : index
    %c0_5 = arith.constant 0 : index
    %4 = vector.load %arg5[%c0_4, %c0_5] : memref<9x128xf32, #tpu.memory_space<vmem>>, vector<1x128xf32>
    %5 = vector.broadcast %4 : vector<1x128xf32> to vector<32x128xf32>
    %6 = arith.addf %3, %5 : vector<32x128xf32>
    %cst_6 = arith.constant 0.000000e+00 : f32
    %7 = vector.broadcast %cst_6 : f32 to vector<32x128xf32>
    %8 = arith.maximumf %6, %7 : vector<32x128xf32>
    %c0_7 = arith.constant 0 : index
    %c0_8 = arith.constant 0 : index
    %c0_9 = arith.constant 0 : index
    %9 = vector.load %arg4[%c0_7, %c0_8, %c0_9] : memref<8x128x128xbf16, #tpu.memory_space<vmem>>, vector<1x128x128xbf16>
    %10 = vector.shape_cast %9 : vector<1x128x128xbf16> to vector<128x128xbf16>
    %c1 = arith.constant 1 : index
    %c0_10 = arith.constant 0 : index
    %c0_11 = arith.constant 0 : index
    %11 = vector.load %arg4[%c1, %c0_10, %c0_11] : memref<8x128x128xbf16, #tpu.memory_space<vmem>>, vector<1x128x128xbf16>
    %12 = vector.shape_cast %11 : vector<1x128x128xbf16> to vector<128x128xbf16>
    %c1_12 = arith.constant 1 : index
    %c0_13 = arith.constant 0 : index
    %13 = vector.load %arg5[%c1_12, %c0_13] : memref<9x128xf32, #tpu.memory_space<vmem>>, vector<1x128xf32>
    %c2 = arith.constant 2 : index
    %c0_14 = arith.constant 0 : index
    %14 = vector.load %arg5[%c2, %c0_14] : memref<9x128xf32, #tpu.memory_space<vmem>>, vector<1x128xf32>
    %15 = arith.truncf %8 : vector<32x128xf32> to vector<32x128xbf16>
    %cst_15 = arith.constant dense<0.000000e+00> : vector<32x128xf32>
    %16 = tpu.matmul %15, %10, %cst_15 {dimension_numbers = #tpu.dot_dimension_numbers<[1], [0], [0], [1], [0, 0, 1, 1], [], []>} : vector<32x128xbf16>, vector<128x128xbf16>, vector<32x128xf32> -> vector<32x128xf32>
    %17 = vector.broadcast %13 : vector<1x128xf32> to vector<32x128xf32>
    %18 = arith.addf %16, %17 : vector<32x128xf32>
    %cst_16 = arith.constant 0.000000e+00 : f32
    %19 = vector.broadcast %cst_16 : f32 to vector<32x128xf32>
    %20 = arith.maximumf %18, %19 : vector<32x128xf32>
    %21 = arith.truncf %20 : vector<32x128xf32> to vector<32x128xbf16>
    %cst_17 = arith.constant dense<0.000000e+00> : vector<32x128xf32>
    %22 = tpu.matmul %21, %12, %cst_17 {dimension_numbers = #tpu.dot_dimension_numbers<[1], [0], [0], [1], [0, 0, 1, 1], [], []>} : vector<32x128xbf16>, vector<128x128xbf16>, vector<32x128xf32> -> vector<32x128xf32>
    %23 = vector.broadcast %14 : vector<1x128xf32> to vector<32x128xf32>
    %24 = arith.addf %22, %23 : vector<32x128xf32>
    %25 = arith.addf %24, %8 : vector<32x128xf32>
    %cst_18 = arith.constant 0.000000e+00 : f32
    %26 = vector.broadcast %cst_18 : f32 to vector<32x128xf32>
    %27 = arith.maximumf %25, %26 : vector<32x128xf32>
    %c2_19 = arith.constant 2 : index
    %c0_20 = arith.constant 0 : index
    %c0_21 = arith.constant 0 : index
    %28 = vector.load %arg4[%c2_19, %c0_20, %c0_21] : memref<8x128x128xbf16, #tpu.memory_space<vmem>>, vector<1x128x128xbf16>
    %29 = vector.shape_cast %28 : vector<1x128x128xbf16> to vector<128x128xbf16>
    %c3 = arith.constant 3 : index
    %c0_22 = arith.constant 0 : index
    %c0_23 = arith.constant 0 : index
    %30 = vector.load %arg4[%c3, %c0_22, %c0_23] : memref<8x128x128xbf16, #tpu.memory_space<vmem>>, vector<1x128x128xbf16>
    %31 = vector.shape_cast %30 : vector<1x128x128xbf16> to vector<128x128xbf16>
    %c3_24 = arith.constant 3 : index
    %c0_25 = arith.constant 0 : index
    %32 = vector.load %arg5[%c3_24, %c0_25] : memref<9x128xf32, #tpu.memory_space<vmem>>, vector<1x128xf32>
    %c4 = arith.constant 4 : index
    %c0_26 = arith.constant 0 : index
    %33 = vector.load %arg5[%c4, %c0_26] : memref<9x128xf32, #tpu.memory_space<vmem>>, vector<1x128xf32>
    %34 = arith.truncf %27 : vector<32x128xf32> to vector<32x128xbf16>
    %cst_27 = arith.constant dense<0.000000e+00> : vector<32x128xf32>
    %35 = tpu.matmul %34, %29, %cst_27 {dimension_numbers = #tpu.dot_dimension_numbers<[1], [0], [0], [1], [0, 0, 1, 1], [], []>} : vector<32x128xbf16>, vector<128x128xbf16>, vector<32x128xf32> -> vector<32x128xf32>
    %36 = vector.broadcast %32 : vector<1x128xf32> to vector<32x128xf32>
    %37 = arith.addf %35, %36 : vector<32x128xf32>
    %cst_28 = arith.constant 0.000000e+00 : f32
    %38 = vector.broadcast %cst_28 : f32 to vector<32x128xf32>
    %39 = arith.maximumf %37, %38 : vector<32x128xf32>
    %40 = arith.truncf %39 : vector<32x128xf32> to vector<32x128xbf16>
    %cst_29 = arith.constant dense<0.000000e+00> : vector<32x128xf32>
    %41 = tpu.matmul %40, %31, %cst_29 {dimension_numbers = #tpu.dot_dimension_numbers<[1], [0], [0], [1], [0, 0, 1, 1], [], []>} : vector<32x128xbf16>, vector<128x128xbf16>, vector<32x128xf32> -> vector<32x128xf32>
    %42 = vector.broadcast %33 : vector<1x128xf32> to vector<32x128xf32>
    %43 = arith.addf %41, %42 : vector<32x128xf32>
    %44 = arith.addf %43, %27 : vector<32x128xf32>
    %cst_30 = arith.constant 0.000000e+00 : f32
    %45 = vector.broadcast %cst_30 : f32 to vector<32x128xf32>
    %46 = arith.maximumf %44, %45 : vector<32x128xf32>
    %c0_i32 = arith.constant 0 : i32
    %47 = arith.cmpi eq, %arg1, %c0_i32 : i32
    %48 = arith.extui %47 : i1 to i32
    %c0_i32_31 = arith.constant 0 : i32
    %49 = arith.cmpi ne, %48, %c0_i32_31 : i32
    scf.if %49 {
      %c0_35 = arith.constant 0 : index
      %c0_36 = arith.constant 0 : index
      %56 = vector.load %arg7[%c0_35, %c0_36] : memref<32x128xf32, #tpu.memory_space<vmem>>, vector<32x128xf32>
      tpu.vector_store %arg7[%c0_35, %c0_36], %46 {strides = array<i32>} : memref<32x128xf32, #tpu.memory_space<vmem>>, vector<32x128xf32>,
    } else {
    }
    %c0_i32_32 = arith.constant 0 : i32
    %50 = arith.cmpi sgt, %arg1, %c0_i32_32 : i32
    %51 = arith.extui %50 : i1 to i32
    %c0_i32_33 = arith.constant 0 : i32
    %52 = arith.cmpi ne, %51, %c0_i32_33 : i32
    scf.if %52 {
      %c0_35 = arith.constant 0 : index
      %c0_36 = arith.constant 0 : index
      %56 = vector.load %arg7[%c0_35, %c0_36] : memref<32x128xf32, #tpu.memory_space<vmem>>, vector<32x128xf32>
      %57 = arith.maximumf %56, %46 : vector<32x128xf32>
      %c0_37 = arith.constant 0 : index
      %c0_38 = arith.constant 0 : index
      %58 = vector.load %arg7[%c0_37, %c0_38] : memref<32x128xf32, #tpu.memory_space<vmem>>, vector<32x128xf32>
      tpu.vector_store %arg7[%c0_37, %c0_38], %57 {strides = array<i32>} : memref<32x128xf32, #tpu.memory_space<vmem>>, vector<32x128xf32>,
    } else {
    }
    %c3_i32 = arith.constant 3 : i32
    %53 = arith.cmpi eq, %arg1, %c3_i32 : i32
    %54 = arith.extui %53 : i1 to i32
    %c0_i32_34 = arith.constant 0 : i32
    %55 = arith.cmpi ne, %54, %c0_i32_34 : i32
    scf.if %55 {
      %c0_35 = arith.constant 0 : index
      %c0_36 = arith.constant 0 : index
      %56 = vector.load %arg7[%c0_35, %c0_36] : memref<32x128xf32, #tpu.memory_space<vmem>>, vector<32x128xf32>
      %c4_37 = arith.constant 4 : index
      %c0_38 = arith.constant 0 : index
      %c0_39 = arith.constant 0 : index
      %57 = vector.load %arg4[%c4_37, %c0_38, %c0_39] : memref<8x128x128xbf16, #tpu.memory_space<vmem>>, vector<1x128x128xbf16>
      %58 = vector.shape_cast %57 : vector<1x128x128xbf16> to vector<128x128xbf16>
      %c5 = arith.constant 5 : index
      %c0_40 = arith.constant 0 : index
      %c0_41 = arith.constant 0 : index
      %59 = vector.load %arg4[%c5, %c0_40, %c0_41] : memref<8x128x128xbf16, #tpu.memory_space<vmem>>, vector<1x128x128xbf16>
      %60 = vector.shape_cast %59 : vector<1x128x128xbf16> to vector<128x128xbf16>
      %c5_42 = arith.constant 5 : index
      %c0_43 = arith.constant 0 : index
      %61 = vector.load %arg5[%c5_42, %c0_43] : memref<9x128xf32, #tpu.memory_space<vmem>>, vector<1x128xf32>
      %c6 = arith.constant 6 : index
      %c0_44 = arith.constant 0 : index
      %62 = vector.load %arg5[%c6, %c0_44] : memref<9x128xf32, #tpu.memory_space<vmem>>, vector<1x128xf32>
      %63 = arith.truncf %56 : vector<32x128xf32> to vector<32x128xbf16>
      %cst_45 = arith.constant dense<0.000000e+00> : vector<32x128xf32>
      %64 = tpu.matmul %63, %58, %cst_45 {dimension_numbers = #tpu.dot_dimension_numbers<[1], [0], [0], [1], [0, 0, 1, 1], [], []>} : vector<32x128xbf16>, vector<128x128xbf16>, vector<32x128xf32> -> vector<32x128xf32>
      %65 = vector.broadcast %61 : vector<1x128xf32> to vector<32x128xf32>
      %66 = arith.addf %64, %65 : vector<32x128xf32>
      %cst_46 = arith.constant 0.000000e+00 : f32
      %67 = vector.broadcast %cst_46 : f32 to vector<32x128xf32>
      %68 = arith.maximumf %66, %67 : vector<32x128xf32>
      %69 = arith.truncf %68 : vector<32x128xf32> to vector<32x128xbf16>
      %cst_47 = arith.constant dense<0.000000e+00> : vector<32x128xf32>
      %70 = tpu.matmul %69, %60, %cst_47 {dimension_numbers = #tpu.dot_dimension_numbers<[1], [0], [0], [1], [0, 0, 1, 1], [], []>} : vector<32x128xbf16>, vector<128x128xbf16>, vector<32x128xf32> -> vector<32x128xf32>
      %71 = vector.broadcast %62 : vector<1x128xf32> to vector<32x128xf32>
      %72 = arith.addf %70, %71 : vector<32x128xf32>
      %73 = arith.addf %72, %56 : vector<32x128xf32>
      %cst_48 = arith.constant 0.000000e+00 : f32
      %74 = vector.broadcast %cst_48 : f32 to vector<32x128xf32>
      %75 = arith.maximumf %73, %74 : vector<32x128xf32>
      %c6_49 = arith.constant 6 : index
      %c0_50 = arith.constant 0 : index
      %c0_51 = arith.constant 0 : index
      %76 = vector.load %arg4[%c6_49, %c0_50, %c0_51] : memref<8x128x128xbf16, #tpu.memory_space<vmem>>, vector<1x128x128xbf16>
      %77 = vector.shape_cast %76 : vector<1x128x128xbf16> to vector<128x128xbf16>
      %c7 = arith.constant 7 : index
      %c0_52 = arith.constant 0 : index
      %c0_53 = arith.constant 0 : index
      %78 = vector.load %arg4[%c7, %c0_52, %c0_53] : memref<8x128x128xbf16, #tpu.memory_space<vmem>>, vector<1x128x128xbf16>
      %79 = vector.shape_cast %78 : vector<1x128x128xbf16> to vector<128x128xbf16>
      %c7_54 = arith.constant 7 : index
      %c0_55 = arith.constant 0 : index
      %80 = vector.load %arg5[%c7_54, %c0_55] : memref<9x128xf32, #tpu.memory_space<vmem>>, vector<1x128xf32>
      %c8 = arith.constant 8 : index
      %c0_56 = arith.constant 0 : index
      %81 = vector.load %arg5[%c8, %c0_56] : memref<9x128xf32, #tpu.memory_space<vmem>>, vector<1x128xf32>
      %82 = arith.truncf %75 : vector<32x128xf32> to vector<32x128xbf16>
      %cst_57 = arith.constant dense<0.000000e+00> : vector<32x128xf32>
      %83 = tpu.matmul %82, %77, %cst_57 {dimension_numbers = #tpu.dot_dimension_numbers<[1], [0], [0], [1], [0, 0, 1, 1], [], []>} : vector<32x128xbf16>, vector<128x128xbf16>, vector<32x128xf32> -> vector<32x128xf32>
      %84 = vector.broadcast %80 : vector<1x128xf32> to vector<32x128xf32>
      %85 = arith.addf %83, %84 : vector<32x128xf32>
      %cst_58 = arith.constant 0.000000e+00 : f32
      %86 = vector.broadcast %cst_58 : f32 to vector<32x128xf32>
      %87 = arith.maximumf %85, %86 : vector<32x128xf32>
      %88 = arith.truncf %87 : vector<32x128xf32> to vector<32x128xbf16>
      %cst_59 = arith.constant dense<0.000000e+00> : vector<32x128xf32>
      %89 = tpu.matmul %88, %79, %cst_59 {dimension_numbers = #tpu.dot_dimension_numbers<[1], [0], [0], [1], [0, 0, 1, 1], [], []>} : vector<32x128xbf16>, vector<128x128xbf16>, vector<32x128xf32> -> vector<32x128xf32>
      %90 = vector.broadcast %81 : vector<1x128xf32> to vector<32x128xf32>
      %91 = arith.addf %89, %90 : vector<32x128xf32>
      %92 = arith.addf %91, %75 : vector<32x128xf32>
      %cst_60 = arith.constant 0.000000e+00 : f32
      %93 = vector.broadcast %cst_60 : f32 to vector<32x128xf32>
      %94 = arith.maximumf %92, %93 : vector<32x128xf32>
      %95 = arith.truncf %94 : vector<32x128xf32> to vector<32x128xbf16>
      %c0_61 = arith.constant 0 : index
      %c0_62 = arith.constant 0 : index
      %96 = vector.load %arg6[%c0_61, %c0_62] : memref<32x128xbf16, #tpu.memory_space<vmem>>, vector<32x128xbf16>
      tpu.vector_store %arg6[%c0_61, %c0_62], %95 {strides = array<i32>} : memref<32x128xbf16, #tpu.memory_space<vmem>>, vector<32x128xbf16>,
    } else {
    }
    return
  }
  func.func @transform_0(%arg0: i32, %arg1: i32) -> (i32, i32, i32) {
    %c0_i32 = arith.constant 0 : i32
    %c0_i32_0 = arith.constant 0 : i32
    return %arg1, %arg0, %c0_i32 : i32, i32, i32
  }
  func.func @transform_1(%arg0: i32, %arg1: i32) -> (i32, i32) {
    %c0_i32 = arith.constant 0 : i32
    %c0_i32_0 = arith.constant 0 : i32
    %c0_i32_1 = arith.constant 0 : i32
    return %c0_i32, %c0_i32_0 : i32, i32
  }
  func.func @transform_2(%arg0: i32, %arg1: i32) -> (i32, i32, i32) {
    %c0_i32 = arith.constant 0 : i32
    %c0_i32_0 = arith.constant 0 : i32
    %c0_i32_1 = arith.constant 0 : i32
    %c0_i32_2 = arith.constant 0 : i32
    return %c0_i32, %c0_i32_0, %c0_i32_1 : i32, i32, i32
  }
  func.func @transform_3(%arg0: i32, %arg1: i32) -> (i32, i32) {
    %c0_i32 = arith.constant 0 : i32
    %c0_i32_0 = arith.constant 0 : i32
    %c0_i32_1 = arith.constant 0 : i32
    return %c0_i32, %c0_i32_0 : i32, i32
  }
  func.func @transform_4(%arg0: i32, %arg1: i32) -> (i32, i32) {
    %c0_i32 = arith.constant 0 : i32
    %c0_i32_0 = arith.constant 0 : i32
    return %arg0, %c0_i32 : i32, i32
  }
}

module attributes {stable_mosaic.version = 11 : i64} {
  func.func @_stage_kernel(%arg0: i32, %arg1: i32, %arg2: memref<1x16x384xbf16, #tpu.memory_space<vmem>>, %arg3: memref<384x256xbf16, #tpu.memory_space<vmem>>, %arg4: memref<8x256x256xbf16, #tpu.memory_space<vmem>>, %arg5: memref<9x256xf32, #tpu.memory_space<vmem>>, %arg6: memref<16x256xbf16, #tpu.memory_space<vmem>>, %arg7: memref<16x256xf32, #tpu.memory_space<vmem>>) attributes {dimension_semantics = [#tpu.dimension_semantics<parallel>, #tpu.dimension_semantics<arbitrary>], iteration_bounds = array<i64: 1, 4>, scalar_prefetch = 0 : i64, scratch_operands = 1 : i64, tpu.core_type = #tpu.core_type<tc>, window_params = [{transform_indices = @transform_0, window_bounds = array<i64: 1, 16, 384>}, {pipeline_mode = #tpu.pipeline_mode<synchronous>, transform_indices = @transform_1, window_bounds = array<i64: 384, 256>}, {pipeline_mode = #tpu.pipeline_mode<synchronous>, transform_indices = @transform_2, window_bounds = array<i64: 8, 256, 256>}, {pipeline_mode = #tpu.pipeline_mode<synchronous>, transform_indices = @transform_3, window_bounds = array<i64: 9, 256>}, {transform_indices = @transform_4, window_bounds = array<i64: 16, 256>}]} {
    %c0 = arith.constant 0 : index
    %c0_0 = arith.constant 0 : index
    %c0_1 = arith.constant 0 : index
    %0 = vector.load %arg2[%c0, %c0_0, %c0_1] : memref<1x16x384xbf16, #tpu.memory_space<vmem>>, vector<1x16x384xbf16>
    %1 = vector.shape_cast %0 : vector<1x16x384xbf16> to vector<16x384xbf16>
    %c0_2 = arith.constant 0 : index
    %c0_3 = arith.constant 0 : index
    %2 = vector.load %arg3[%c0_2, %c0_3] : memref<384x256xbf16, #tpu.memory_space<vmem>>, vector<384x256xbf16>
    %cst = arith.constant dense<0.000000e+00> : vector<16x256xf32>
    %3 = tpu.matmul %1, %2, %cst {dimension_numbers = #tpu.dot_dimension_numbers<[1], [0], [0], [1], [0, 0, 1, 1], [], []>} : vector<16x384xbf16>, vector<384x256xbf16>, vector<16x256xf32> -> vector<16x256xf32>
    %c0_4 = arith.constant 0 : index
    %c0_5 = arith.constant 0 : index
    %4 = vector.load %arg5[%c0_4, %c0_5] : memref<9x256xf32, #tpu.memory_space<vmem>>, vector<1x256xf32>
    %5 = vector.broadcast %4 : vector<1x256xf32> to vector<16x256xf32>
    %6 = arith.addf %3, %5 : vector<16x256xf32>
    %cst_6 = arith.constant 0.000000e+00 : f32
    %7 = vector.broadcast %cst_6 : f32 to vector<16x256xf32>
    %8 = arith.maximumf %6, %7 : vector<16x256xf32>
    %c0_7 = arith.constant 0 : index
    %c0_8 = arith.constant 0 : index
    %c0_9 = arith.constant 0 : index
    %9 = vector.load %arg4[%c0_7, %c0_8, %c0_9] : memref<8x256x256xbf16, #tpu.memory_space<vmem>>, vector<1x256x256xbf16>
    %10 = vector.shape_cast %9 : vector<1x256x256xbf16> to vector<256x256xbf16>
    %c1 = arith.constant 1 : index
    %c0_10 = arith.constant 0 : index
    %c0_11 = arith.constant 0 : index
    %11 = vector.load %arg4[%c1, %c0_10, %c0_11] : memref<8x256x256xbf16, #tpu.memory_space<vmem>>, vector<1x256x256xbf16>
    %12 = vector.shape_cast %11 : vector<1x256x256xbf16> to vector<256x256xbf16>
    %c1_12 = arith.constant 1 : index
    %c0_13 = arith.constant 0 : index
    %13 = vector.load %arg5[%c1_12, %c0_13] : memref<9x256xf32, #tpu.memory_space<vmem>>, vector<1x256xf32>
    %c2 = arith.constant 2 : index
    %c0_14 = arith.constant 0 : index
    %14 = vector.load %arg5[%c2, %c0_14] : memref<9x256xf32, #tpu.memory_space<vmem>>, vector<1x256xf32>
    %15 = arith.truncf %8 : vector<16x256xf32> to vector<16x256xbf16>
    %cst_15 = arith.constant dense<0.000000e+00> : vector<16x256xf32>
    %16 = tpu.matmul %15, %10, %cst_15 {dimension_numbers = #tpu.dot_dimension_numbers<[1], [0], [0], [1], [0, 0, 1, 1], [], []>} : vector<16x256xbf16>, vector<256x256xbf16>, vector<16x256xf32> -> vector<16x256xf32>
    %17 = vector.broadcast %13 : vector<1x256xf32> to vector<16x256xf32>
    %18 = arith.addf %16, %17 : vector<16x256xf32>
    %cst_16 = arith.constant 0.000000e+00 : f32
    %19 = vector.broadcast %cst_16 : f32 to vector<16x256xf32>
    %20 = arith.maximumf %18, %19 : vector<16x256xf32>
    %21 = arith.truncf %20 : vector<16x256xf32> to vector<16x256xbf16>
    %cst_17 = arith.constant dense<0.000000e+00> : vector<16x256xf32>
    %22 = tpu.matmul %21, %12, %cst_17 {dimension_numbers = #tpu.dot_dimension_numbers<[1], [0], [0], [1], [0, 0, 1, 1], [], []>} : vector<16x256xbf16>, vector<256x256xbf16>, vector<16x256xf32> -> vector<16x256xf32>
    %23 = vector.broadcast %14 : vector<1x256xf32> to vector<16x256xf32>
    %24 = arith.addf %22, %23 : vector<16x256xf32>
    %25 = arith.addf %24, %8 : vector<16x256xf32>
    %cst_18 = arith.constant 0.000000e+00 : f32
    %26 = vector.broadcast %cst_18 : f32 to vector<16x256xf32>
    %27 = arith.maximumf %25, %26 : vector<16x256xf32>
    %c2_19 = arith.constant 2 : index
    %c0_20 = arith.constant 0 : index
    %c0_21 = arith.constant 0 : index
    %28 = vector.load %arg4[%c2_19, %c0_20, %c0_21] : memref<8x256x256xbf16, #tpu.memory_space<vmem>>, vector<1x256x256xbf16>
    %29 = vector.shape_cast %28 : vector<1x256x256xbf16> to vector<256x256xbf16>
    %c3 = arith.constant 3 : index
    %c0_22 = arith.constant 0 : index
    %c0_23 = arith.constant 0 : index
    %30 = vector.load %arg4[%c3, %c0_22, %c0_23] : memref<8x256x256xbf16, #tpu.memory_space<vmem>>, vector<1x256x256xbf16>
    %31 = vector.shape_cast %30 : vector<1x256x256xbf16> to vector<256x256xbf16>
    %c3_24 = arith.constant 3 : index
    %c0_25 = arith.constant 0 : index
    %32 = vector.load %arg5[%c3_24, %c0_25] : memref<9x256xf32, #tpu.memory_space<vmem>>, vector<1x256xf32>
    %c4 = arith.constant 4 : index
    %c0_26 = arith.constant 0 : index
    %33 = vector.load %arg5[%c4, %c0_26] : memref<9x256xf32, #tpu.memory_space<vmem>>, vector<1x256xf32>
    %34 = arith.truncf %27 : vector<16x256xf32> to vector<16x256xbf16>
    %cst_27 = arith.constant dense<0.000000e+00> : vector<16x256xf32>
    %35 = tpu.matmul %34, %29, %cst_27 {dimension_numbers = #tpu.dot_dimension_numbers<[1], [0], [0], [1], [0, 0, 1, 1], [], []>} : vector<16x256xbf16>, vector<256x256xbf16>, vector<16x256xf32> -> vector<16x256xf32>
    %36 = vector.broadcast %32 : vector<1x256xf32> to vector<16x256xf32>
    %37 = arith.addf %35, %36 : vector<16x256xf32>
    %cst_28 = arith.constant 0.000000e+00 : f32
    %38 = vector.broadcast %cst_28 : f32 to vector<16x256xf32>
    %39 = arith.maximumf %37, %38 : vector<16x256xf32>
    %40 = arith.truncf %39 : vector<16x256xf32> to vector<16x256xbf16>
    %cst_29 = arith.constant dense<0.000000e+00> : vector<16x256xf32>
    %41 = tpu.matmul %40, %31, %cst_29 {dimension_numbers = #tpu.dot_dimension_numbers<[1], [0], [0], [1], [0, 0, 1, 1], [], []>} : vector<16x256xbf16>, vector<256x256xbf16>, vector<16x256xf32> -> vector<16x256xf32>
    %42 = vector.broadcast %33 : vector<1x256xf32> to vector<16x256xf32>
    %43 = arith.addf %41, %42 : vector<16x256xf32>
    %44 = arith.addf %43, %27 : vector<16x256xf32>
    %cst_30 = arith.constant 0.000000e+00 : f32
    %45 = vector.broadcast %cst_30 : f32 to vector<16x256xf32>
    %46 = arith.maximumf %44, %45 : vector<16x256xf32>
    %c0_i32 = arith.constant 0 : i32
    %47 = arith.cmpi eq, %arg1, %c0_i32 : i32
    %48 = arith.extui %47 : i1 to i32
    %c0_i32_31 = arith.constant 0 : i32
    %49 = arith.cmpi ne, %48, %c0_i32_31 : i32
    scf.if %49 {
      %c0_35 = arith.constant 0 : index
      %c0_36 = arith.constant 0 : index
      %56 = vector.load %arg7[%c0_35, %c0_36] : memref<16x256xf32, #tpu.memory_space<vmem>>, vector<16x256xf32>
      tpu.vector_store %arg7[%c0_35, %c0_36], %46 {strides = array<i32>} : memref<16x256xf32, #tpu.memory_space<vmem>>, vector<16x256xf32>,
    } else {
    }
    %c0_i32_32 = arith.constant 0 : i32
    %50 = arith.cmpi sgt, %arg1, %c0_i32_32 : i32
    %51 = arith.extui %50 : i1 to i32
    %c0_i32_33 = arith.constant 0 : i32
    %52 = arith.cmpi ne, %51, %c0_i32_33 : i32
    scf.if %52 {
      %c0_35 = arith.constant 0 : index
      %c0_36 = arith.constant 0 : index
      %56 = vector.load %arg7[%c0_35, %c0_36] : memref<16x256xf32, #tpu.memory_space<vmem>>, vector<16x256xf32>
      %57 = arith.maximumf %56, %46 : vector<16x256xf32>
      %c0_37 = arith.constant 0 : index
      %c0_38 = arith.constant 0 : index
      %58 = vector.load %arg7[%c0_37, %c0_38] : memref<16x256xf32, #tpu.memory_space<vmem>>, vector<16x256xf32>
      tpu.vector_store %arg7[%c0_37, %c0_38], %57 {strides = array<i32>} : memref<16x256xf32, #tpu.memory_space<vmem>>, vector<16x256xf32>,
    } else {
    }
    %c3_i32 = arith.constant 3 : i32
    %53 = arith.cmpi eq, %arg1, %c3_i32 : i32
    %54 = arith.extui %53 : i1 to i32
    %c0_i32_34 = arith.constant 0 : i32
    %55 = arith.cmpi ne, %54, %c0_i32_34 : i32
    scf.if %55 {
      %c0_35 = arith.constant 0 : index
      %c0_36 = arith.constant 0 : index
      %56 = vector.load %arg7[%c0_35, %c0_36] : memref<16x256xf32, #tpu.memory_space<vmem>>, vector<16x256xf32>
      %c4_37 = arith.constant 4 : index
      %c0_38 = arith.constant 0 : index
      %c0_39 = arith.constant 0 : index
      %57 = vector.load %arg4[%c4_37, %c0_38, %c0_39] : memref<8x256x256xbf16, #tpu.memory_space<vmem>>, vector<1x256x256xbf16>
      %58 = vector.shape_cast %57 : vector<1x256x256xbf16> to vector<256x256xbf16>
      %c5 = arith.constant 5 : index
      %c0_40 = arith.constant 0 : index
      %c0_41 = arith.constant 0 : index
      %59 = vector.load %arg4[%c5, %c0_40, %c0_41] : memref<8x256x256xbf16, #tpu.memory_space<vmem>>, vector<1x256x256xbf16>
      %60 = vector.shape_cast %59 : vector<1x256x256xbf16> to vector<256x256xbf16>
      %c5_42 = arith.constant 5 : index
      %c0_43 = arith.constant 0 : index
      %61 = vector.load %arg5[%c5_42, %c0_43] : memref<9x256xf32, #tpu.memory_space<vmem>>, vector<1x256xf32>
      %c6 = arith.constant 6 : index
      %c0_44 = arith.constant 0 : index
      %62 = vector.load %arg5[%c6, %c0_44] : memref<9x256xf32, #tpu.memory_space<vmem>>, vector<1x256xf32>
      %63 = arith.truncf %56 : vector<16x256xf32> to vector<16x256xbf16>
      %cst_45 = arith.constant dense<0.000000e+00> : vector<16x256xf32>
      %64 = tpu.matmul %63, %58, %cst_45 {dimension_numbers = #tpu.dot_dimension_numbers<[1], [0], [0], [1], [0, 0, 1, 1], [], []>} : vector<16x256xbf16>, vector<256x256xbf16>, vector<16x256xf32> -> vector<16x256xf32>
      %65 = vector.broadcast %61 : vector<1x256xf32> to vector<16x256xf32>
      %66 = arith.addf %64, %65 : vector<16x256xf32>
      %cst_46 = arith.constant 0.000000e+00 : f32
      %67 = vector.broadcast %cst_46 : f32 to vector<16x256xf32>
      %68 = arith.maximumf %66, %67 : vector<16x256xf32>
      %69 = arith.truncf %68 : vector<16x256xf32> to vector<16x256xbf16>
      %cst_47 = arith.constant dense<0.000000e+00> : vector<16x256xf32>
      %70 = tpu.matmul %69, %60, %cst_47 {dimension_numbers = #tpu.dot_dimension_numbers<[1], [0], [0], [1], [0, 0, 1, 1], [], []>} : vector<16x256xbf16>, vector<256x256xbf16>, vector<16x256xf32> -> vector<16x256xf32>
      %71 = vector.broadcast %62 : vector<1x256xf32> to vector<16x256xf32>
      %72 = arith.addf %70, %71 : vector<16x256xf32>
      %73 = arith.addf %72, %56 : vector<16x256xf32>
      %cst_48 = arith.constant 0.000000e+00 : f32
      %74 = vector.broadcast %cst_48 : f32 to vector<16x256xf32>
      %75 = arith.maximumf %73, %74 : vector<16x256xf32>
      %c6_49 = arith.constant 6 : index
      %c0_50 = arith.constant 0 : index
      %c0_51 = arith.constant 0 : index
      %76 = vector.load %arg4[%c6_49, %c0_50, %c0_51] : memref<8x256x256xbf16, #tpu.memory_space<vmem>>, vector<1x256x256xbf16>
      %77 = vector.shape_cast %76 : vector<1x256x256xbf16> to vector<256x256xbf16>
      %c7 = arith.constant 7 : index
      %c0_52 = arith.constant 0 : index
      %c0_53 = arith.constant 0 : index
      %78 = vector.load %arg4[%c7, %c0_52, %c0_53] : memref<8x256x256xbf16, #tpu.memory_space<vmem>>, vector<1x256x256xbf16>
      %79 = vector.shape_cast %78 : vector<1x256x256xbf16> to vector<256x256xbf16>
      %c7_54 = arith.constant 7 : index
      %c0_55 = arith.constant 0 : index
      %80 = vector.load %arg5[%c7_54, %c0_55] : memref<9x256xf32, #tpu.memory_space<vmem>>, vector<1x256xf32>
      %c8 = arith.constant 8 : index
      %c0_56 = arith.constant 0 : index
      %81 = vector.load %arg5[%c8, %c0_56] : memref<9x256xf32, #tpu.memory_space<vmem>>, vector<1x256xf32>
      %82 = arith.truncf %75 : vector<16x256xf32> to vector<16x256xbf16>
      %cst_57 = arith.constant dense<0.000000e+00> : vector<16x256xf32>
      %83 = tpu.matmul %82, %77, %cst_57 {dimension_numbers = #tpu.dot_dimension_numbers<[1], [0], [0], [1], [0, 0, 1, 1], [], []>} : vector<16x256xbf16>, vector<256x256xbf16>, vector<16x256xf32> -> vector<16x256xf32>
      %84 = vector.broadcast %80 : vector<1x256xf32> to vector<16x256xf32>
      %85 = arith.addf %83, %84 : vector<16x256xf32>
      %cst_58 = arith.constant 0.000000e+00 : f32
      %86 = vector.broadcast %cst_58 : f32 to vector<16x256xf32>
      %87 = arith.maximumf %85, %86 : vector<16x256xf32>
      %88 = arith.truncf %87 : vector<16x256xf32> to vector<16x256xbf16>
      %cst_59 = arith.constant dense<0.000000e+00> : vector<16x256xf32>
      %89 = tpu.matmul %88, %79, %cst_59 {dimension_numbers = #tpu.dot_dimension_numbers<[1], [0], [0], [1], [0, 0, 1, 1], [], []>} : vector<16x256xbf16>, vector<256x256xbf16>, vector<16x256xf32> -> vector<16x256xf32>
      %90 = vector.broadcast %81 : vector<1x256xf32> to vector<16x256xf32>
      %91 = arith.addf %89, %90 : vector<16x256xf32>
      %92 = arith.addf %91, %75 : vector<16x256xf32>
      %cst_60 = arith.constant 0.000000e+00 : f32
      %93 = vector.broadcast %cst_60 : f32 to vector<16x256xf32>
      %94 = arith.maximumf %92, %93 : vector<16x256xf32>
      %95 = arith.truncf %94 : vector<16x256xf32> to vector<16x256xbf16>
      %c0_61 = arith.constant 0 : index
      %c0_62 = arith.constant 0 : index
      %96 = vector.load %arg6[%c0_61, %c0_62] : memref<16x256xbf16, #tpu.memory_space<vmem>>, vector<16x256xbf16>
      tpu.vector_store %arg6[%c0_61, %c0_62], %95 {strides = array<i32>} : memref<16x256xbf16, #tpu.memory_space<vmem>>, vector<16x256xbf16>,
    } else {
    }
    return
  }
  func.func @transform_0(%arg0: i32, %arg1: i32) -> (i32, i32, i32) {
    %c0_i32 = arith.constant 0 : i32
    %c0_i32_0 = arith.constant 0 : i32
    return %arg1, %arg0, %c0_i32 : i32, i32, i32
  }
  func.func @transform_1(%arg0: i32, %arg1: i32) -> (i32, i32) {
    %c0_i32 = arith.constant 0 : i32
    %c0_i32_0 = arith.constant 0 : i32
    %c0_i32_1 = arith.constant 0 : i32
    return %c0_i32, %c0_i32_0 : i32, i32
  }
  func.func @transform_2(%arg0: i32, %arg1: i32) -> (i32, i32, i32) {
    %c0_i32 = arith.constant 0 : i32
    %c0_i32_0 = arith.constant 0 : i32
    %c0_i32_1 = arith.constant 0 : i32
    %c0_i32_2 = arith.constant 0 : i32
    return %c0_i32, %c0_i32_0, %c0_i32_1 : i32, i32, i32
  }
  func.func @transform_3(%arg0: i32, %arg1: i32) -> (i32, i32) {
    %c0_i32 = arith.constant 0 : i32
    %c0_i32_0 = arith.constant 0 : i32
    %c0_i32_1 = arith.constant 0 : i32
    return %c0_i32, %c0_i32_0 : i32, i32
  }
  func.func @transform_4(%arg0: i32, %arg1: i32) -> (i32, i32) {
    %c0_i32 = arith.constant 0 : i32
    %c0_i32_0 = arith.constant 0 : i32
    return %arg0, %c0_i32 : i32, i32
  }
}

</mosaic_0001>

<llo_original>
// kernel: tpu_custom_call.1
$region0: #{tpu_custom_call.1}
  #allocation0 [shape = 'u32[]', space=smem, size = 0x4, offset = 0x4, fixed_abs, tag = 'smem constant byte address 0x4 - core index']
  #allocation1 [shape = 'u32[144,128]{1,0:T(1,128)}', space=vmem, size = 0x12000, scoped, tag = 'internal scratch']
  %s0 = inlined_call_operand.hbm [shape: f32[32,128], index: 0, kind: input, shape index: {}]
  %s1 = inlined_call_operand.hbm [shape: f32[8,128], index: 1, kind: input, shape index: {}]
  %s2 = inlined_call_operand.hbm [shape: f32[32,128], index: 2, kind: output, shape index: {}]
  %s3 = sld [smem:[#allocation0]]
  $region49: #{tpu_custom_call.1} parent=0
    _
  %s5 = ssub.s32 1, %s3
  %s6 = scalar_select 0, %s5, %s3
  $region1: #{tpu_custom_call.1} parent=0
    #allocation2 [shape = 'u8[8192]{0}', space=vmem, size = 0x2000, scoped, tag = 'input window, operand 0']
    #allocation3 [shape = 's32[2]{0}', space=sflag, size = 0x8, scoped, tag = 'scoped memory for tpu_custom_call.1']
    #allocation4 [shape = 's32[2]{0}', space=sflag, size = 0x8, scoped, tag = 'scoped memory for tpu_custom_call.1']
    #allocation5 [shape = 'u8[4096]{0}', space=vmem, size = 0x1000, scoped, tag = 'input window, operand 1, single buffered']
    #allocation6 [shape = 's32[1]{0}', space=sflag, size = 0x4, scoped, tag = 'scoped memory for tpu_custom_call.1']
    #allocation7 [shape = 'u8[8192]{0}', space=vmem, size = 0x2000, scoped, tag = 'output window, operand 0']
    %7 = vsyncpa [#allocation3], 0
    %s8 = scalar_lea.sflag [#allocation3], 1
    %9 = vsyncpa %s8, 0
    %10 = vsyncpa [#allocation6], 0
    %11 = vsyncpa [#allocation4], 0
    %s12 = scalar_lea.sflag [#allocation4], 1
    %13 = vsyncpa %s12, 0
    loop: start=0, step=1, limit=6
    $region2: #{tpu_custom_call.1} parent=1 // loop_pre_header
      _
    $region3: #{tpu_custom_call.1} parent=1 // loop_header
      %s15 = sphi 0, %s19
      %p16 = scmp.ge.s32.totalorder %s15, 6
      %s25 = sphi 0, %s27
      %s28 = sphi 0, %s25
      %s29 = sphi 0, %s28
      %s45 = sphi 0, %s29
      %s49 = sphi 0, %s49
      %s51 = sphi 0, %s49
      %s52 = sphi 0, %s51
      %s66 = sphi 0, %s52
      %s72 = sphi 0, %s74
      %s75 = sphi 0, %s72
      %s76 = sphi 0, %s75
      %s92 = sphi 0, %s76
    $region4: #{tpu_custom_call.1} parent=1 // loop_header_branch
      %18 = sbr.rel (%p16) target = $region8
    $region5: #{tpu_custom_call.1} parent=1 // loop_body
      %s20 = ssub.s32 %s15, 1
      %s21 = ssub.s32 %s15, 2
      %s22 = sadd.s32 %s15, 1
      %s23 = ssub.s32 %s15, %s22
      %p24 = scmp.eq.s32.totalorder %s23, 0
      %s26 = sadd.s32 %s25, 1
      %s27 = scalar_select %p24, %s25, %s26
      %p30 = pneg %p24
      %p31 = scmp.eq.s32.totalorder %s15, 3
      %p32 = por %p30, %p31
      %p33 = scmp.ne.s32.totalorder %s25, %s28
      %p34 = scmp.eq.s32.totalorder %s15, 0
      %p35 = por %p33, %p34
      %p36 = scmp.ne.s32.totalorder %s25, %s28
      %p37 = scmp.eq.s32.totalorder %s20, 3
      %p38 = por %p36, %p37
      %p39 = scmp.ne.s32.totalorder %s28, %s29
      %p40 = scmp.eq.s32.totalorder %s20, 0
      %p41 = por %p39, %p40
      %p42 = scmp.ne.s32.totalorder %s28, %s29
      %p43 = scmp.eq.s32.totalorder %s21, 3
      %p44 = por %p42, %p43
      %p46 = scmp.ne.s32.totalorder %s29, %s45
      %p47 = scmp.eq.s32.totalorder %s21, 0
      %p48 = por %p46, %p47
      %s50 = sadd.s32 %s49, 1
      %p53 = scmp.eq.s32.totalorder %s15, 3
      %p54 = scmp.ne.s32.totalorder %s49, %s51
      %p55 = scmp.eq.s32.totalorder %s15, 0
      %p56 = por %p54, %p55
      %p57 = scmp.ne.s32.totalorder %s49, %s51
      %p58 = scmp.eq.s32.totalorder %s20, 3
      %p59 = por %p57, %p58
      %p60 = scmp.ne.s32.totalorder %s51, %s52
      %p61 = scmp.eq.s32.totalorder %s20, 0
      %p62 = por %p60, %p61
      %p63 = scmp.ne.s32.totalorder %s51, %s52
      %p64 = scmp.eq.s32.totalorder %s21, 3
      %p65 = por %p63, %p64
      %p67 = scmp.ne.s32.totalorder %s52, %s66
      %p68 = scmp.eq.s32.totalorder %s21, 0
      %p69 = por %p67, %p68
      %s70 = ssub.s32 %s15, %s22
      %p71 = scmp.eq.s32.totalorder %s70, 0
      %s73 = sadd.s32 %s72, 1
      %s74 = scalar_select %p71, %s72, %s73
      %p77 = pneg %p71
      %p78 = scmp.eq.s32.totalorder %s15, 3
      %p79 = por %p77, %p78
      %p80 = scmp.ne.s32.totalorder %s72, %s75
      %p81 = scmp.eq.s32.totalorder %s15, 0
      %p82 = por %p80, %p81
      %p83 = scmp.ne.s32.totalorder %s72, %s75
      %p84 = scmp.eq.s32.totalorder %s20, 3
      %p85 = por %p83, %p84
      %p86 = scmp.ne.s32.totalorder %s75, %s76
      %p87 = scmp.eq.s32.totalorder %s20, 0
      %p88 = por %p86, %p87
      %p89 = scmp.ne.s32.totalorder %s75, %s76
      %p90 = scmp.eq.s32.totalorder %s21, 3
      %p91 = por %p89, %p90
      %p93 = scmp.ne.s32.totalorder %s76, %s92
      %p94 = scmp.eq.s32.totalorder %s21, 0
      %p95 = por %p93, %p94
      %p96 = scmp.le.s32.totalorder 1, %s15
      %p97 = scmp.lt.s32.totalorder %s15, 5
      %p98 = pnand %p96, %p97
      %p99 = pneg %p98
      // Predicated region
      $region9: #{tpu_custom_call.1} parent=5 // pred_check
        _
      $region10: #{tpu_custom_call.1} parent=5 // pred_check_branch
        %101 = sbr.rel (%p98) target = $region12
      $region11: #{tpu_custom_call.1} parent=5 // pred_region
        %s102 = ssub.s32 %s15, 1
        // Predicated region
        $region13: #{tpu_custom_call.1} parent=11 // pred_check
          %p103 = pneg %p62
        $region14: #{tpu_custom_call.1} parent=11 // pred_check_branch
          %105 = sbr.rel (%p103) target = $region16
        $region15: #{tpu_custom_call.1} parent=11 // pred_region
          %s107 = ssub.s32 128, 128
          %108 = vsyncadd [#allocation6], %s107
          %s110 = sshll.u32 [#allocation5], 4
          %s111 = int_to_ptr.vmem [resolvable:$true] %s110
          %113 = dma.hbm_to_vmem [thread:$0]  %s1, 128, %s111, [#allocation6]
        $region16: #{tpu_custom_call.1} parent=11 // pred_fallthru
          _
      $region12: #{tpu_custom_call.1} parent=5 // pred_fallthru
        _
      %p114 = scmp.lt.s32.totalorder %s15, 4
      // Predicated region
      $region17: #{tpu_custom_call.1} parent=5 // pred_check
        %p115 = pneg %p114
      $region18: #{tpu_custom_call.1} parent=5 // pred_check_branch
        %117 = sbr.rel (%p115) target = $region20
      $region19: #{tpu_custom_call.1} parent=5 // pred_region
        // Predicated region
        $region21: #{tpu_custom_call.1} parent=19 // pred_check
          %p118 = pneg %p35
        $region22: #{tpu_custom_call.1} parent=19 // pred_check_branch
          %120 = sbr.rel (%p118) target = $region24
        $region23: #{tpu_custom_call.1} parent=19 // pred_region
          %s121 = sand.u32 %s25, 1
          %s122 = scalar_lea.sflag [#allocation3], %s121
          %s123 = sand.u32 %s25, 1
          %s124 = smul.addr %s123, 8
          %s125 = scalar_lea.vmem [#allocation2], %s124
          %s127 = ssub.s32 128, 128
          %128 = vsyncadd %s122, %s127
          %s129 = smul.addr %s15, 128
          %s130 = scalar_lea.hbm %s0, %s129
          %s132 = sshll.u32 %s125, 4
          %s133 = int_to_ptr.vmem [resolvable:$true] %s132
          %135 = dma.hbm_to_vmem [thread:$0]  %s130, 128, %s133, %s122
        $region24: #{tpu_custom_call.1} parent=19 // pred_fallthru
          _
      $region20: #{tpu_custom_call.1} parent=5 // pred_fallthru
        _
      %p136 = scmp.le.s32.totalorder 1, %s15
      %p137 = scmp.lt.s32.totalorder %s15, 5
      %p138 = pnand %p136, %p137
      %p139 = pneg %p138
      // Predicated region
      $region25: #{tpu_custom_call.1} parent=5 // pred_check
        _
      $region26: #{tpu_custom_call.1} parent=5 // pred_check_branch
        %141 = sbr.rel (%p138) target = $region28
      $region27: #{tpu_custom_call.1} parent=5 // pred_region
        %s142 = ssub.s32 %s15, 1
        %s143 = sand.u32 %s28, 1
        %s144 = scalar_lea.sflag [#allocation3], %s143
        %s145 = sand.u32 %s28, 1
        %s146 = smul.addr %s145, 8
        %s147 = scalar_lea.vmem [#allocation2], %s146
        // Predicated region
        $region29: #{tpu_custom_call.1} parent=27 // pred_check
          %p148 = pneg %p41
        $region30: #{tpu_custom_call.1} parent=27 // pred_check_branch
          %150 = sbr.rel (%p148) target = $region32
        $region31: #{tpu_custom_call.1} parent=27 // pred_region
          %151 = dma.done %s144, 128
        $region32: #{tpu_custom_call.1} parent=27 // pred_fallthru
          _
        // Predicated region
        $region33: #{tpu_custom_call.1} parent=27 // pred_check
          %p152 = pneg %p62
        $region34: #{tpu_custom_call.1} parent=27 // pred_check_branch
          %154 = sbr.rel (%p152) target = $region36
        $region35: #{tpu_custom_call.1} parent=27 // pred_region
          %155 = dma.done [#allocation6], 128
        $region36: #{tpu_custom_call.1} parent=27 // pred_fallthru
          _
        %s156 = sand.u32 %s28, 1
        %s157 = scalar_lea.sflag [#allocation3], %s156
        %s158 = sand.u32 %s28, 1
        %s159 = smul.addr %s158, 8
        %s160 = scalar_lea.vmem [#allocation2], %s159
        %p161 = pneg %p41
        %p162 = pneg %p38
        %p163 = pneg %p62
        %p164 = pneg %p59
        %p165 = pneg %p88
        %p166 = pneg %p85
        %s167 = sand.u32 %s75, 1
        %s168 = scalar_lea.sflag [#allocation4], %s167
        %s169 = sand.u32 %s75, 1
        %s170 = smul.addr %s169, 8
        %s171 = scalar_lea.vmem [#allocation7], %s170
        %v172 = vld [vmem:[%s147] sm:$0xff]
        %v173 = vld [vmem:[#allocation5] sm:$0xff]
        %v174 = vadd.f32 %v172, %v173
        %175 = vst [vmem:[%s171] sm:$0xff] %v174
        %s176 = sand.u32 %s75, 1
        %s177 = scalar_lea.sflag [#allocation4], %s176
        %s178 = sand.u32 %s75, 1
        %s179 = smul.addr %s178, 8
        %s180 = scalar_lea.vmem [#allocation7], %s179
        // Predicated region
        $region37: #{tpu_custom_call.1} parent=27 // pred_check
          %p181 = pneg %p85
        $region38: #{tpu_custom_call.1} parent=27 // pred_check_branch
          %183 = sbr.rel (%p181) target = $region40
        $region39: #{tpu_custom_call.1} parent=27 // pred_region
          %s185 = ssub.s32 128, 128
          %186 = vsyncadd %s177, %s185
          %s187 = smul.addr %s20, 128
          %s188 = scalar_lea.hbm %s2, %s187
          %s190 = sshll.u32 %s180, 4
          %s191 = int_to_ptr.vmem [resolvable:$true] %s190
          %193 = dma.vmem_to_hbm [thread:$0]  %s191, 128, %s188, %s177
        $region40: #{tpu_custom_call.1} parent=27 // pred_fallthru
          _
      $region28: #{tpu_custom_call.1} parent=5 // pred_fallthru
        _
      %p194 = scmp.le.s32.totalorder 2, %s15
      // Predicated region
      $region41: #{tpu_custom_call.1} parent=5 // pred_check
        %p195 = pneg %p194
      $region42: #{tpu_custom_call.1} parent=5 // pred_check_branch
        %197 = sbr.rel (%p195) target = $region44
      $region43: #{tpu_custom_call.1} parent=5 // pred_region
        %s198 = ssub.s32 %s15, 2
        // Predicated region
        $region45: #{tpu_custom_call.1} parent=43 // pred_check
          %p199 = pneg %p91
        $region46: #{tpu_custom_call.1} parent=43 // pred_check_branch
          %201 = sbr.rel (%p199) target = $region48
        $region47: #{tpu_custom_call.1} parent=43 // pred_region
          %s202 = sand.u32 %s76, 1
          %s203 = scalar_lea.sflag [#allocation4], %s202
          %s204 = sand.u32 %s76, 1
          %s205 = smul.addr %s204, 8
          %s206 = scalar_lea.vmem [#allocation7], %s205
          %207 = dma.done %s203, 128
        $region48: #{tpu_custom_call.1} parent=43 // pred_fallthru
          _
      $region44: #{tpu_custom_call.1} parent=5 // pred_fallthru
        _
    $region6: #{tpu_custom_call.1} parent=1 // loop_footer
      %s19 = sadd.s32 1, %s15
    $region7: #{tpu_custom_call.1} parent=1 // loop_footer_branch
      %14 = sbr.rel target = $region3
    $region8: #{tpu_custom_call.1} parent=1 // loop_exit
      _
    %208 = vsyncpa [#allocation3], 1
    %s209 = scalar_lea.sflag [#allocation3], 1
    %210 = vsyncpa %s209, 1
    %211 = vsyncpa [#allocation6], 1
    %212 = vsyncpa [#allocation4], 1
    %s213 = scalar_lea.sflag [#allocation4], 1
    %214 = vsyncpa %s213, 1

// kernel: tpu_custom_call.1
$region0: #{tpu_custom_call.1}
  #allocation0 [shape = 'u32[]', space=smem, size = 0x4, offset = 0x4, fixed_abs, tag = 'smem constant byte address 0x4 - core index']
  #allocation1 [shape = 'u32[144,128]{1,0:T(1,128)}', space=vmem, size = 0x12000, scoped, tag = 'internal scratch']
  %s0 = inlined_call_operand.hbm [shape: f32[32,128], index: 0, kind: input, shape index: {}]
  %s1 = inlined_call_operand.hbm [shape: f32[8,128], index: 1, kind: input, shape index: {}]
  %s2 = inlined_call_operand.hbm [shape: f32[32,128], index: 2, kind: output, shape index: {}]
  %s3 = sld [smem:[#allocation0]]
  $region49: #{tpu_custom_call.1} parent=0
    _
  %s5 = ssub.s32 1, %s3
  %s6 = scalar_select 0, %s5, %s3
  $region1: #{tpu_custom_call.1} parent=0
    #allocation2 [shape = 'u8[8192]{0}', space=vmem, size = 0x2000, scoped, tag = 'input window, operand 0']
    #allocation3 [shape = 's32[2]{0}', space=sflag, size = 0x8, scoped, tag = 'scoped memory for tpu_custom_call.1']
    #allocation4 [shape = 's32[2]{0}', space=sflag, size = 0x8, scoped, tag = 'scoped memory for tpu_custom_call.1']
    #allocation5 [shape = 'u8[4096]{0}', space=vmem, size = 0x1000, scoped, tag = 'input window, operand 1, single buffered']
    #allocation6 [shape = 's32[1]{0}', space=sflag, size = 0x4, scoped, tag = 'scoped memory for tpu_custom_call.1']
    #allocation7 [shape = 'u8[8192]{0}', space=vmem, size = 0x2000, scoped, tag = 'output window, operand 0']
    %7 = vsyncpa [#allocation3], 0
    %s8 = scalar_lea.sflag [#allocation3], 1
    %9 = vsyncpa %s8, 0
    %10 = vsyncpa [#allocation6], 0
    %11 = vsyncpa [#allocation4], 0
    %s12 = scalar_lea.sflag [#allocation4], 1
    %13 = vsyncpa %s12, 0
    loop: start=0, step=1, limit=6
    $region2: #{tpu_custom_call.1} parent=1 // loop_pre_header
      _
    $region3: #{tpu_custom_call.1} parent=1 // loop_header
      %s15 = sphi 0, %s19
      %p16 = scmp.ge.s32.totalorder %s15, 6
      %s25 = sphi 0, %s27
      %s28 = sphi 0, %s25
      %s29 = sphi 0, %s28
      %s45 = sphi 0, %s29
      %s49 = sphi 0, %s49
      %s51 = sphi 0, %s49
      %s52 = sphi 0, %s51
      %s66 = sphi 0, %s52
      %s72 = sphi 0, %s74
      %s75 = sphi 0, %s72
      %s76 = sphi 0, %s75
      %s92 = sphi 0, %s76
    $region4: #{tpu_custom_call.1} parent=1 // loop_header_branch
      %18 = sbr.rel (%p16) target = $region8
    $region5: #{tpu_custom_call.1} parent=1 // loop_body
      %s20 = ssub.s32 %s15, 1
      %s21 = ssub.s32 %s15, 2
      %s22 = sadd.s32 %s15, 1
      %s23 = ssub.s32 %s15, %s22
      %p24 = scmp.eq.s32.totalorder %s23, 0
      %s26 = sadd.s32 %s25, 1
      %s27 = scalar_select %p24, %s25, %s26
      %p30 = pneg %p24
      %p31 = scmp.eq.s32.totalorder %s15, 3
      %p32 = por %p30, %p31
      %p33 = scmp.ne.s32.totalorder %s25, %s28
      %p34 = scmp.eq.s32.totalorder %s15, 0
      %p35 = por %p33, %p34
      %p36 = scmp.ne.s32.totalorder %s25, %s28
      %p37 = scmp.eq.s32.totalorder %s20, 3
      %p38 = por %p36, %p37
      %p39 = scmp.ne.s32.totalorder %s28, %s29
      %p40 = scmp.eq.s32.totalorder %s20, 0
      %p41 = por %p39, %p40
      %p42 = scmp.ne.s32.totalorder %s28, %s29
      %p43 = scmp.eq.s32.totalorder %s21, 3
      %p44 = por %p42, %p43
      %p46 = scmp.ne.s32.totalorder %s29, %s45
      %p47 = scmp.eq.s32.totalorder %s21, 0
      %p48 = por %p46, %p47
      %s50 = sadd.s32 %s49, 1
      %p53 = scmp.eq.s32.totalorder %s15, 3
      %p54 = scmp.ne.s32.totalorder %s49, %s51
      %p55 = scmp.eq.s32.totalorder %s15, 0
      %p56 = por %p54, %p55
      %p57 = scmp.ne.s32.totalorder %s49, %s51
      %p58 = scmp.eq.s32.totalorder %s20, 3
      %p59 = por %p57, %p58
      %p60 = scmp.ne.s32.totalorder %s51, %s52
      %p61 = scmp.eq.s32.totalorder %s20, 0
      %p62 = por %p60, %p61
      %p63 = scmp.ne.s32.totalorder %s51, %s52
      %p64 = scmp.eq.s32.totalorder %s21, 3
      %p65 = por %p63, %p64
      %p67 = scmp.ne.s32.totalorder %s52, %s66
      %p68 = scmp.eq.s32.totalorder %s21, 0
      %p69 = por %p67, %p68
      %s70 = ssub.s32 %s15, %s22
      %p71 = scmp.eq.s32.totalorder %s70, 0
      %s73 = sadd.s32 %s72, 1
      %s74 = scalar_select %p71, %s72, %s73
      %p77 = pneg %p71
      %p78 = scmp.eq.s32.totalorder %s15, 3
      %p79 = por %p77, %p78
      %p80 = scmp.ne.s32.totalorder %s72, %s75
      %p81 = scmp.eq.s32.totalorder %s15, 0
      %p82 = por %p80, %p81
      %p83 = scmp.ne.s32.totalorder %s72, %s75
      %p84 = scmp.eq.s32.totalorder %s20, 3
      %p85 = por %p83, %p84
      %p86 = scmp.ne.s32.totalorder %s75, %s76
      %p87 = scmp.eq.s32.totalorder %s20, 0
      %p88 = por %p86, %p87
      %p89 = scmp.ne.s32.totalorder %s75, %s76
      %p90 = scmp.eq.s32.totalorder %s21, 3
      %p91 = por %p89, %p90
      %p93 = scmp.ne.s32.totalorder %s76, %s92
      %p94 = scmp.eq.s32.totalorder %s21, 0
      %p95 = por %p93, %p94
      %p96 = scmp.le.s32.totalorder 1, %s15
      %p97 = scmp.lt.s32.totalorder %s15, 5
      %p98 = pnand %p96, %p97
      %p99 = pneg %p98
      // Predicated region
      $region9: #{tpu_custom_call.1} parent=5 // pred_check
        _
      $region10: #{tpu_custom_call.1} parent=5 // pred_check_branch
        %101 = sbr.rel (%p98) target = $region12
      $region11: #{tpu_custom_call.1} parent=5 // pred_region
        %s102 = ssub.s32 %s15, 1
        // Predicated region
        $region13: #{tpu_custom_call.1} parent=11 // pred_check
          %p103 = pneg %p62
        $region14: #{tpu_custom_call.1} parent=11 // pred_check_branch
          %105 = sbr.rel (%p103) target = $region16
        $region15: #{tpu_custom_call.1} parent=11 // pred_region
          %s107 = ssub.s32 128, 128
          %108 = vsyncadd [#allocation6], %s107
          %s110 = sshll.u32 [#allocation5], 4
          %s111 = int_to_ptr.vmem [resolvable:$true] %s110
          %113 = dma.hbm_to_vmem [thread:$0]  %s1, 128, %s111, [#allocation6]
        $region16: #{tpu_custom_call.1} parent=11 // pred_fallthru
          _
      $region12: #{tpu_custom_call.1} parent=5 // pred_fallthru
        _
      %p114 = scmp.lt.s32.totalorder %s15, 4
      // Predicated region
      $region17: #{tpu_custom_call.1} parent=5 // pred_check
        %p115 = pneg %p114
      $region18: #{tpu_custom_call.1} parent=5 // pred_check_branch
        %117 = sbr.rel (%p115) target = $region20
      $region19: #{tpu_custom_call.1} parent=5 // pred_region
        // Predicated region
        $region21: #{tpu_custom_call.1} parent=19 // pred_check
          %p118 = pneg %p35
        $region22: #{tpu_custom_call.1} parent=19 // pred_check_branch
          %120 = sbr.rel (%p118) target = $region24
        $region23: #{tpu_custom_call.1} parent=19 // pred_region
          %s121 = sand.u32 %s25, 1
          %s122 = scalar_lea.sflag [#allocation3], %s121
          %s123 = sand.u32 %s25, 1
          %s124 = smul.addr %s123, 8
          %s125 = scalar_lea.vmem [#allocation2], %s124
          %s127 = ssub.s32 128, 128
          %128 = vsyncadd %s122, %s127
          %s129 = smul.addr %s15, 128
          %s130 = scalar_lea.hbm %s0, %s129
          %s132 = sshll.u32 %s125, 4
          %s133 = int_to_ptr.vmem [resolvable:$true] %s132
          %135 = dma.hbm_to_vmem [thread:$0]  %s130, 128, %s133, %s122
        $region24: #{tpu_custom_call.1} parent=19 // pred_fallthru
          _
      $region20: #{tpu_custom_call.1} parent=5 // pred_fallthru
        _
      %p136 = scmp.le.s32.totalorder 1, %s15
      %p137 = scmp.lt.s32.totalorder %s15, 5
      %p138 = pnand %p136, %p137
      %p139 = pneg %p138
      // Predicated region
      $region25: #{tpu_custom_call.1} parent=5 // pred_check
        _
      $region26: #{tpu_custom_call.1} parent=5 // pred_check_branch
        %141 = sbr.rel (%p138) target = $region28
      $region27: #{tpu_custom_call.1} parent=5 // pred_region
        %s142 = ssub.s32 %s15, 1
        %s143 = sand.u32 %s28, 1
        %s144 = scalar_lea.sflag [#allocation3], %s143
        %s145 = sand.u32 %s28, 1
        %s146 = smul.addr %s145, 8
        %s147 = scalar_lea.vmem [#allocation2], %s146
        // Predicated region
        $region29: #{tpu_custom_call.1} parent=27 // pred_check
          %p148 = pneg %p41
        $region30: #{tpu_custom_call.1} parent=27 // pred_check_branch
          %150 = sbr.rel (%p148) target = $region32
        $region31: #{tpu_custom_call.1} parent=27 // pred_region
          %151 = dma.done %s144, 128
        $region32: #{tpu_custom_call.1} parent=27 // pred_fallthru
          _
        // Predicated region
        $region33: #{tpu_custom_call.1} parent=27 // pred_check
          %p152 = pneg %p62
        $region34: #{tpu_custom_call.1} parent=27 // pred_check_branch
          %154 = sbr.rel (%p152) target = $region36
        $region35: #{tpu_custom_call.1} parent=27 // pred_region
          %155 = dma.done [#allocation6], 128
        $region36: #{tpu_custom_call.1} parent=27 // pred_fallthru
          _
        %s156 = sand.u32 %s28, 1
        %s157 = scalar_lea.sflag [#allocation3], %s156
        %s158 = sand.u32 %s28, 1
        %s159 = smul.addr %s158, 8
        %s160 = scalar_lea.vmem [#allocation2], %s159
        %p161 = pneg %p41
        %p162 = pneg %p38
        %p163 = pneg %p62
        %p164 = pneg %p59
        %p165 = pneg %p88
        %p166 = pneg %p85
        %s167 = sand.u32 %s75, 1
        %s168 = scalar_lea.sflag [#allocation4], %s167
        %s169 = sand.u32 %s75, 1
        %s170 = smul.addr %s169, 8
        %s171 = scalar_lea.vmem [#allocation7], %s170
        %v172 = vld [vmem:[%s147] sm:$0xff]
        %v173 = vld [vmem:[#allocation5] sm:$0xff]
        %v174 = vadd.f32 %v172, %v173
        %175 = vst [vmem:[%s171] sm:$0xff] %v174
        %s176 = sand.u32 %s75, 1
        %s177 = scalar_lea.sflag [#allocation4], %s176
        %s178 = sand.u32 %s75, 1
        %s179 = smul.addr %s178, 8
        %s180 = scalar_lea.vmem [#allocation7], %s179
        // Predicated region
        $region37: #{tpu_custom_call.1} parent=27 // pred_check
          %p181 = pneg %p85
        $region38: #{tpu_custom_call.1} parent=27 // pred_check_branch
          %183 = sbr.rel (%p181) target = $region40
        $region39: #{tpu_custom_call.1} parent=27 // pred_region
          %s185 = ssub.s32 128, 128
          %186 = vsyncadd %s177, %s185
          %s187 = smul.addr %s20, 128
          %s188 = scalar_lea.hbm %s2, %s187
          %s190 = sshll.u32 %s180, 4
          %s191 = int_to_ptr.vmem [resolvable:$true] %s190
          %193 = dma.vmem_to_hbm [thread:$0]  %s191, 128, %s188, %s177
        $region40: #{tpu_custom_call.1} parent=27 // pred_fallthru
          _
      $region28: #{tpu_custom_call.1} parent=5 // pred_fallthru
        _
      %p194 = scmp.le.s32.totalorder 2, %s15
      // Predicated region
      $region41: #{tpu_custom_call.1} parent=5 // pred_check
        %p195 = pneg %p194
      $region42: #{tpu_custom_call.1} parent=5 // pred_check_branch
        %197 = sbr.rel (%p195) target = $region44
      $region43: #{tpu_custom_call.1} parent=5 // pred_region
        %s198 = ssub.s32 %s15, 2
        // Predicated region
        $region45: #{tpu_custom_call.1} parent=43 // pred_check
          %p199 = pneg %p91
        $region46: #{tpu_custom_call.1} parent=43 // pred_check_branch
          %201 = sbr.rel (%p199) target = $region48
        $region47: #{tpu_custom_call.1} parent=43 // pred_region
          %s202 = sand.u32 %s76, 1
          %s203 = scalar_lea.sflag [#allocation4], %s202
          %s204 = sand.u32 %s76, 1
          %s205 = smul.addr %s204, 8
          %s206 = scalar_lea.vmem [#allocation7], %s205
          %207 = dma.done %s203, 128
        $region48: #{tpu_custom_call.1} parent=43 // pred_fallthru
          _
      $region44: #{tpu_custom_call.1} parent=5 // pred_fallthru
        _
    $region6: #{tpu_custom_call.1} parent=1 // loop_footer
      %s19 = sadd.s32 1, %s15
    $region7: #{tpu_custom_call.1} parent=1 // loop_footer_branch
      %14 = sbr.rel target = $region3
    $region8: #{tpu_custom_call.1} parent=1 // loop_exit
      _
    %208 = vsyncpa [#allocation3], 1
    %s209 = scalar_lea.sflag [#allocation3], 1
    %210 = vsyncpa %s209, 1
    %211 = vsyncpa [#allocation6], 1
    %212 = vsyncpa [#allocation4], 1
    %s213 = scalar_lea.sflag [#allocation4], 1
    %214 = vsyncpa %s213, 1

// kernel: custom-call.20
$region0: #{custom-call.20}
  %s0 = inlined_call_operand.vmem [shape: f32[2,32], index: 0, kind: output, shape index: {}]

// kernel: neg.2
$region0: #{neg.2}
  #allocation0 [shape = 's32[1]{0}', space=sflag, size = 0x4, scoped, tag = 'scoped memory for neg.2']
  %s0 = inlined_call_operand.vmem [shape: f32[2,16,32], index: 0, kind: input, shape index: {}]
  %s1 = inlined_call_operand.vmem [shape: f32[2,16,32], index: 1, kind: output, shape index: {}]
  %v2 = vld [vmem:[%s0] sm:$0xff]
  %3 = xla_tuple %v2
  %4 = xla_tuple %3
  %v5 = vxor.u32 %v2, 2147483648
  %6 = xla_tuple %v5
  %7 = vst [vmem:[%s1] sm:$0xff] %v5
  %s8 = scalar_lea.vmem %s0, 16
  %v9 = vld [vmem:[%s8] sm:$0xff]
  %10 = xla_tuple %v9
  %11 = xla_tuple %10
  %v12 = vxor.u32 %v9, 2147483648
  %13 = xla_tuple %v12
  %s14 = scalar_lea.vmem %s1, 16
  %15 = vst [vmem:[%s14] sm:$0xff] %v12
  %s16 = scalar_lea.vmem %s0, 8
  %v17 = vld [vmem:[%s16] sm:$0xff]
  %18 = xla_tuple %v17
  %19 = xla_tuple %18
  %v20 = vxor.u32 %v17, 2147483648
  %21 = xla_tuple %v20
  %s22 = scalar_lea.vmem %s1, 8
  %23 = vst [vmem:[%s22] sm:$0xff] %v20
  %s24 = scalar_lea.vmem %s0, 24
  %v25 = vld [vmem:[%s24] sm:$0xff]
  %26 = xla_tuple %v25
  %27 = xla_tuple %26
  %v28 = vxor.u32 %v25, 2147483648
  %29 = xla_tuple %v28
  %s30 = scalar_lea.vmem %s1, 24
  %31 = vst [vmem:[%s30] sm:$0xff] %v28

// kernel: custom-call.21
$region0: #{custom-call.21}
  %s0 = inlined_call_operand.vmem [shape: f32[2,16], index: 0, kind: output, shape index: {}]

// kernel: neg.3
$region0: #{neg.3}
  #allocation0 [shape = 's32[1]{0}', space=sflag, size = 0x4, scoped, tag = 'scoped memory for neg.3']
  %s0 = inlined_call_operand.vmem [shape: f32[2,8,16], index: 0, kind: input, shape index: {}]
  %s1 = inlined_call_operand.vmem [shape: f32[2,8,16], index: 1, kind: output, shape index: {}]
  %v2 = vld [vmem:[%s0] sm:$0xff]
  %3 = xla_tuple %v2
  %4 = xla_tuple %3
  %v5 = vxor.u32 %v2, 2147483648
  %6 = xla_tuple %v5
  %7 = vst [vmem:[%s1] sm:$0xff] %v5
  %s8 = scalar_lea.vmem %s0, 8
  %v9 = vld [vmem:[%s8] sm:$0xff]
  %10 = xla_tuple %v9
  %11 = xla_tuple %10
  %v12 = vxor.u32 %v9, 2147483648
  %13 = xla_tuple %v12
  %s14 = scalar_lea.vmem %s1, 8
  %15 = vst [vmem:[%s14] sm:$0xff] %v12

// kernel: forward.2
$region0: #{forward.2}
  #allocation0 [shape = 'u32[]', space=smem, size = 0x4, offset = 0x4, fixed_abs, tag = 'smem constant byte address 0x4 - core index']
  #allocation1 [shape = 'u32[144,128]{1,0:T(1,128)}', space=vmem, size = 0x12000, scoped, tag = 'internal scratch']
  #allocation2 [shape = 'f32[32,128]{1,0:T(8,128)}', space=vmem, size = 0x4000, scoped, tag = 'scratch operand']
  %s0 = inlined_call_operand.vmem [shape: bf16[4,32,256], index: 0, kind: input, shape index: {}]
  %s1 = inlined_call_operand.vmem [shape: bf16[256,128], index: 1, kind: input, shape index: {}]
  %s2 = inlined_call_operand.vmem [shape: bf16[8,128,128], index: 2, kind: input, shape index: {}]
  %s3 = inlined_call_operand.vmem [shape: f32[9,128], index: 3, kind: input, shape index: {}]
  %s4 = inlined_call_operand.vmem [shape: bf16[32,128], index: 4, kind: output, shape index: {}]
  %s5 = sld [smem:[#allocation0]]
  $region61: #{forward.2} parent=0
    _
  %s7 = ssub.s32 1, %s5
  %s8 = scalar_select 0, %s7, %s5
  loop: start=0, step=1, limit=6
  $region2: #{forward.2} parent=0 // loop_pre_header
    _
  $region3: #{forward.2} parent=0 // loop_header
    %s10 = sphi 0, %s14
    %p11 = scmp.ge.s32.totalorder %s10, 6
    %s17 = sphi 0, %s29
    %s18 = sphi 0, %s25
    %s19 = sphi 0, %s17
    %s20 = sphi 0, %s18
    %s21 = sphi 0, %s19
    %s22 = sphi 0, %s20
    %s34 = sphi 0, %s36
    %s37 = sphi 0, %s34
    %s38 = sphi 0, %s37
    %s54 = sphi 0, %s38
    %s58 = sphi 0, %s58
    %s60 = sphi 0, %s58
    %s61 = sphi 0, %s60
    %s75 = sphi 0, %s61
    %s79 = sphi 0, %s79
    %s81 = sphi 0, %s79
    %s82 = sphi 0, %s81
    %s96 = sphi 0, %s82
    %s100 = sphi 0, %s100
    %s102 = sphi 0, %s100
    %s103 = sphi 0, %s102
    %s117 = sphi 0, %s103
    %s123 = sphi 0, %s125
    %s126 = sphi 0, %s123
    %s127 = sphi 0, %s126
    %s143 = sphi 0, %s127
  $region4: #{forward.2} parent=0 // loop_header_branch
    %13 = sbr.rel (%p11) target = $region8
  $region5: #{forward.2} parent=0 // loop_body
    %s15 = ssub.s32 %s10, 1
    %s16 = ssub.s32 %s10, 2
    %s23 = sadd.s32 1, %s18
    %p24 = scmp.ge.s32.totalorder %s23, 4
    %s25 = scalar_select %p24, 0, %s23
    %s26 = sadd.s32 1, %s17
    %s27 = scalar_select %p24, %s26, %s17
    %p28 = scmp.ge.s32.totalorder %s27, 1
    %s29 = scalar_select %p28, 0, %s27
    %s30 = ssub.s32 %s18, %s25
    %s31 = ssub.s32 %s17, %s29
    %s32 = sor.u32 %s30, %s31
    %p33 = scmp.eq.s32.totalorder %s32, 0
    %s35 = sadd.s32 %s34, 1
    %s36 = scalar_select %p33, %s34, %s35
    %p39 = pneg %p33
    %p40 = scmp.eq.s32.totalorder %s10, 3
    %p41 = por %p39, %p40
    %p42 = scmp.ne.s32.totalorder %s34, %s37
    %p43 = scmp.eq.s32.totalorder %s10, 0
    %p44 = por %p42, %p43
    %p45 = scmp.ne.s32.totalorder %s34, %s37
    %p46 = scmp.eq.s32.totalorder %s15, 3
    %p47 = por %p45, %p46
    %p48 = scmp.ne.s32.totalorder %s37, %s38
    %p49 = scmp.eq.s32.totalorder %s15, 0
    %p50 = por %p48, %p49
    %p51 = scmp.ne.s32.totalorder %s37, %s38
    %p52 = scmp.eq.s32.totalorder %s16, 3
    %p53 = por %p51, %p52
    %p55 = scmp.ne.s32.totalorder %s38, %s54
    %p56 = scmp.eq.s32.totalorder %s16, 0
    %p57 = por %p55, %p56
    %s59 = sadd.s32 %s58, 1
    %p62 = scmp.eq.s32.totalorder %s10, 3
    %p63 = scmp.ne.s32.totalorder %s58, %s60
    %p64 = scmp.eq.s32.totalorder %s10, 0
    %p65 = por %p63, %p64
    %p66 = scmp.ne.s32.totalorder %s58, %s60
    %p67 = scmp.eq.s32.totalorder %s15, 3
    %p68 = por %p66, %p67
    %p69 = scmp.ne.s32.totalorder %s60, %s61
    %p70 = scmp.eq.s32.totalorder %s15, 0
    %p71 = por %p69, %p70
    %p72 = scmp.ne.s32.totalorder %s60, %s61
    %p73 = scmp.eq.s32.totalorder %s16, 3
    %p74 = por %p72, %p73
    %p76 = scmp.ne.s32.totalorder %s61, %s75
    %p77 = scmp.eq.s32.totalorder %s16, 0
    %p78 = por %p76, %p77
    %s80 = sadd.s32 %s79, 1
    %p83 = scmp.eq.s32.totalorder %s10, 3
    %p84 = scmp.ne.s32.totalorder %s79, %s81
    %p85 = scmp.eq.s32.totalorder %s10, 0
    %p86 = por %p84, %p85
    %p87 = scmp.ne.s32.totalorder %s79, %s81
    %p88 = scmp.eq.s32.totalorder %s15, 3
    %p89 = por %p87, %p88
    %p90 = scmp.ne.s32.totalorder %s81, %s82
    %p91 = scmp.eq.s32.totalorder %s15, 0
    %p92 = por %p90, %p91
    %p93 = scmp.ne.s32.totalorder %s81, %s82
    %p94 = scmp.eq.s32.totalorder %s16, 3
    %p95 = por %p93, %p94
    %p97 = scmp.ne.s32.totalorder %s82, %s96
    %p98 = scmp.eq.s32.totalorder %s16, 0
    %p99 = por %p97, %p98
    %s101 = sadd.s32 %s100, 1
    %p104 = scmp.eq.s32.totalorder %s10, 3
    %p105 = scmp.ne.s32.totalorder %s100, %s102
    %p106 = scmp.eq.s32.totalorder %s10, 0
    %p107 = por %p105, %p106
    %p108 = scmp.ne.s32.totalorder %s100, %s102
    %p109 = scmp.eq.s32.totalorder %s15, 3
    %p110 = por %p108, %p109
    %p111 = scmp.ne.s32.totalorder %s102, %s103
    %p112 = scmp.eq.s32.totalorder %s15, 0
    %p113 = por %p111, %p112
    %p114 = scmp.ne.s32.totalorder %s102, %s103
    %p115 = scmp.eq.s32.totalorder %s16, 3
    %p116 = por %p114, %p115
    %p118 = scmp.ne.s32.totalorder %s103, %s117
    %p119 = scmp.eq.s32.totalorder %s16, 0
    %p120 = por %p118, %p119
    %s121 = ssub.s32 %s17, %s29
    %p122 = scmp.eq.s32.totalorder %s121, 0
    %s124 = sadd.s32 %s123, 1
    %s125 = scalar_select %p122, %s123, %s124
    %p128 = pneg %p122
    %p129 = scmp.eq.s32.totalorder %s10, 3
    %p130 = por %p128, %p129
    %p131 = scmp.ne.s32.totalorder %s123, %s126
    %p132 = scmp.eq.s32.totalorder %s10, 0
    %p133 = por %p131, %p132
    %p134 = scmp.ne.s32.totalorder %s123, %s126
    %p135 = scmp.eq.s32.totalorder %s15, 3
    %p136 = por %p134, %p135
    %p137 = scmp.ne.s32.totalorder %s126, %s127
    %p138 = scmp.eq.s32.totalorder %s15, 0
    %p139 = por %p137, %p138
    %p140 = scmp.ne.s32.totalorder %s126, %s127
    %p141 = scmp.eq.s32.totalorder %s16, 3
    %p142 = por %p140, %p141
    %p144 = scmp.ne.s32.totalorder %s127, %s143
    %p145 = scmp.eq.s32.totalorder %s16, 0
    %p146 = por %p144, %p145
    %p147 = scmp.le.s32.totalorder 1, %s10
    %p148 = scmp.lt.s32.totalorder %s10, 5
    %p149 = pnand %p147, %p148
    %p150 = pneg %p149
    // Predicated region
    $region9: #{forward.2} parent=5 // pred_check
      _
    $region10: #{forward.2} parent=5 // pred_check_branch
      %152 = sbr.rel (%p149) target = $region12
    $region11: #{forward.2} parent=5 // pred_region
      %s153 = ssub.s32 %s10, 1
      // Predicated region
      $region13: #{forward.2} parent=11 // pred_check
        %p154 = pneg %p71
      $region14: #{forward.2} parent=11 // pred_check_branch
        %156 = sbr.rel (%p154) target = $region16
      $region15: #{forward.2} parent=11 // pred_region
        _
      $region16: #{forward.2} parent=11 // pred_fallthru
        _
      // Predicated region
      $region17: #{forward.2} parent=11 // pred_check
        %p157 = pneg %p92
      $region18: #{forward.2} parent=11 // pred_check_branch
        %159 = sbr.rel (%p157) target = $region20
      $region19: #{forward.2} parent=11 // pred_region
        _
      $region20: #{forward.2} parent=11 // pred_fallthru
        _
      // Predicated region
      $region21: #{forward.2} parent=11 // pred_check
        %p160 = pneg %p113
      $region22: #{forward.2} parent=11 // pred_check_branch
        %162 = sbr.rel (%p160) target = $region24
      $region23: #{forward.2} parent=11 // pred_region
        _
      $region24: #{forward.2} parent=11 // pred_fallthru
        _
    $region12: #{forward.2} parent=5 // pred_fallthru
      _
    %p163 = scmp.lt.s32.totalorder %s10, 4
    // Predicated region
    $region25: #{forward.2} parent=5 // pred_check
      %p164 = pneg %p163
    $region26: #{forward.2} parent=5 // pred_check_branch
      %166 = sbr.rel (%p164) target = $region28
    $region27: #{forward.2} parent=5 // pred_region
      // Predicated region
      $region29: #{forward.2} parent=27 // pred_check
        %p167 = pneg %p44
      $region30: #{forward.2} parent=27 // pred_check_branch
        %169 = sbr.rel (%p167) target = $region32
      $region31: #{forward.2} parent=27 // pred_region
        %s170 = smul.u32 4, %s17
        %p171 = scmp.lt.s32.totalorder %s18, 3
        %s172 = scalar_select %p171, %s18, 3
        %p173 = scmp.lt.s32.totalorder %s170, 3
        %s174 = scalar_select %p173, %s170, 3
        %s175 = smul.addr %s174, 2
        %s176 = smul.addr %s172, 8
        %s177 = sadd.s32 %s175, %s176
        %s178 = smul.addr %s177, 4
        %s179 = scalar_lea.vmem %s0, %s178
        %s180 = smul.u32 4, %s17
      $region32: #{forward.2} parent=27 // pred_fallthru
        _
    $region28: #{forward.2} parent=5 // pred_fallthru
      _
    %p181 = scmp.le.s32.totalorder 1, %s10
    %p182 = scmp.lt.s32.totalorder %s10, 5
    %p183 = pnand %p181, %p182
    %p184 = pneg %p183
    // Predicated region
    $region33: #{forward.2} parent=5 // pred_check
      _
    $region34: #{forward.2} parent=5 // pred_check_branch
      %186 = sbr.rel (%p183) target = $region36
    $region35: #{forward.2} parent=5 // pred_region
      %s187 = ssub.s32 %s10, 1
      %s188 = smul.u32 4, %s19
      %p189 = scmp.lt.s32.totalorder %s20, 3
      %s190 = scalar_select %p189, %s20, 3
      %p191 = scmp.lt.s32.totalorder %s188, 3
      %s192 = scalar_select %p191, %s188, 3
      %s193 = smul.addr %s192, 2
      %s194 = smul.addr %s190, 8
      %s195 = sadd.s32 %s193, %s194
      %s196 = smul.addr %s195, 4
      %s197 = scalar_lea.vmem %s0, %s196
      %p198 = pneg %p50
      %p199 = pneg %p47
      %p200 = pneg %p71
      %p201 = pneg %p68
      %p202 = pneg %p92
      %p203 = pneg %p89
      %p204 = pneg %p113
      %p205 = pneg %p110
      %p206 = pneg %p139
      %p207 = pneg %p136
      %s208 = smul.u32 4, %s19
      %p209 = scmp.lt.s32.totalorder %s208, 3
      %s210 = scalar_select %p209, %s208, 3
      %s211 = smul.addr %s210, 4
      %s212 = scalar_lea.vmem %s4, %s211
      %s213 = smul.u32 4, %s19
      %p214 = scmp.lt.s32.totalorder %s20, 3
      %s215 = scalar_select %p214, %s20, 3
      %p216 = scmp.lt.s32.totalorder %s213, 3
      %s217 = scalar_select %p216, %s213, 3
      %s218 = smul.addr %s217, 2
      %s219 = smul.addr %s215, 8
      %s220 = sadd.s32 %s218, %s219
      %s221 = smul.addr %s220, 4
      %s222 = scalar_lea.vmem %s0, %s221
      %s223 = smul.u32 4, %s19
      %s224 = smul.u32 4, %s19
      %p225 = scmp.lt.s32.totalorder %s224, 3
      %s226 = scalar_select %p225, %s224, 3
      %s227 = smul.addr %s226, 4
      %s228 = scalar_lea.vmem %s4, %s227
      %s229 = smul.u32 4, %s19
      %v231 = vld [vmem:[%s222] sm:$0xff]
      %v232 = vld [vmem:[%s222 + $0x8] sm:$0xff]
      %v233 = vld [vmem:[%s222 + $0x10] sm:$0xff]
      %v234 = vld [vmem:[%s222 + $0x18] sm:$0xff]
      %v235 = vld [vmem:[%s1] sm:$0xf]
      %v236 = vld [vmem:[%s1 + $0x4] sm:$0xf]
      %v237 = vld [vmem:[%s1 + $0x8] sm:$0xf]
      %v238 = vld [vmem:[%s1 + $0xc] sm:$0xf]
      %v239 = vld [vmem:[%s1 + $0x10] sm:$0xf]
      %v240 = vld [vmem:[%s1 + $0x14] sm:$0xf]
      %v241 = vld [vmem:[%s1 + $0x18] sm:$0xf]
      %v242 = vld [vmem:[%s1 + $0x1c] sm:$0xf]
      %v243 = vld [vmem:[%s1 + $0x20] sm:$0xf]
      %v244 = vld [vmem:[%s1 + $0x24] sm:$0xf]
      %v245 = vld [vmem:[%s1 + $0x28] sm:$0xf]
      %v246 = vld [vmem:[%s1 + $0x2c] sm:$0xf]
      %v247 = vld [vmem:[%s1 + $0x30] sm:$0xf]
      %v248 = vld [vmem:[%s1 + $0x34] sm:$0xf]
      %v249 = vld [vmem:[%s1 + $0x38] sm:$0xf]
      %v250 = vld [vmem:[%s1 + $0x3c] sm:$0xf]
      %v251 = vld [vmem:[%s1 + $0x40] sm:$0xf]
      %v252 = vld [vmem:[%s1 + $0x44] sm:$0xf]
      %v253 = vld [vmem:[%s1 + $0x48] sm:$0xf]
      %v254 = vld [vmem:[%s1 + $0x4c] sm:$0xf]
      %v255 = vld [vmem:[%s1 + $0x50] sm:$0xf]
      %v256 = vld [vmem:[%s1 + $0x54] sm:$0xf]
      %v257 = vld [vmem:[%s1 + $0x58] sm:$0xf]
      %v258 = vld [vmem:[%s1 + $0x5c] sm:$0xf]
      %v259 = vld [vmem:[%s1 + $0x60] sm:$0xf]
      %v260 = vld [vmem:[%s1 + $0x64] sm:$0xf]
      %v261 = vld [vmem:[%s1 + $0x68] sm:$0xf]
      %v262 = vld [vmem:[%s1 + $0x6c] sm:$0xf]
      %v263 = vld [vmem:[%s1 + $0x70] sm:$0xf]
      %v264 = vld [vmem:[%s1 + $0x74] sm:$0xf]
      %v265 = vld [vmem:[%s1 + $0x78] sm:$0xf]
      %v266 = vld [vmem:[%s1 + $0x7c] sm:$0xf]
      %v267 = vld [vmem:[%s3] sm:$0x1]
      %v268 = vlaneseq
      %v269 = vshrl.u32 %v268, 7
      %v270 = vsub.s32 0, %v269
      %v271 = vrot.slane %v267, %v270
      %v276 = vunpack.c.l.b16 %v231
      %v277 = vunpack.c.h.b16 %v231
      %v278 = vunpack.c.l.b16 %v232
      %v279 = vunpack.c.h.b16 %v232
      %v280 = vunpack.c.l.b16 %v233
      %v281 = vunpack.c.h.b16 %v233
      %v282 = vunpack.c.l.b16 %v234
      %v283 = vunpack.c.h.b16 %v234
      %v284 = vpack.c.b16 %v278, %v276
      %v285 = vpack.c.b16 %v279, %v277
      %v286 = vpack.c.b16 %v282, %v280
      %v287 = vpack.c.b16 %v283, %v281
      %v324 = vunpack.c.l.b16 %v235
      %v325 = vunpack.c.l.b16 %v236
      %v326 = vunpack.c.l.b16 %v237
      %v327 = vunpack.c.l.b16 %v238
      %v328 = vunpack.c.l.b16 %v239
      %v329 = vunpack.c.l.b16 %v240
      %v330 = vunpack.c.l.b16 %v241
      %v331 = vunpack.c.l.b16 %v242
      %v332 = vunpack.c.l.b16 %v243
      %v333 = vunpack.c.l.b16 %v244
      %v334 = vunpack.c.l.b16 %v245
      %v335 = vunpack.c.l.b16 %v246
      %v336 = vunpack.c.l.b16 %v247
      %v337 = vunpack.c.l.b16 %v248
      %v338 = vunpack.c.l.b16 %v249
      %v339 = vunpack.c.l.b16 %v250
      %v340 = vunpack.c.l.b16 %v251
      %v341 = vunpack.c.l.b16 %v252
      %v342 = vunpack.c.l.b16 %v253
      %v343 = vunpack.c.l.b16 %v254
      %v344 = vunpack.c.l.b16 %v255
      %v345 = vunpack.c.l.b16 %v256
      %v346 = vunpack.c.l.b16 %v257
      %v347 = vunpack.c.l.b16 %v258
      %v348 = vunpack.c.l.b16 %v259
      %v349 = vunpack.c.l.b16 %v260
      %v350 = vunpack.c.l.b16 %v261
      %v351 = vunpack.c.l.b16 %v262
      %v352 = vunpack.c.l.b16 %v263
      %v353 = vunpack.c.l.b16 %v264
      %v354 = vunpack.c.l.b16 %v265
      %v355 = vunpack.c.l.b16 %v266
      %v356 = vpack.c.b16 %v325, %v324
      %v357 = vpack.c.b16 %v327, %v326
      %v358 = vpack.c.b16 %v329, %v328
      %v359 = vpack.c.b16 %v331, %v330
      %v360 = vpack.c.b16 %v333, %v332
      %v361 = vpack.c.b16 %v335, %v334
      %v362 = vpack.c.b16 %v337, %v336
      %v363 = vpack.c.b16 %v339, %v338
      %v364 = vpack.c.b16 %v341, %v340
      %v365 = vpack.c.b16 %v343, %v342
      %v366 = vpack.c.b16 %v345, %v344
      %v367 = vpack.c.b16 %v347, %v346
      %v368 = vpack.c.b16 %v349, %v348
      %v369 = vpack.c.b16 %v351, %v350
      %v370 = vpack.c.b16 %v353, %v352
      %v371 = vpack.c.b16 %v355, %v354
      %388 = vmatprep.subr.bf16.mxu0 0
      %389 = vmatpush1.bf16.msra.mxu0 %v356
      %390 = vmatprep.subr.bf16.mxu0 0
      %391 = vmatpush1.bf16.msra.mxu0 %v357
      %392 = vmatprep.subr.bf16.mxu0 0
      %393 = vmatpush1.bf16.msra.mxu0 %v358
      %394 = vmatprep.subr.bf16.mxu0 0
      %395 = vmatpush1.bf16.msra.mxu0 %v359
      %396 = vmatprep.subr.bf16.mxu0 0
      %397 = vmatpush1.bf16.msra.mxu0 %v360
      %398 = vmatprep.subr.bf16.mxu0 0
      %399 = vmatpush1.bf16.msra.mxu0 %v361
      %400 = vmatprep.subr.bf16.mxu0 0
      %401 = vmatpush1.bf16.msra.mxu0 %v362
      %402 = vmatprep.subr.bf16.mxu0 0
      %403 = vmatpush1.bf16.msra.mxu0 %v363
      %404 = vmatprep.subr.bf16.mxu0 0
      %405 = vmatpush1.bf16.msra.mxu0 %v364
      %406 = vmatprep.subr.bf16.mxu0 0
      %407 = vmatpush1.bf16.msra.mxu0 %v365
      %408 = vmatprep.subr.bf16.mxu0 0
      %409 = vmatpush1.bf16.msra.mxu0 %v366
      %410 = vmatprep.subr.bf16.mxu0 0
      %411 = vmatpush1.bf16.msra.mxu0 %v367
      %412 = vmatprep.subr.bf16.mxu0 0
      %413 = vmatpush1.bf16.msra.mxu0 %v368
      %414 = vmatprep.subr.bf16.mxu0 0
      %415 = vmatpush1.bf16.msra.mxu0 %v369
      %416 = vmatprep.subr.bf16.mxu0 0
      %417 = vmatpush1.bf16.msra.mxu0 %v370
      %418 = vmatprep.subr.bf16.mxu0 0
      %419 = vmatpush1.bf16.msra.mxu0 %v371
      %420 = vmatprep.mubr.bf16.mxu0 %v285
      %421 = vmatmul.mubr.bf16.gmra.mrb[0].mxu0 %v284
      %v422 = vpop.f32.mrb[0].mxu0
      %v423 = vadd.f32 %v271, %v422
      %v424 = vpop.f32.mrb[0].mxu0
      %v425 = vpop.f32.mrb[0].mxu0
      %v426 = vadd.f32 %v271, %v425
      %v427 = vpop.f32.mrb[0].mxu0
      %428 = vmatprep.mubr.bf16.mxu0 %v287
      %429 = vmatmul.mubr.bf16.gmra.mrb[0].mxu0 %v286
      %v430 = vpop.f32.mrb[0].mxu0
      %v431 = vadd.f32 %v271, %v430
      %v432 = vpop.f32.mrb[0].mxu0
      %v433 = vpop.f32.mrb[0].mxu0
      %v434 = vadd.f32 %v271, %v433
      %v435 = vpop.f32.mrb[0].mxu0
      %436 = vdwg.mxu0
      %v437 = vmax.f32 %v423, 0.0
      %v438 = vmax.f32 %v426, 0.0
      %v439 = vmax.f32 %v431, 0.0
      %v440 = vmax.f32 %v434, 0.0
      %v441 = vld [vmem:[%s2] sm:$0xf]
      %v442 = vld [vmem:[%s2 + $0x4] sm:$0xf]
      %v443 = vld [vmem:[%s2 + $0x8] sm:$0xf]
      %v444 = vld [vmem:[%s2 + $0xc] sm:$0xf]
      %v445 = vld [vmem:[%s2 + $0x10] sm:$0xf]
      %v446 = vld [vmem:[%s2 + $0x14] sm:$0xf]
      %v447 = vld [vmem:[%s2 + $0x18] sm:$0xf]
      %v448 = vld [vmem:[%s2 + $0x1c] sm:$0xf]
      %v449 = vld [vmem:[%s2 + $0x20] sm:$0xf]
      %v450 = vld [vmem:[%s2 + $0x24] sm:$0xf]
      %v451 = vld [vmem:[%s2 + $0x28] sm:$0xf]
      %v452 = vld [vmem:[%s2 + $0x2c] sm:$0xf]
      %v453 = vld [vmem:[%s2 + $0x30] sm:$0xf]
      %v454 = vld [vmem:[%s2 + $0x34] sm:$0xf]
      %v455 = vld [vmem:[%s2 + $0x38] sm:$0xf]
      %v456 = vld [vmem:[%s2 + $0x3c] sm:$0xf]
      %s457 = scalar_lea.vmem %s2, 64
      %v458 = vld [vmem:[%s457] sm:$0xf]
      %v459 = vld [vmem:[%s457 + $0x4] sm:$0xf]
      %v460 = vld [vmem:[%s457 + $0x8] sm:$0xf]
      %v461 = vld [vmem:[%s457 + $0xc] sm:$0xf]
      %v462 = vld [vmem:[%s457 + $0x10] sm:$0xf]
      %v463 = vld [vmem:[%s457 + $0x14] sm:$0xf]
      %v464 = vld [vmem:[%s457 + $0x18] sm:$0xf]
      %v465 = vld [vmem:[%s457 + $0x1c] sm:$0xf]
      %v466 = vld [vmem:[%s457 + $0x20] sm:$0xf]
      %v467 = vld [vmem:[%s457 + $0x24] sm:$0xf]
      %v468 = vld [vmem:[%s457 + $0x28] sm:$0xf]
      %v469 = vld [vmem:[%s457 + $0x2c] sm:$0xf]
      %v470 = vld [vmem:[%s457 + $0x30] sm:$0xf]
      %v471 = vld [vmem:[%s457 + $0x34] sm:$0xf]
      %v472 = vld [vmem:[%s457 + $0x38] sm:$0xf]
      %v473 = vld [vmem:[%s457 + $0x3c] sm:$0xf]
      %v474 = vld [vmem:[%s3 + $0x1] sm:$0x1]
      %v475 = vld [vmem:[%s3 + $0x2] sm:$0x1]
      %v476 = vpack.c.bf16 %v438, %v437
      %v477 = vpack.c.bf16 %v440, %v439
      %v478 = vlaneseq
      %v479 = vshrl.u32 %v478, 7
      %v480 = vsub.s32 0, %v479
      %v481 = vrot.slane %v474, %v480
      %v498 = vunpack.c.l.b16 %v441
      %v499 = vunpack.c.l.b16 %v442
      %v500 = vunpack.c.l.b16 %v443
      %v501 = vunpack.c.l.b16 %v444
      %v502 = vunpack.c.l.b16 %v445
      %v503 = vunpack.c.l.b16 %v446
      %v504 = vunpack.c.l.b16 %v447
      %v505 = vunpack.c.l.b16 %v448
      %v506 = vunpack.c.l.b16 %v449
      %v507 = vunpack.c.l.b16 %v450
      %v508 = vunpack.c.l.b16 %v451
      %v509 = vunpack.c.l.b16 %v452
      %v510 = vunpack.c.l.b16 %v453
      %v511 = vunpack.c.l.b16 %v454
      %v512 = vunpack.c.l.b16 %v455
      %v513 = vunpack.c.l.b16 %v456
      %v514 = vpack.c.b16 %v499, %v498
      %v515 = vpack.c.b16 %v501, %v500
      %v516 = vpack.c.b16 %v503, %v502
      %v517 = vpack.c.b16 %v505, %v504
      %v518 = vpack.c.b16 %v507, %v506
      %v519 = vpack.c.b16 %v509, %v508
      %v520 = vpack.c.b16 %v511, %v510
      %v521 = vpack.c.b16 %v513, %v512
      %530 = vmatprep.subr.bf16.mxu0 0
      %531 = vmatpush1.bf16.msra.mxu0 %v514
      %532 = vmatprep.subr.bf16.mxu0 0
      %533 = vmatpush1.bf16.msra.mxu0 %v515
      %534 = vmatprep.subr.bf16.mxu0 0
      %535 = vmatpush1.bf16.msra.mxu0 %v516
      %536 = vmatprep.subr.bf16.mxu0 0
      %537 = vmatpush1.bf16.msra.mxu0 %v517
      %538 = vmatprep.subr.bf16.mxu0 0
      %539 = vmatpush1.bf16.msra.mxu0 %v518
      %540 = vmatprep.subr.bf16.mxu0 0
      %541 = vmatpush1.bf16.msra.mxu0 %v519
      %542 = vmatprep.subr.bf16.mxu0 0
      %543 = vmatpush1.bf16.msra.mxu0 %v520
      %544 = vmatprep.subr.bf16.mxu0 0
      %545 = vmatpush1.bf16.msra.mxu0 %v521
      %546 = vmatprep.subr.bf16.mxu0 0
      %547 = vmatpush1.bf16.msra.mxu0 0
      %548 = vmatprep.subr.bf16.mxu0 0
      %549 = vmatpush1.bf16.msra.mxu0 0
      %550 = vmatprep.subr.bf16.mxu0 0
      %551 = vmatpush1.bf16.msra.mxu0 0
      %552 = vmatprep.subr.bf16.mxu0 0
      %553 = vmatpush1.bf16.msra.mxu0 0
      %554 = vmatprep.subr.bf16.mxu0 0
      %555 = vmatpush1.bf16.msra.mxu0 0
      %556 = vmatprep.subr.bf16.mxu0 0
      %557 = vmatpush1.bf16.msra.mxu0 0
      %558 = vmatprep.subr.bf16.mxu0 0
      %559 = vmatpush1.bf16.msra.mxu0 0
      %560 = vmatprep.subr.bf16.mxu0 0
      %561 = vmatpush1.bf16.msra.mxu0 0
      %562 = vmatprep.mubr.bf16.mxu0 0
      %563 = vmatmul.mubr.bf16.gmra.mrb[0].mxu0 %v476
      %v564 = vpop.f32.mrb[0].mxu0
      %v565 = vadd.f32 %v481, %v564
      %v566 = vpop.f32.mrb[0].mxu0
      %v567 = vpop.f32.mrb[0].mxu0
      %v568 = vadd.f32 %v481, %v567
      %v569 = vpop.f32.mrb[0].mxu0
      %570 = vmatprep.mubr.bf16.mxu0 0
      %571 = vmatmul.mubr.bf16.gmra.mrb[0].mxu0 %v477
      %v572 = vpop.f32.mrb[0].mxu0
      %v573 = vadd.f32 %v481, %v572
      %v574 = vpop.f32.mrb[0].mxu0
      %v575 = vpop.f32.mrb[0].mxu0
      %v576 = vadd.f32 %v481, %v575
      %v577 = vpop.f32.mrb[0].mxu0
      %578 = vdwg.mxu0
      %v579 = vmax.f32 %v565, 0.0
      %v580 = vmax.f32 %v568, 0.0
      %v581 = vmax.f32 %v573, 0.0
      %v582 = vmax.f32 %v576, 0.0
      %v583 = vpack.c.bf16 %v580, %v579
      %v584 = vpack.c.bf16 %v582, %v581
      %v585 = vlaneseq
      %v586 = vshrl.u32 %v585, 7
      %v587 = vsub.s32 0, %v586
      %v588 = vrot.slane %v475, %v587
      %v605 = vunpack.c.l.b16 %v458
      %v606 = vunpack.c.l.b16 %v459
      %v607 = vunpack.c.l.b16 %v460
      %v608 = vunpack.c.l.b16 %v461
      %v609 = vunpack.c.l.b16 %v462
      %v610 = vunpack.c.l.b16 %v463
      %v611 = vunpack.c.l.b16 %v464
      %v612 = vunpack.c.l.b16 %v465
      %v613 = vunpack.c.l.b16 %v466
      %v614 = vunpack.c.l.b16 %v467
      %v615 = vunpack.c.l.b16 %v468
      %v616 = vunpack.c.l.b16 %v469
      %v617 = vunpack.c.l.b16 %v470
      %v618 = vunpack.c.l.b16 %v471
      %v619 = vunpack.c.l.b16 %v472
      %v620 = vunpack.c.l.b16 %v473
      %v621 = vpack.c.b16 %v606, %v605
      %v622 = vpack.c.b16 %v608, %v607
      %v623 = vpack.c.b16 %v610, %v609
      %v624 = vpack.c.b16 %v612, %v611
      %v625 = vpack.c.b16 %v614, %v613
      %v626 = vpack.c.b16 %v616, %v615
      %v627 = vpack.c.b16 %v618, %v617
      %v628 = vpack.c.b16 %v620, %v619
      %637 = vmatprep.subr.bf16.mxu0 0
      %638 = vmatpush1.bf16.msra.mxu0 %v621
      %639 = vmatprep.subr.bf16.mxu0 0
      %640 = vmatpush1.bf16.msra.mxu0 %v622
      %641 = vmatprep.subr.bf16.mxu0 0
      %642 = vmatpush1.bf16.msra.mxu0 %v623
      %643 = vmatprep.subr.bf16.mxu0 0
      %644 = vmatpush1.bf16.msra.mxu0 %v624
      %645 = vmatprep.subr.bf16.mxu0 0
      %646 = vmatpush1.bf16.msra.mxu0 %v625
      %647 = vmatprep.subr.bf16.mxu0 0
      %648 = vmatpush1.bf16.msra.mxu0 %v626
      %649 = vmatprep.subr.bf16.mxu0 0
      %650 = vmatpush1.bf16.msra.mxu0 %v627
      %651 = vmatprep.subr.bf16.mxu0 0
      %652 = vmatpush1.bf16.msra.mxu0 %v628
      %653 = vmatprep.subr.bf16.mxu0 0
      %654 = vmatpush1.bf16.msra.mxu0 0
      %655 = vmatprep.subr.bf16.mxu0 0
      %656 = vmatpush1.bf16.msra.mxu0 0
      %657 = vmatprep.subr.bf16.mxu0 0
      %658 = vmatpush1.bf16.msra.mxu0 0
      %659 = vmatprep.subr.bf16.mxu0 0
      %660 = vmatpush1.bf16.msra.mxu0 0
      %661 = vmatprep.subr.bf16.mxu0 0
      %662 = vmatpush1.bf16.msra.mxu0 0
      %663 = vmatprep.subr.bf16.mxu0 0
      %664 = vmatpush1.bf16.msra.mxu0 0
      %665 = vmatprep.subr.bf16.mxu0 0
      %666 = vmatpush1.bf16.msra.mxu0 0
      %667 = vmatprep.subr.bf16.mxu0 0
      %668 = vmatpush1.bf16.msra.mxu0 0
      %669 = vmatprep.mubr.bf16.mxu0 0
      %670 = vmatmul.mubr.bf16.gmra.mrb[0].mxu0 %v583
      %v671 = vpop.f32.mrb[0].mxu0
      %v672 = vadd.f32 %v588, %v671
      %v673 = vpop.f32.mrb[0].mxu0
      %v674 = vpop.f32.mrb[0].mxu0
      %v675 = vadd.f32 %v588, %v674
      %v676 = vpop.f32.mrb[0].mxu0
      %677 = vmatprep.mubr.bf16.mxu0 0
      %678 = vmatmul.mubr.bf16.gmra.mrb[0].mxu0 %v584
      %v679 = vpop.f32.mrb[0].mxu0
      %v680 = vadd.f32 %v588, %v679
      %v681 = vpop.f32.mrb[0].mxu0
      %v682 = vpop.f32.mrb[0].mxu0
      %v683 = vadd.f32 %v588, %v682
      %v684 = vpop.f32.mrb[0].mxu0
      %685 = vdwg.mxu0
      %v686 = vadd.f32 %v672, %v437
      %v687 = vadd.f32 %v675, %v438
      %v688 = vadd.f32 %v680, %v439
      %v689 = vadd.f32 %v683, %v440
      %v690 = vmax.f32 %v686, 0.0
      %v691 = vmax.f32 %v687, 0.0
      %v692 = vmax.f32 %v688, 0.0
      %v693 = vmax.f32 %v689, 0.0
      %s694 = scalar_lea.vmem %s2, 128
      %v695 = vld [vmem:[%s694] sm:$0xf]
      %v696 = vld [vmem:[%s694 + $0x4] sm:$0xf]
      %v697 = vld [vmem:[%s694 + $0x8] sm:$0xf]
      %v698 = vld [vmem:[%s694 + $0xc] sm:$0xf]
      %v699 = vld [vmem:[%s694 + $0x10] sm:$0xf]
      %v700 = vld [vmem:[%s694 + $0x14] sm:$0xf]
      %v701 = vld [vmem:[%s694 + $0x18] sm:$0xf]
      %v702 = vld [vmem:[%s694 + $0x1c] sm:$0xf]
      %v703 = vld [vmem:[%s694 + $0x20] sm:$0xf]
      %v704 = vld [vmem:[%s694 + $0x24] sm:$0xf]
      %v705 = vld [vmem:[%s694 + $0x28] sm:$0xf]
      %v706 = vld [vmem:[%s694 + $0x2c] sm:$0xf]
      %v707 = vld [vmem:[%s694 + $0x30] sm:$0xf]
      %v708 = vld [vmem:[%s694 + $0x34] sm:$0xf]
      %v709 = vld [vmem:[%s694 + $0x38] sm:$0xf]
      %v710 = vld [vmem:[%s694 + $0x3c] sm:$0xf]
      %s711 = scalar_lea.vmem %s2, 192
      %v712 = vld [vmem:[%s711] sm:$0xf]
      %v713 = vld [vmem:[%s711 + $0x4] sm:$0xf]
      %v714 = vld [vmem:[%s711 + $0x8] sm:$0xf]
      %v715 = vld [vmem:[%s711 + $0xc] sm:$0xf]
      %v716 = vld [vmem:[%s711 + $0x10] sm:$0xf]
      %v717 = vld [vmem:[%s711 + $0x14] sm:$0xf]
      %v718 = vld [vmem:[%s711 + $0x18] sm:$0xf]
      %v719 = vld [vmem:[%s711 + $0x1c] sm:$0xf]
      %v720 = vld [vmem:[%s711 + $0x20] sm:$0xf]
      %v721 = vld [vmem:[%s711 + $0x24] sm:$0xf]
      %v722 = vld [vmem:[%s711 + $0x28] sm:$0xf]
      %v723 = vld [vmem:[%s711 + $0x2c] sm:$0xf]
      %v724 = vld [vmem:[%s711 + $0x30] sm:$0xf]
      %v725 = vld [vmem:[%s711 + $0x34] sm:$0xf]
      %v726 = vld [vmem:[%s711 + $0x38] sm:$0xf]
      %v727 = vld [vmem:[%s711 + $0x3c] sm:$0xf]
      %v728 = vld [vmem:[%s3 + $0x3] sm:$0x1]
      %v729 = vld [vmem:[%s3 + $0x4] sm:$0x1]
      %v730 = vpack.c.bf16 %v691, %v690
      %v731 = vpack.c.bf16 %v693, %v692
      %v732 = vlaneseq
      %v733 = vshrl.u32 %v732, 7
      %v734 = vsub.s32 0, %v733
      %v735 = vrot.slane %v728, %v734
      %v752 = vunpack.c.l.b16 %v695
      %v753 = vunpack.c.l.b16 %v696
      %v754 = vunpack.c.l.b16 %v697
      %v755 = vunpack.c.l.b16 %v698
      %v756 = vunpack.c.l.b16 %v699
      %v757 = vunpack.c.l.b16 %v700
      %v758 = vunpack.c.l.b16 %v701
      %v759 = vunpack.c.l.b16 %v702
      %v760 = vunpack.c.l.b16 %v703
      %v761 = vunpack.c.l.b16 %v704
      %v762 = vunpack.c.l.b16 %v705
      %v763 = vunpack.c.l.b16 %v706
      %v764 = vunpack.c.l.b16 %v707
      %v765 = vunpack.c.l.b16 %v708
      %v766 = vunpack.c.l.b16 %v709
      %v767 = vunpack.c.l.b16 %v710
      %v768 = vpack.c.b16 %v753, %v752
      %v769 = vpack.c.b16 %v755, %v754
      %v770 = vpack.c.b16 %v757, %v756
      %v771 = vpack.c.b16 %v759, %v758
      %v772 = vpack.c.b16 %v761, %v760
      %v773 = vpack.c.b16 %v763, %v762
      %v774 = vpack.c.b16 %v765, %v764
      %v775 = vpack.c.b16 %v767, %v766
      %784 = vmatprep.subr.bf16.mxu0 0
      %785 = vmatpush1.bf16.msra.mxu0 %v768
      %786 = vmatprep.subr.bf16.mxu0 0
      %787 = vmatpush1.bf16.msra.mxu0 %v769
      %788 = vmatprep.subr.bf16.mxu0 0
      %789 = vmatpush1.bf16.msra.mxu0 %v770
      %790 = vmatprep.subr.bf16.mxu0 0
      %791 = vmatpush1.bf16.msra.mxu0 %v771
      %792 = vmatprep.subr.bf16.mxu0 0
      %793 = vmatpush1.bf16.msra.mxu0 %v772
      %794 = vmatprep.subr.bf16.mxu0 0
      %795 = vmatpush1.bf16.msra.mxu0 %v773
      %796 = vmatprep.subr.bf16.mxu0 0
      %797 = vmatpush1.bf16.msra.mxu0 %v774
      %798 = vmatprep.subr.bf16.mxu0 0
      %799 = vmatpush1.bf16.msra.mxu0 %v775
      %800 = vmatprep.subr.bf16.mxu0 0
      %801 = vmatpush1.bf16.msra.mxu0 0
      %802 = vmatprep.subr.bf16.mxu0 0
      %803 = vmatpush1.bf16.msra.mxu0 0
      %804 = vmatprep.subr.bf16.mxu0 0
      %805 = vmatpush1.bf16.msra.mxu0 0
      %806 = vmatprep.subr.bf16.mxu0 0
      %807 = vmatpush1.bf16.msra.mxu0 0
      %808 = vmatprep.subr.bf16.mxu0 0
      %809 = vmatpush1.bf16.msra.mxu0 0
      %810 = vmatprep.subr.bf16.mxu0 0
      %811 = vmatpush1.bf16.msra.mxu0 0
      %812 = vmatprep.subr.bf16.mxu0 0
      %813 = vmatpush1.bf16.msra.mxu0 0
      %814 = vmatprep.subr.bf16.mxu0 0
      %815 = vmatpush1.bf16.msra.mxu0 0
      %816 = vmatprep.mubr.bf16.mxu0 0
      %817 = vmatmul.mubr.bf16.gmra.mrb[0].mxu0 %v730
      %v818 = vpop.f32.mrb[0].mxu0
      %v819 = vadd.f32 %v735, %v818
      %v820 = vpop.f32.mrb[0].mxu0
      %v821 = vpop.f32.mrb[0].mxu0
      %v822 = vadd.f32 %v735, %v821
      %v823 = vpop.f32.mrb[0].mxu0
      %824 = vmatprep.mubr.bf16.mxu0 0
      %825 = vmatmul.mubr.bf16.gmra.mrb[0].mxu0 %v731
      %v826 = vpop.f32.mrb[0].mxu0
      %v827 = vadd.f32 %v735, %v826
      %v828 = vpop.f32.mrb[0].mxu0
      %v829 = vpop.f32.mrb[0].mxu0
      %v830 = vadd.f32 %v735, %v829
      %v831 = vpop.f32.mrb[0].mxu0
      %832 = vdwg.mxu0
      %v833 = vmax.f32 %v819, 0.0
      %v834 = vmax.f32 %v822, 0.0
      %v835 = vmax.f32 %v827, 0.0
      %v836 = vmax.f32 %v830, 0.0
      %v837 = vpack.c.bf16 %v834, %v833
      %v838 = vpack.c.bf16 %v836, %v835
      %v839 = vlaneseq
      %v840 = vshrl.u32 %v839, 7
      %v841 = vsub.s32 0, %v840
      %v842 = vrot.slane %v729, %v841
      %v859 = vunpack.c.l.b16 %v712
      %v860 = vunpack.c.l.b16 %v713
      %v861 = vunpack.c.l.b16 %v714
      %v862 = vunpack.c.l.b16 %v715
      %v863 = vunpack.c.l.b16 %v716
      %v864 = vunpack.c.l.b16 %v717
      %v865 = vunpack.c.l.b16 %v718
      %v866 = vunpack.c.l.b16 %v719
      %v867 = vunpack.c.l.b16 %v720
      %v868 = vunpack.c.l.b16 %v721
      %v869 = vunpack.c.l.b16 %v722
      %v870 = vunpack.c.l.b16 %v723
      %v871 = vunpack.c.l.b16 %v724
      %v872 = vunpack.c.l.b16 %v725
      %v873 = vunpack.c.l.b16 %v726
      %v874 = vunpack.c.l.b16 %v727
      %v875 = vpack.c.b16 %v860, %v859
      %v876 = vpack.c.b16 %v862, %v861
      %v877 = vpack.c.b16 %v864, %v863
      %v878 = vpack.c.b16 %v866, %v865
      %v879 = vpack.c.b16 %v868, %v867
      %v880 = vpack.c.b16 %v870, %v869
      %v881 = vpack.c.b16 %v872, %v871
      %v882 = vpack.c.b16 %v874, %v873
      %891 = vmatprep.subr.bf16.mxu0 0
      %892 = vmatpush1.bf16.msra.mxu0 %v875
      %893 = vmatprep.subr.bf16.mxu0 0
      %894 = vmatpush1.bf16.msra.mxu0 %v876
      %895 = vmatprep.subr.bf16.mxu0 0
      %896 = vmatpush1.bf16.msra.mxu0 %v877
      %897 = vmatprep.subr.bf16.mxu0 0
      %898 = vmatpush1.bf16.msra.mxu0 %v878
      %899 = vmatprep.subr.bf16.mxu0 0
      %900 = vmatpush1.bf16.msra.mxu0 %v879
      %901 = vmatprep.subr.bf16.mxu0 0
      %902 = vmatpush1.bf16.msra.mxu0 %v880
      %903 = vmatprep.subr.bf16.mxu0 0
      %904 = vmatpush1.bf16.msra.mxu0 %v881
      %905 = vmatprep.subr.bf16.mxu0 0
      %906 = vmatpush1.bf16.msra.mxu0 %v882
      %907 = vmatprep.subr.bf16.mxu0 0
      %908 = vmatpush1.bf16.msra.mxu0 0
      %909 = vmatprep.subr.bf16.mxu0 0
      %910 = vmatpush1.bf16.msra.mxu0 0
      %911 = vmatprep.subr.bf16.mxu0 0
      %912 = vmatpush1.bf16.msra.mxu0 0
      %913 = vmatprep.subr.bf16.mxu0 0
      %914 = vmatpush1.bf16.msra.mxu0 0
      %915 = vmatprep.subr.bf16.mxu0 0
      %916 = vmatpush1.bf16.msra.mxu0 0
      %917 = vmatprep.subr.bf16.mxu0 0
      %918 = vmatpush1.bf16.msra.mxu0 0
      %919 = vmatprep.subr.bf16.mxu0 0
      %920 = vmatpush1.bf16.msra.mxu0 0
      %921 = vmatprep.subr.bf16.mxu0 0
      %922 = vmatpush1.bf16.msra.mxu0 0
      %923 = vmatprep.mubr.bf16.mxu0 0
      %924 = vmatmul.mubr.bf16.gmra.mrb[0].mxu0 %v837
      %v925 = vpop.f32.mrb[0].mxu0
      %v926 = vadd.f32 %v842, %v925
      %v927 = vpop.f32.mrb[0].mxu0
      %v928 = vpop.f32.mrb[0].mxu0
      %v929 = vadd.f32 %v842, %v928
      %v930 = vpop.f32.mrb[0].mxu0
      %931 = vmatprep.mubr.bf16.mxu0 0
      %932 = vmatmul.mubr.bf16.gmra.mrb[0].mxu0 %v838
      %v933 = vpop.f32.mrb[0].mxu0
      %v934 = vadd.f32 %v842, %v933
      %v935 = vpop.f32.mrb[0].mxu0
      %v936 = vpop.f32.mrb[0].mxu0
      %v937 = vadd.f32 %v842, %v936
      %v938 = vpop.f32.mrb[0].mxu0
      %939 = vdwg.mxu0
      %v940 = vadd.f32 %v926, %v690
      %v941 = vadd.f32 %v929, %v691
      %v942 = vadd.f32 %v934, %v692
      %v943 = vadd.f32 %v937, %v693
      %v944 = vmax.f32 %v940, 0.0
      %v945 = vmax.f32 %v941, 0.0
      %v946 = vmax.f32 %v942, 0.0
      %v947 = vmax.f32 %v943, 0.0
      %p948 = scmp.eq.s32.totalorder %s20, 0
      // Predicated region
      $region37: #{forward.2} parent=35 // pred_check
        %p949 = pneg %p948
      $region38: #{forward.2} parent=35 // pred_check_branch
        %951 = sbr.rel (%p949) target = $region40
      $region39: #{forward.2} parent=35 // pred_region
        %952 = vst [vmem:[#allocation2] sm:$0xff] %v944
        %953 = vst [vmem:[#allocation2 + $0x8] sm:$0xff] %v945
        %954 = vst [vmem:[#allocation2 + $0x10] sm:$0xff] %v946
        %955 = vst [vmem:[#allocation2 + $0x18] sm:$0xff] %v947
      $region40: #{forward.2} parent=35 // pred_fallthru
        _
      %p956 = scmp.gt.s32.totalorder %s20, 0
      // Predicated region
      $region41: #{forward.2} parent=35 // pred_check
        %p957 = pneg %p956
      $region42: #{forward.2} parent=35 // pred_check_branch
        %959 = sbr.rel (%p957) target = $region44
      $region43: #{forward.2} parent=35 // pred_region
        %v960 = vld [vmem:[#allocation2] sm:$0xff]
        %v961 = vld [vmem:[#allocation2 + $0x8] sm:$0xff]
        %v962 = vld [vmem:[#allocation2 + $0x10] sm:$0xff]
        %v963 = vld [vmem:[#allocation2 + $0x18] sm:$0xff]
        %v964 = vmax.f32 %v960, %v944
        %v965 = vmax.f32 %v961, %v945
        %v966 = vmax.f32 %v962, %v946
        %v967 = vmax.f32 %v963, %v947
        %968 = vst [vmem:[#allocation2] sm:$0xff] %v964
        %969 = vst [vmem:[#allocation2 + $0x8] sm:$0xff] %v965
        %970 = vst [vmem:[#allocation2 + $0x10] sm:$0xff] %v966
        %971 = vst [vmem:[#allocation2 + $0x18] sm:$0xff] %v967
      $region44: #{forward.2} parent=35 // pred_fallthru
        _
      %p972 = scmp.eq.s32.totalorder %s20, 3
      // Predicated region
      $region45: #{forward.2} parent=35 // pred_check
        %p973 = pneg %p972
      $region46: #{forward.2} parent=35 // pred_check_branch
        %975 = sbr.rel (%p973) target = $region48
      $region47: #{forward.2} parent=35 // pred_region
        %v976 = vld [vmem:[#allocation2] sm:$0xff]
        %v977 = vld [vmem:[#allocation2 + $0x8] sm:$0xff]
        %v978 = vld [vmem:[#allocation2 + $0x10] sm:$0xff]
        %v979 = vld [vmem:[#allocation2 + $0x18] sm:$0xff]
        %s980 = scalar_lea.vmem %s2, 256
        %v981 = vld [vmem:[%s980] sm:$0xf]
        %v982 = vld [vmem:[%s980 + $0x4] sm:$0xf]
        %v983 = vld [vmem:[%s980 + $0x8] sm:$0xf]
        %v984 = vld [vmem:[%s980 + $0xc] sm:$0xf]
        %v985 = vld [vmem:[%s980 + $0x10] sm:$0xf]
        %v986 = vld [vmem:[%s980 + $0x14] sm:$0xf]
        %v987 = vld [vmem:[%s980 + $0x18] sm:$0xf]
        %v988 = vld [vmem:[%s980 + $0x1c] sm:$0xf]
        %v989 = vld [vmem:[%s980 + $0x20] sm:$0xf]
        %v990 = vld [vmem:[%s980 + $0x24] sm:$0xf]
        %v991 = vld [vmem:[%s980 + $0x28] sm:$0xf]
        %v992 = vld [vmem:[%s980 + $0x2c] sm:$0xf]
        %v993 = vld [vmem:[%s980 + $0x30] sm:$0xf]
        %v994 = vld [vmem:[%s980 + $0x34] sm:$0xf]
        %v995 = vld [vmem:[%s980 + $0x38] sm:$0xf]
        %v996 = vld [vmem:[%s980 + $0x3c] sm:$0xf]
        %s997 = scalar_lea.vmem %s2, 320
        %v998 = vld [vmem:[%s997] sm:$0xf]
        %v999 = vld [vmem:[%s997 + $0x4] sm:$0xf]
        %v1000 = vld [vmem:[%s997 + $0x8] sm:$0xf]
        %v1001 = vld [vmem:[%s997 + $0xc] sm:$0xf]
        %v1002 = vld [vmem:[%s997 + $0x10] sm:$0xf]
        %v1003 = vld [vmem:[%s997 + $0x14] sm:$0xf]
        %v1004 = vld [vmem:[%s997 + $0x18] sm:$0xf]
        %v1005 = vld [vmem:[%s997 + $0x1c] sm:$0xf]
        %v1006 = vld [vmem:[%s997 + $0x20] sm:$0xf]
        %v1007 = vld [vmem:[%s997 + $0x24] sm:$0xf]
        %v1008 = vld [vmem:[%s997 + $0x28] sm:$0xf]
        %v1009 = vld [vmem:[%s997 + $0x2c] sm:$0xf]
        %v1010 = vld [vmem:[%s997 + $0x30] sm:$0xf]
        %v1011 = vld [vmem:[%s997 + $0x34] sm:$0xf]
        %v1012 = vld [vmem:[%s997 + $0x38] sm:$0xf]
        %v1013 = vld [vmem:[%s997 + $0x3c] sm:$0xf]
        %v1014 = vld [vmem:[%s3 + $0x5] sm:$0x1]
        %v1015 = vld [vmem:[%s3 + $0x6] sm:$0x1]
        %v1016 = vpack.c.bf16 %v977, %v976
        %v1017 = vpack.c.bf16 %v979, %v978
        %v1018 = vlaneseq
        %v1019 = vshrl.u32 %v1018, 7
        %v1020 = vsub.s32 0, %v1019
        %v1021 = vrot.slane %v1014, %v1020
        %v1038 = vunpack.c.l.b16 %v981
        %v1039 = vunpack.c.l.b16 %v982
        %v1040 = vunpack.c.l.b16 %v983
        %v1041 = vunpack.c.l.b16 %v984
        %v1042 = vunpack.c.l.b16 %v985
        %v1043 = vunpack.c.l.b16 %v986
        %v1044 = vunpack.c.l.b16 %v987
        %v1045 = vunpack.c.l.b16 %v988
        %v1046 = vunpack.c.l.b16 %v989
        %v1047 = vunpack.c.l.b16 %v990
        %v1048 = vunpack.c.l.b16 %v991
        %v1049 = vunpack.c.l.b16 %v992
        %v1050 = vunpack.c.l.b16 %v993
        %v1051 = vunpack.c.l.b16 %v994
        %v1052 = vunpack.c.l.b16 %v995
        %v1053 = vunpack.c.l.b16 %v996
        %v1054 = vpack.c.b16 %v1039, %v1038
        %v1055 = vpack.c.b16 %v1041, %v1040
        %v1056 = vpack.c.b16 %v1043, %v1042
        %v1057 = vpack.c.b16 %v1045, %v1044
        %v1058 = vpack.c.b16 %v1047, %v1046
        %v1059 = vpack.c.b16 %v1049, %v1048
        %v1060 = vpack.c.b16 %v1051, %v1050
        %v1061 = vpack.c.b16 %v1053, %v1052
        %1070 = vmatprep.subr.bf16.mxu0 0
        %1071 = vmatpush1.bf16.msra.mxu0 %v1054
        %1072 = vmatprep.subr.bf16.mxu0 0
        %1073 = vmatpush1.bf16.msra.mxu0 %v1055
        %1074 = vmatprep.subr.bf16.mxu0 0
        %1075 = vmatpush1.bf16.msra.mxu0 %v1056
        %1076 = vmatprep.subr.bf16.mxu0 0
        %1077 = vmatpush1.bf16.msra.mxu0 %v1057
        %1078 = vmatprep.subr.bf16.mxu0 0
        %1079 = vmatpush1.bf16.msra.mxu0 %v1058
        %1080 = vmatprep.subr.bf16.mxu0 0
        %1081 = vmatpush1.bf16.msra.mxu0 %v1059
        %1082 = vmatprep.subr.bf16.mxu0 0
        %1083 = vmatpush1.bf16.msra.mxu0 %v1060
        %1084 = vmatprep.subr.bf16.mxu0 0
        %1085 = vmatpush1.bf16.msra.mxu0 %v1061
        %1086 = vmatprep.subr.bf16.mxu0 0
        %1087 = vmatpush1.bf16.msra.mxu0 0
        %1088 = vmatprep.subr.bf16.mxu0 0
        %1089 = vmatpush1.bf16.msra.mxu0 0
        %1090 = vmatprep.subr.bf16.mxu0 0
        %1091 = vmatpush1.bf16.msra.mxu0 0
        %1092 = vmatprep.subr.bf16.mxu0 0
        %1093 = vmatpush1.bf16.msra.mxu0 0
        %1094 = vmatprep.subr.bf16.mxu0 0
        %1095 = vmatpush1.bf16.msra.mxu0 0
        %1096 = vmatprep.subr.bf16.mxu0 0
        %1097 = vmatpush1.bf16.msra.mxu0 0
        %1098 = vmatprep.subr.bf16.mxu0 0
        %1099 = vmatpush1.bf16.msra.mxu0 0
        %1100 = vmatprep.subr.bf16.mxu0 0
        %1101 = vmatpush1.bf16.msra.mxu0 0
        %1102 = vmatprep.mubr.bf16.mxu0 0
        %1103 = vmatmul.mubr.bf16.gmra.mrb[0].mxu0 %v1016
        %v1104 = vpop.f32.mrb[0].mxu0
        %v1105 = vadd.f32 %v1021, %v1104
        %v1106 = vpop.f32.mrb[0].mxu0
        %v1107 = vpop.f32.mrb[0].mxu0
        %v1108 = vadd.f32 %v1021, %v1107
        %v1109 = vpop.f32.mrb[0].mxu0
        %1110 = vmatprep.mubr.bf16.mxu0 0
        %1111 = vmatmul.mubr.bf16.gmra.mrb[0].mxu0 %v1017
        %v1112 = vpop.f32.mrb[0].mxu0
        %v1113 = vadd.f32 %v1021, %v1112
        %v1114 = vpop.f32.mrb[0].mxu0
        %v1115 = vpop.f32.mrb[0].mxu0
        %v1116 = vadd.f32 %v1021, %v1115
        %v1117 = vpop.f32.mrb[0].mxu0
        %1118 = vdwg.mxu0
        %v1119 = vmax.f32 %v1105, 0.0
        %v1120 = vmax.f32 %v1108, 0.0
        %v1121 = vmax.f32 %v1113, 0.0
        %v1122 = vmax.f32 %v1116, 0.0
        %v1123 = vpack.c.bf16 %v1120, %v1119
        %v1124 = vpack.c.bf16 %v1122, %v1121
        %v1125 = vlaneseq
        %v1126 = vshrl.u32 %v1125, 7
        %v1127 = vsub.s32 0, %v1126
        %v1128 = vrot.slane %v1015, %v1127
        %v1145 = vunpack.c.l.b16 %v998
        %v1146 = vunpack.c.l.b16 %v999
        %v1147 = vunpack.c.l.b16 %v1000
        %v1148 = vunpack.c.l.b16 %v1001
        %v1149 = vunpack.c.l.b16 %v1002
        %v1150 = vunpack.c.l.b16 %v1003
        %v1151 = vunpack.c.l.b16 %v1004
        %v1152 = vunpack.c.l.b16 %v1005
        %v1153 = vunpack.c.l.b16 %v1006
        %v1154 = vunpack.c.l.b16 %v1007
        %v1155 = vunpack.c.l.b16 %v1008
        %v1156 = vunpack.c.l.b16 %v1009
        %v1157 = vunpack.c.l.b16 %v1010
        %v1158 = vunpack.c.l.b16 %v1011
        %v1159 = vunpack.c.l.b16 %v1012
        %v1160 = vunpack.c.l.b16 %v1013
        %v1161 = vpack.c.b16 %v1146, %v1145
        %v1162 = vpack.c.b16 %v1148, %v1147
        %v1163 = vpack.c.b16 %v1150, %v1149
        %v1164 = vpack.c.b16 %v1152, %v1151
        %v1165 = vpack.c.b16 %v1154, %v1153
        %v1166 = vpack.c.b16 %v1156, %v1155
        %v1167 = vpack.c.b16 %v1158, %v1157
        %v1168 = vpack.c.b16 %v1160, %v1159
        %1177 = vmatprep.subr.bf16.mxu0 0
        %1178 = vmatpush1.bf16.msra.mxu0 %v1161
        %1179 = vmatprep.subr.bf16.mxu0 0
        %1180 = vmatpush1.bf16.msra.mxu0 %v1162
        %1181 = vmatprep.subr.bf16.mxu0 0
        %1182 = vmatpush1.bf16.msra.mxu0 %v1163
        %1183 = vmatprep.subr.bf16.mxu0 0
        %1184 = vmatpush1.bf16.msra.mxu0 %v1164
        %1185 = vmatprep.subr.bf16.mxu0 0
        %1186 = vmatpush1.bf16.msra.mxu0 %v1165
        %1187 = vmatprep.subr.bf16.mxu0 0
        %1188 = vmatpush1.bf16.msra.mxu0 %v1166
        %1189 = vmatprep.subr.bf16.mxu0 0
        %1190 = vmatpush1.bf16.msra.mxu0 %v1167
        %1191 = vmatprep.subr.bf16.mxu0 0
        %1192 = vmatpush1.bf16.msra.mxu0 %v1168
        %1193 = vmatprep.subr.bf16.mxu0 0
        %1194 = vmatpush1.bf16.msra.mxu0 0
        %1195 = vmatprep.subr.bf16.mxu0 0
        %1196 = vmatpush1.bf16.msra.mxu0 0
        %1197 = vmatprep.subr.bf16.mxu0 0
        %1198 = vmatpush1.bf16.msra.mxu0 0
        %1199 = vmatprep.subr.bf16.mxu0 0
        %1200 = vmatpush1.bf16.msra.mxu0 0
        %1201 = vmatprep.subr.bf16.mxu0 0
        %1202 = vmatpush1.bf16.msra.mxu0 0
        %1203 = vmatprep.subr.bf16.mxu0 0
        %1204 = vmatpush1.bf16.msra.mxu0 0
        %1205 = vmatprep.subr.bf16.mxu0 0
        %1206 = vmatpush1.bf16.msra.mxu0 0
        %1207 = vmatprep.subr.bf16.mxu0 0
        %1208 = vmatpush1.bf16.msra.mxu0 0
        %1209 = vmatprep.mubr.bf16.mxu0 0
        %1210 = vmatmul.mubr.bf16.gmra.mrb[0].mxu0 %v1123
        %v1211 = vpop.f32.mrb[0].mxu0
        %v1212 = vadd.f32 %v1128, %v1211
        %v1213 = vpop.f32.mrb[0].mxu0
        %v1214 = vpop.f32.mrb[0].mxu0
        %v1215 = vadd.f32 %v1128, %v1214
        %v1216 = vpop.f32.mrb[0].mxu0
        %1217 = vmatprep.mubr.bf16.mxu0 0
        %1218 = vmatmul.mubr.bf16.gmra.mrb[0].mxu0 %v1124
        %v1219 = vpop.f32.mrb[0].mxu0
        %v1220 = vadd.f32 %v1128, %v1219
        %v1221 = vpop.f32.mrb[0].mxu0
        %v1222 = vpop.f32.mrb[0].mxu0
        %v1223 = vadd.f32 %v1128, %v1222
        %v1224 = vpop.f32.mrb[0].mxu0
        %1225 = vdwg.mxu0
        %v1226 = vadd.f32 %v1212, %v976
        %v1227 = vadd.f32 %v1215, %v977
        %v1228 = vadd.f32 %v1220, %v978
        %v1229 = vadd.f32 %v1223, %v979
        %v1230 = vmax.f32 %v1226, 0.0
        %v1231 = vmax.f32 %v1227, 0.0
        %v1232 = vmax.f32 %v1228, 0.0
        %v1233 = vmax.f32 %v1229, 0.0
        %s1234 = scalar_lea.vmem %s2, 384
        %v1235 = vld [vmem:[%s1234] sm:$0xf]
        %v1236 = vld [vmem:[%s1234 + $0x4] sm:$0xf]
        %v1237 = vld [vmem:[%s1234 + $0x8] sm:$0xf]
        %v1238 = vld [vmem:[%s1234 + $0xc] sm:$0xf]
        %v1239 = vld [vmem:[%s1234 + $0x10] sm:$0xf]
        %v1240 = vld [vmem:[%s1234 + $0x14] sm:$0xf]
        %v1241 = vld [vmem:[%s1234 + $0x18] sm:$0xf]
        %v1242 = vld [vmem:[%s1234 + $0x1c] sm:$0xf]
        %v1243 = vld [vmem:[%s1234 + $0x20] sm:$0xf]
        %v1244 = vld [vmem:[%s1234 + $0x24] sm:$0xf]
        %v1245 = vld [vmem:[%s1234 + $0x28] sm:$0xf]
        %v1246 = vld [vmem:[%s1234 + $0x2c] sm:$0xf]
        %v1247 = vld [vmem:[%s1234 + $0x30] sm:$0xf]
        %v1248 = vld [vmem:[%s1234 + $0x34] sm:$0xf]
        %v1249 = vld [vmem:[%s1234 + $0x38] sm:$0xf]
        %v1250 = vld [vmem:[%s1234 + $0x3c] sm:$0xf]
        %s1251 = scalar_lea.vmem %s2, 448
        %v1252 = vld [vmem:[%s1251] sm:$0xf]
        %v1253 = vld [vmem:[%s1251 + $0x4] sm:$0xf]
        %v1254 = vld [vmem:[%s1251 + $0x8] sm:$0xf]
        %v1255 = vld [vmem:[%s1251 + $0xc] sm:$0xf]
        %v1256 = vld [vmem:[%s1251 + $0x10] sm:$0xf]
        %v1257 = vld [vmem:[%s1251 + $0x14] sm:$0xf]
        %v1258 = vld [vmem:[%s1251 + $0x18] sm:$0xf]
        %v1259 = vld [vmem:[%s1251 + $0x1c] sm:$0xf]
        %v1260 = vld [vmem:[%s1251 + $0x20] sm:$0xf]
        %v1261 = vld [vmem:[%s1251 + $0x24] sm:$0xf]
        %v1262 = vld [vmem:[%s1251 + $0x28] sm:$0xf]
        %v1263 = vld [vmem:[%s1251 + $0x2c] sm:$0xf]
        %v1264 = vld [vmem:[%s1251 + $0x30] sm:$0xf]
        %v1265 = vld [vmem:[%s1251 + $0x34] sm:$0xf]
        %v1266 = vld [vmem:[%s1251 + $0x38] sm:$0xf]
        %v1267 = vld [vmem:[%s1251 + $0x3c] sm:$0xf]
        %v1268 = vld [vmem:[%s3 + $0x7] sm:$0x1]
        %v1269 = vld [vmem:[%s3 + $0x8] sm:$0x1]
        %v1270 = vpack.c.bf16 %v1231, %v1230
        %v1271 = vpack.c.bf16 %v1233, %v1232
        %v1272 = vlaneseq
        %v1273 = vshrl.u32 %v1272, 7
        %v1274 = vsub.s32 0, %v1273
        %v1275 = vrot.slane %v1268, %v1274
        %v1292 = vunpack.c.l.b16 %v1235
        %v1293 = vunpack.c.l.b16 %v1236
        %v1294 = vunpack.c.l.b16 %v1237
        %v1295 = vunpack.c.l.b16 %v1238
        %v1296 = vunpack.c.l.b16 %v1239
        %v1297 = vunpack.c.l.b16 %v1240
        %v1298 = vunpack.c.l.b16 %v1241
        %v1299 = vunpack.c.l.b16 %v1242
        %v1300 = vunpack.c.l.b16 %v1243
        %v1301 = vunpack.c.l.b16 %v1244
        %v1302 = vunpack.c.l.b16 %v1245
        %v1303 = vunpack.c.l.b16 %v1246
        %v1304 = vunpack.c.l.b16 %v1247
        %v1305 = vunpack.c.l.b16 %v1248
        %v1306 = vunpack.c.l.b16 %v1249
        %v1307 = vunpack.c.l.b16 %v1250
        %v1308 = vpack.c.b16 %v1293, %v1292
        %v1309 = vpack.c.b16 %v1295, %v1294
        %v1310 = vpack.c.b16 %v1297, %v1296
        %v1311 = vpack.c.b16 %v1299, %v1298
        %v1312 = vpack.c.b16 %v1301, %v1300
        %v1313 = vpack.c.b16 %v1303, %v1302
        %v1314 = vpack.c.b16 %v1305, %v1304
        %v1315 = vpack.c.b16 %v1307, %v1306
        %1324 = vmatprep.subr.bf16.mxu0 0
        %1325 = vmatpush1.bf16.msra.mxu0 %v1308
        %1326 = vmatprep.subr.bf16.mxu0 0
        %1327 = vmatpush1.bf16.msra.mxu0 %v1309
        %1328 = vmatprep.subr.bf16.mxu0 0
        %1329 = vmatpush1.bf16.msra.mxu0 %v1310
        %1330 = vmatprep.subr.bf16.mxu0 0
        %1331 = vmatpush1.bf16.msra.mxu0 %v1311
        %1332 = vmatprep.subr.bf16.mxu0 0
        %1333 = vmatpush1.bf16.msra.mxu0 %v1312
        %1334 = vmatprep.subr.bf16.mxu0 0
        %1335 = vmatpush1.bf16.msra.mxu0 %v1313
        %1336 = vmatprep.subr.bf16.mxu0 0
        %1337 = vmatpush1.bf16.msra.mxu0 %v1314
        %1338 = vmatprep.subr.bf16.mxu0 0
        %1339 = vmatpush1.bf16.msra.mxu0 %v1315
        %1340 = vmatprep.subr.bf16.mxu0 0
        %1341 = vmatpush1.bf16.msra.mxu0 0
        %1342 = vmatprep.subr.bf16.mxu0 0
        %1343 = vmatpush1.bf16.msra.mxu0 0
        %1344 = vmatprep.subr.bf16.mxu0 0
        %1345 = vmatpush1.bf16.msra.mxu0 0
        %1346 = vmatprep.subr.bf16.mxu0 0
        %1347 = vmatpush1.bf16.msra.mxu0 0
        %1348 = vmatprep.subr.bf16.mxu0 0
        %1349 = vmatpush1.bf16.msra.mxu0 0
        %1350 = vmatprep.subr.bf16.mxu0 0
        %1351 = vmatpush1.bf16.msra.mxu0 0
        %1352 = vmatprep.subr.bf16.mxu0 0
        %1353 = vmatpush1.bf16.msra.mxu0 0
        %1354 = vmatprep.subr.bf16.mxu0 0
        %1355 = vmatpush1.bf16.msra.mxu0 0
        %1356 = vmatprep.mubr.bf16.mxu0 0
        %1357 = vmatmul.mubr.bf16.gmra.mrb[0].mxu0 %v1270
        %v1358 = vpop.f32.mrb[0].mxu0
        %v1359 = vadd.f32 %v1275, %v1358
        %v1360 = vpop.f32.mrb[0].mxu0
        %v1361 = vpop.f32.mrb[0].mxu0
        %v1362 = vadd.f32 %v1275, %v1361
        %v1363 = vpop.f32.mrb[0].mxu0
        %1364 = vmatprep.mubr.bf16.mxu0 0
        %1365 = vmatmul.mubr.bf16.gmra.mrb[0].mxu0 %v1271
        %v1366 = vpop.f32.mrb[0].mxu0
        %v1367 = vadd.f32 %v1275, %v1366
        %v1368 = vpop.f32.mrb[0].mxu0
        %v1369 = vpop.f32.mrb[0].mxu0
        %v1370 = vadd.f32 %v1275, %v1369
        %v1371 = vpop.f32.mrb[0].mxu0
        %1372 = vdwg.mxu0
        %v1373 = vmax.f32 %v1359, 0.0
        %v1374 = vmax.f32 %v1362, 0.0
        %v1375 = vmax.f32 %v1367, 0.0
        %v1376 = vmax.f32 %v1370, 0.0
        %v1377 = vpack.c.bf16 %v1374, %v1373
        %v1378 = vpack.c.bf16 %v1376, %v1375
        %v1379 = vlaneseq
        %v1380 = vshrl.u32 %v1379, 7
        %v1381 = vsub.s32 0, %v1380
        %v1382 = vrot.slane %v1269, %v1381
        %v1399 = vunpack.c.l.b16 %v1252
        %v1400 = vunpack.c.l.b16 %v1253
        %v1401 = vunpack.c.l.b16 %v1254
        %v1402 = vunpack.c.l.b16 %v1255
        %v1403 = vunpack.c.l.b16 %v1256
        %v1404 = vunpack.c.l.b16 %v1257
        %v1405 = vunpack.c.l.b16 %v1258
        %v1406 = vunpack.c.l.b16 %v1259
        %v1407 = vunpack.c.l.b16 %v1260
        %v1408 = vunpack.c.l.b16 %v1261
        %v1409 = vunpack.c.l.b16 %v1262
        %v1410 = vunpack.c.l.b16 %v1263
        %v1411 = vunpack.c.l.b16 %v1264
        %v1412 = vunpack.c.l.b16 %v1265
        %v1413 = vunpack.c.l.b16 %v1266
        %v1414 = vunpack.c.l.b16 %v1267
        %v1415 = vpack.c.b16 %v1400, %v1399
        %v1416 = vpack.c.b16 %v1402, %v1401
        %v1417 = vpack.c.b16 %v1404, %v1403
        %v1418 = vpack.c.b16 %v1406, %v1405
        %v1419 = vpack.c.b16 %v1408, %v1407
        %v1420 = vpack.c.b16 %v1410, %v1409
        %v1421 = vpack.c.b16 %v1412, %v1411
        %v1422 = vpack.c.b16 %v1414, %v1413
        %1431 = vmatprep.subr.bf16.mxu0 0
        %1432 = vmatpush1.bf16.msra.mxu0 %v1415
        %1433 = vmatprep.subr.bf16.mxu0 0
        %1434 = vmatpush1.bf16.msra.mxu0 %v1416
        %1435 = vmatprep.subr.bf16.mxu0 0
        %1436 = vmatpush1.bf16.msra.mxu0 %v1417
        %1437 = vmatprep.subr.bf16.mxu0 0
        %1438 = vmatpush1.bf16.msra.mxu0 %v1418
        %1439 = vmatprep.subr.bf16.mxu0 0
        %1440 = vmatpush1.bf16.msra.mxu0 %v1419
        %1441 = vmatprep.subr.bf16.mxu0 0
        %1442 = vmatpush1.bf16.msra.mxu0 %v1420
        %1443 = vmatprep.subr.bf16.mxu0 0
        %1444 = vmatpush1.bf16.msra.mxu0 %v1421
        %1445 = vmatprep.subr.bf16.mxu0 0
        %1446 = vmatpush1.bf16.msra.mxu0 %v1422
        %1447 = vmatprep.subr.bf16.mxu0 0
        %1448 = vmatpush1.bf16.msra.mxu0 0
        %1449 = vmatprep.subr.bf16.mxu0 0
        %1450 = vmatpush1.bf16.msra.mxu0 0
        %1451 = vmatprep.subr.bf16.mxu0 0
        %1452 = vmatpush1.bf16.msra.mxu0 0
        %1453 = vmatprep.subr.bf16.mxu0 0
        %1454 = vmatpush1.bf16.msra.mxu0 0
        %1455 = vmatprep.subr.bf16.mxu0 0
        %1456 = vmatpush1.bf16.msra.mxu0 0
        %1457 = vmatprep.subr.bf16.mxu0 0
        %1458 = vmatpush1.bf16.msra.mxu0 0
        %1459 = vmatprep.subr.bf16.mxu0 0
        %1460 = vmatpush1.bf16.msra.mxu0 0
        %1461 = vmatprep.subr.bf16.mxu0 0
        %1462 = vmatpush1.bf16.msra.mxu0 0
        %1463 = vmatprep.mubr.bf16.mxu0 0
        %1464 = vmatmul.mubr.bf16.gmra.mrb[0].mxu0 %v1377
        %v1465 = vpop.f32.mrb[0].mxu0
        %v1466 = vadd.f32 %v1382, %v1465
        %v1467 = vpop.f32.mrb[0].mxu0
        %v1468 = vpop.f32.mrb[0].mxu0
        %v1469 = vadd.f32 %v1382, %v1468
        %v1470 = vpop.f32.mrb[0].mxu0
        %1471 = vmatprep.mubr.bf16.mxu0 0
        %1472 = vmatmul.mubr.bf16.gmra.mrb[0].mxu0 %v1378
        %v1473 = vpop.f32.mrb[0].mxu0
        %v1474 = vadd.f32 %v1382, %v1473
        %v1475 = vpop.f32.mrb[0].mxu0
        %v1476 = vpop.f32.mrb[0].mxu0
        %v1477 = vadd.f32 %v1382, %v1476
        %v1478 = vpop.f32.mrb[0].mxu0
        %1479 = vdwg.mxu0
        %v1480 = vadd.f32 %v1466, %v1230
        %v1481 = vadd.f32 %v1469, %v1231
        %v1482 = vadd.f32 %v1474, %v1232
        %v1483 = vadd.f32 %v1477, %v1233
        %v1484 = vmax.f32 %v1480, 0.0
        %v1485 = vmax.f32 %v1481, 0.0
        %v1486 = vmax.f32 %v1482, 0.0
        %v1487 = vmax.f32 %v1483, 0.0
        %v1488 = vpack.c.bf16 %v1485, %v1484
        %v1489 = vpack.c.bf16 %v1487, %v1486
        %v1492 = vunpack.c.l.b16 %v1488
        %v1493 = vunpack.c.h.b16 %v1488
        %v1494 = vunpack.c.l.b16 %v1489
        %v1495 = vunpack.c.h.b16 %v1489
        %v1496 = vpack.c.b16 %v1492, %v1492
        %v1497 = vpack.c.b16 %v1493, %v1493
        %v1498 = vpack.c.b16 %v1494, %v1494
        %v1499 = vpack.c.b16 %v1495, %v1495
        %1504 = vst [vmem:[%s228] sm:$0xf] %v1496
        %1505 = vst [vmem:[%s228 + $0x4] sm:$0xf] %v1497
        %1506 = vst [vmem:[%s228 + $0x8] sm:$0xf] %v1498
        %1507 = vst [vmem:[%s228 + $0xc] sm:$0xf] %v1499
      $region48: #{forward.2} parent=35 // pred_fallthru
        _
      %s1508 = smul.u32 4, %s19
      %p1509 = scmp.lt.s32.totalorder %s1508, 3
      %s1510 = scalar_select %p1509, %s1508, 3
      %s1511 = smul.addr %s1510, 4
      %s1512 = scalar_lea.vmem %s4, %s1511
      // Predicated region
      $region49: #{forward.2} parent=35 // pred_check
        %p1513 = pneg %p136
      $region50: #{forward.2} parent=35 // pred_check_branch
        %1515 = sbr.rel (%p1513) target = $region52
      $region51: #{forward.2} parent=35 // pred_region
        %s1516 = smul.u32 4, %s19
      $region52: #{forward.2} parent=35 // pred_fallthru
        _
      // Predicated region
      $region53: #{forward.2} parent=35 // pred_check
        %p1517 = pneg %p136
      $region54: #{forward.2} parent=35 // pred_check_branch
        %1519 = sbr.rel (%p1517) target = $region56
      $region55: #{forward.2} parent=35 // pred_region
        %s1520 = smul.u32 4, %s19
        %p1521 = scmp.lt.s32.totalorder %s1520, 3
        %s1522 = scalar_select %p1521, %s1520, 3
        %s1523 = smul.addr %s1522, 4
        %s1524 = scalar_lea.vmem %s4, %s1523
      $region56: #{forward.2} parent=35 // pred_fallthru
        _
    $region36: #{forward.2} parent=5 // pred_fallthru
      _
    %p1525 = scmp.le.s32.totalorder 2, %s10
    // Predicated region
    $region57: #{forward.2} parent=5 // pred_check
      %p1526 = pneg %p1525
    $region58: #{forward.2} parent=5 // pred_check_branch
      %1528 = sbr.rel (%p1526) target = $region60
    $region59: #{forward.2} parent=5 // pred_region
      %s1529 = ssub.s32 %s10, 2
    $region60: #{forward.2} parent=5 // pred_fallthru
      _
  $region6: #{forward.2} parent=0 // loop_footer
    %s14 = sadd.s32 1, %s10
  $region7: #{forward.2} parent=0 // loop_footer_branch
    %9 = sbr.rel target = $region3
  $region8: #{forward.2} parent=0 // loop_exit
    _

// kernel: forward.3
$region0: #{forward.3}
  #allocation0 [shape = 'u32[]', space=smem, size = 0x4, offset = 0x4, fixed_abs, tag = 'smem constant byte address 0x4 - core index']
  #allocation1 [shape = 'u32[144,128]{1,0:T(1,128)}', space=vmem, size = 0x12000, scoped, tag = 'internal scratch']
  #allocation2 [shape = 'f32[16,256]{1,0:T(8,128)}', space=vmem, size = 0x4000, scoped, tag = 'scratch operand']
  %s0 = inlined_call_operand.vmem [shape: bf16[4,16,384], index: 0, kind: input, shape index: {}]
  %s1 = inlined_call_operand.vmem [shape: bf16[384,256], index: 1, kind: input, shape index: {}]
  %s2 = inlined_call_operand.vmem [shape: bf16[8,256,256], index: 2, kind: input, shape index: {}]
  %s3 = inlined_call_operand.vmem [shape: f32[9,256], index: 3, kind: input, shape index: {}]
  %s4 = inlined_call_operand.vmem [shape: bf16[16,256], index: 4, kind: output, shape index: {}]
  %s5 = sld [smem:[#allocation0]]
  $region61: #{forward.3} parent=0
    _
  %s7 = ssub.s32 1, %s5
  %s8 = scalar_select 0, %s7, %s5
  loop: start=0, step=1, limit=6
  $region2: #{forward.3} parent=0 // loop_pre_header
    _
  $region3: #{forward.3} parent=0 // loop_header
    %s10 = sphi 0, %s14
    %p11 = scmp.ge.s32.totalorder %s10, 6
    %s17 = sphi 0, %s29
    %s18 = sphi 0, %s25
    %s19 = sphi 0, %s17
    %s20 = sphi 0, %s18
    %s21 = sphi 0, %s19
    %s22 = sphi 0, %s20
    %s34 = sphi 0, %s36
    %s37 = sphi 0, %s34
    %s38 = sphi 0, %s37
    %s54 = sphi 0, %s38
    %s58 = sphi 0, %s58
    %s60 = sphi 0, %s58
    %s61 = sphi 0, %s60
    %s75 = sphi 0, %s61
    %s79 = sphi 0, %s79
    %s81 = sphi 0, %s79
    %s82 = sphi 0, %s81
    %s96 = sphi 0, %s82
    %s100 = sphi 0, %s100
    %s102 = sphi 0, %s100
    %s103 = sphi 0, %s102
    %s117 = sphi 0, %s103
    %s123 = sphi 0, %s125
    %s126 = sphi 0, %s123
    %s127 = sphi 0, %s126
    %s143 = sphi 0, %s127
  $region4: #{forward.3} parent=0 // loop_header_branch
    %13 = sbr.rel (%p11) target = $region8
  $region5: #{forward.3} parent=0 // loop_body
    %s15 = ssub.s32 %s10, 1
    %s16 = ssub.s32 %s10, 2
    %s23 = sadd.s32 1, %s18
    %p24 = scmp.ge.s32.totalorder %s23, 4
    %s25 = scalar_select %p24, 0, %s23
    %s26 = sadd.s32 1, %s17
    %s27 = scalar_select %p24, %s26, %s17
    %p28 = scmp.ge.s32.totalorder %s27, 1
    %s29 = scalar_select %p28, 0, %s27
    %s30 = ssub.s32 %s18, %s25
    %s31 = ssub.s32 %s17, %s29
    %s32 = sor.u32 %s30, %s31
    %p33 = scmp.eq.s32.totalorder %s32, 0
    %s35 = sadd.s32 %s34, 1
    %s36 = scalar_select %p33, %s34, %s35
    %p39 = pneg %p33
    %p40 = scmp.eq.s32.totalorder %s10, 3
    %p41 = por %p39, %p40
    %p42 = scmp.ne.s32.totalorder %s34, %s37
    %p43 = scmp.eq.s32.totalorder %s10, 0
    %p44 = por %p42, %p43
    %p45 = scmp.ne.s32.totalorder %s34, %s37
    %p46 = scmp.eq.s32.totalorder %s15, 3
    %p47 = por %p45, %p46
    %p48 = scmp.ne.s32.totalorder %s37, %s38
    %p49 = scmp.eq.s32.totalorder %s15, 0
    %p50 = por %p48, %p49
    %p51 = scmp.ne.s32.totalorder %s37, %s38
    %p52 = scmp.eq.s32.totalorder %s16, 3
    %p53 = por %p51, %p52
    %p55 = scmp.ne.s32.totalorder %s38, %s54
    %p56 = scmp.eq.s32.totalorder %s16, 0
    %p57 = por %p55, %p56
    %s59 = sadd.s32 %s58, 1
    %p62 = scmp.eq.s32.totalorder %s10, 3
    %p63 = scmp.ne.s32.totalorder %s58, %s60
    %p64 = scmp.eq.s32.totalorder %s10, 0
    %p65 = por %p63, %p64
    %p66 = scmp.ne.s32.totalorder %s58, %s60
    %p67 = scmp.eq.s32.totalorder %s15, 3
    %p68 = por %p66, %p67
    %p69 = scmp.ne.s32.totalorder %s60, %s61
    %p70 = scmp.eq.s32.totalorder %s15, 0
    %p71 = por %p69, %p70
    %p72 = scmp.ne.s32.totalorder %s60, %s61
    %p73 = scmp.eq.s32.totalorder %s16, 3
    %p74 = por %p72, %p73
    %p76 = scmp.ne.s32.totalorder %s61, %s75
    %p77 = scmp.eq.s32.totalorder %s16, 0
    %p78 = por %p76, %p77
    %s80 = sadd.s32 %s79, 1
    %p83 = scmp.eq.s32.totalorder %s10, 3
    %p84 = scmp.ne.s32.totalorder %s79, %s81
    %p85 = scmp.eq.s32.totalorder %s10, 0
    %p86 = por %p84, %p85
    %p87 = scmp.ne.s32.totalorder %s79, %s81
    %p88 = scmp.eq.s32.totalorder %s15, 3
    %p89 = por %p87, %p88
    %p90 = scmp.ne.s32.totalorder %s81, %s82
    %p91 = scmp.eq.s32.totalorder %s15, 0
    %p92 = por %p90, %p91
    %p93 = scmp.ne.s32.totalorder %s81, %s82
    %p94 = scmp.eq.s32.totalorder %s16, 3
    %p95 = por %p93, %p94
    %p97 = scmp.ne.s32.totalorder %s82, %s96
    %p98 = scmp.eq.s32.totalorder %s16, 0
    %p99 = por %p97, %p98
    %s101 = sadd.s32 %s100, 1
    %p104 = scmp.eq.s32.totalorder %s10, 3
    %p105 = scmp.ne.s32.totalorder %s100, %s102
    %p106 = scmp.eq.s32.totalorder %s10, 0
    %p107 = por %p105, %p106
    %p108 = scmp.ne.s32.totalorder %s100, %s102
    %p109 = scmp.eq.s32.totalorder %s15, 3
    %p110 = por %p108, %p109
    %p111 = scmp.ne.s32.totalorder %s102, %s103
    %p112 = scmp.eq.s32.totalorder %s15, 0
    %p113 = por %p111, %p112
    %p114 = scmp.ne.s32.totalorder %s102, %s103
    %p115 = scmp.eq.s32.totalorder %s16, 3
    %p116 = por %p114, %p115
    %p118 = scmp.ne.s32.totalorder %s103, %s117
    %p119 = scmp.eq.s32.totalorder %s16, 0
    %p120 = por %p118, %p119
    %s121 = ssub.s32 %s17, %s29
    %p122 = scmp.eq.s32.totalorder %s121, 0
    %s124 = sadd.s32 %s123, 1
    %s125 = scalar_select %p122, %s123, %s124
    %p128 = pneg %p122
    %p129 = scmp.eq.s32.totalorder %s10, 3
    %p130 = por %p128, %p129
    %p131 = scmp.ne.s32.totalorder %s123, %s126
    %p132 = scmp.eq.s32.totalorder %s10, 0
    %p133 = por %p131, %p132
    %p134 = scmp.ne.s32.totalorder %s123, %s126
    %p135 = scmp.eq.s32.totalorder %s15, 3
    %p136 = por %p134, %p135
    %p137 = scmp.ne.s32.totalorder %s126, %s127
    %p138 = scmp.eq.s32.totalorder %s15, 0
    %p139 = por %p137, %p138
    %p140 = scmp.ne.s32.totalorder %s126, %s127
    %p141 = scmp.eq.s32.totalorder %s16, 3
    %p142 = por %p140, %p141
    %p144 = scmp.ne.s32.totalorder %s127, %s143
    %p145 = scmp.eq.s32.totalorder %s16, 0
    %p146 = por %p144, %p145
    %p147 = scmp.le.s32.totalorder 1, %s10
    %p148 = scmp.lt.s32.totalorder %s10, 5
    %p149 = pnand %p147, %p148
    %p150 = pneg %p149
    // Predicated region
    $region9: #{forward.3} parent=5 // pred_check
      _
    $region10: #{forward.3} parent=5 // pred_check_branch
      %152 = sbr.rel (%p149) target = $region12
    $region11: #{forward.3} parent=5 // pred_region
      %s153 = ssub.s32 %s10, 1
      // Predicated region
      $region13: #{forward.3} parent=11 // pred_check
        %p154 = pneg %p71
      $region14: #{forward.3} parent=11 // pred_check_branch
        %156 = sbr.rel (%p154) target = $region16
      $region15: #{forward.3} parent=11 // pred_region
        _
      $region16: #{forward.3} parent=11 // pred_fallthru
        _
      // Predicated region
      $region17: #{forward.3} parent=11 // pred_check
        %p157 = pneg %p92
      $region18: #{forward.3} parent=11 // pred_check_branch
        %159 = sbr.rel (%p157) target = $region20
      $region19: #{forward.3} parent=11 // pred_region
        _
      $region20: #{forward.3} parent=11 // pred_fallthru
        _
      // Predicated region
      $region21: #{forward.3} parent=11 // pred_check
        %p160 = pneg %p113
      $region22: #{forward.3} parent=11 // pred_check_branch
        %162 = sbr.rel (%p160) target = $region24
      $region23: #{forward.3} parent=11 // pred_region
        _
      $region24: #{forward.3} parent=11 // pred_fallthru
        _
    $region12: #{forward.3} parent=5 // pred_fallthru
      _
    %p163 = scmp.lt.s32.totalorder %s10, 4
    // Predicated region
    $region25: #{forward.3} parent=5 // pred_check
      %p164 = pneg %p163
    $region26: #{forward.3} parent=5 // pred_check_branch
      %166 = sbr.rel (%p164) target = $region28
    $region27: #{forward.3} parent=5 // pred_region
      // Predicated region
      $region29: #{forward.3} parent=27 // pred_check
        %p167 = pneg %p44
      $region30: #{forward.3} parent=27 // pred_check_branch
        %169 = sbr.rel (%p167) target = $region32
      $region31: #{forward.3} parent=27 // pred_region
        %s170 = smul.u32 2, %s17
        %p171 = scmp.lt.s32.totalorder %s18, 3
        %s172 = scalar_select %p171, %s18, 3
        %p173 = scmp.lt.s32.totalorder %s170, 1
        %s174 = scalar_select %p173, %s170, 1
        %s175 = smul.addr %s174, 3
        %s176 = smul.addr %s172, 6
        %s177 = sadd.s32 %s175, %s176
        %s178 = smul.addr %s177, 4
        %s179 = scalar_lea.vmem %s0, %s178
        %s180 = smul.u32 2, %s17
      $region32: #{forward.3} parent=27 // pred_fallthru
        _
    $region28: #{forward.3} parent=5 // pred_fallthru
      _
    %p181 = scmp.le.s32.totalorder 1, %s10
    %p182 = scmp.lt.s32.totalorder %s10, 5
    %p183 = pnand %p181, %p182
    %p184 = pneg %p183
    // Predicated region
    $region33: #{forward.3} parent=5 // pred_check
      _
    $region34: #{forward.3} parent=5 // pred_check_branch
      %186 = sbr.rel (%p183) target = $region36
    $region35: #{forward.3} parent=5 // pred_region
      %s187 = ssub.s32 %s10, 1
      %s188 = smul.u32 2, %s19
      %p189 = scmp.lt.s32.totalorder %s20, 3
      %s190 = scalar_select %p189, %s20, 3
      %p191 = scmp.lt.s32.totalorder %s188, 1
      %s192 = scalar_select %p191, %s188, 1
      %s193 = smul.addr %s192, 3
      %s194 = smul.addr %s190, 6
      %s195 = sadd.s32 %s193, %s194
      %s196 = smul.addr %s195, 4
      %s197 = scalar_lea.vmem %s0, %s196
      %p198 = pneg %p50
      %p199 = pneg %p47
      %p200 = pneg %p71
      %p201 = pneg %p68
      %p202 = pneg %p92
      %p203 = pneg %p89
      %p204 = pneg %p113
      %p205 = pneg %p110
      %p206 = pneg %p139
      %p207 = pneg %p136
      %s208 = smul.u32 2, %s19
      %p209 = scmp.lt.s32.totalorder %s208, 1
      %s210 = scalar_select %p209, %s208, 1
      %s211 = smul.addr %s210, 2
      %s212 = smul.addr %s211, 4
      %s213 = scalar_lea.vmem %s4, %s212
      %s214 = smul.u32 2, %s19
      %p215 = scmp.lt.s32.totalorder %s20, 3
      %s216 = scalar_select %p215, %s20, 3
      %p217 = scmp.lt.s32.totalorder %s214, 1
      %s218 = scalar_select %p217, %s214, 1
      %s219 = smul.addr %s218, 3
      %s220 = smul.addr %s216, 6
      %s221 = sadd.s32 %s219, %s220
      %s222 = smul.addr %s221, 4
      %s223 = scalar_lea.vmem %s0, %s222
      %s224 = smul.u32 2, %s19
      %s225 = smul.u32 2, %s19
      %p226 = scmp.lt.s32.totalorder %s225, 1
      %s227 = scalar_select %p226, %s225, 1
      %s228 = smul.addr %s227, 2
      %s229 = smul.addr %s228, 4
      %s230 = scalar_lea.vmem %s4, %s229
      %s231 = smul.u32 2, %s19
      %v233 = vld [vmem:[%s223] sm:$0xff]
      %v234 = vld [vmem:[%s223 + $0x8] sm:$0xf]
      %v235 = vld [vmem:[%s223 + $0xc] sm:$0xff]
      %v236 = vld [vmem:[%s223 + $0x14] sm:$0xf]
      %v237 = vld [vmem:[%s1] sm:$0xff]
      %v238 = vld [vmem:[%s1 + $0x8] sm:$0xff]
      %v239 = vld [vmem:[%s1 + $0x10] sm:$0xff]
      %v240 = vld [vmem:[%s1 + $0x18] sm:$0xff]
      %v241 = vld [vmem:[%s1 + $0x20] sm:$0xff]
      %v242 = vld [vmem:[%s1 + $0x28] sm:$0xff]
      %v243 = vld [vmem:[%s1 + $0x30] sm:$0xff]
      %v244 = vld [vmem:[%s1 + $0x38] sm:$0xff]
      %v245 = vld [vmem:[%s1 + $0x40] sm:$0xff]
      %v246 = vld [vmem:[%s1 + $0x48] sm:$0xff]
      %v247 = vld [vmem:[%s1 + $0x50] sm:$0xff]
      %v248 = vld [vmem:[%s1 + $0x58] sm:$0xff]
      %v249 = vld [vmem:[%s1 + $0x60] sm:$0xff]
      %v250 = vld [vmem:[%s1 + $0x68] sm:$0xff]
      %v251 = vld [vmem:[%s1 + $0x70] sm:$0xff]
      %v252 = vld [vmem:[%s1 + $0x78] sm:$0xff]
      %v253 = vld [vmem:[%s1 + $0x80] sm:$0xff]
      %v254 = vld [vmem:[%s1 + $0x88] sm:$0xff]
      %v255 = vld [vmem:[%s1 + $0x90] sm:$0xff]
      %v256 = vld [vmem:[%s1 + $0x98] sm:$0xff]
      %v257 = vld [vmem:[%s1 + $0xa0] sm:$0xff]
      %v258 = vld [vmem:[%s1 + $0xa8] sm:$0xff]
      %v259 = vld [vmem:[%s1 + $0xb0] sm:$0xff]
      %v260 = vld [vmem:[%s1 + $0xb8] sm:$0xff]
      %v261 = vld [vmem:[%s1 + $0xc0] sm:$0xff]
      %v262 = vld [vmem:[%s1 + $0xc8] sm:$0xff]
      %v263 = vld [vmem:[%s1 + $0xd0] sm:$0xff]
      %v264 = vld [vmem:[%s1 + $0xd8] sm:$0xff]
      %v265 = vld [vmem:[%s1 + $0xe0] sm:$0xff]
      %v266 = vld [vmem:[%s1 + $0xe8] sm:$0xff]
      %v267 = vld [vmem:[%s1 + $0xf0] sm:$0xff]
      %v268 = vld [vmem:[%s1 + $0xf8] sm:$0xff]
      %v269 = vld [vmem:[%s1 + $0x100] sm:$0xff]
      %v270 = vld [vmem:[%s1 + $0x108] sm:$0xff]
      %v271 = vld [vmem:[%s1 + $0x110] sm:$0xff]
      %v272 = vld [vmem:[%s1 + $0x118] sm:$0xff]
      %v273 = vld [vmem:[%s1 + $0x120] sm:$0xff]
      %v274 = vld [vmem:[%s1 + $0x128] sm:$0xff]
      %v275 = vld [vmem:[%s1 + $0x130] sm:$0xff]
      %v276 = vld [vmem:[%s1 + $0x138] sm:$0xff]
      %v277 = vld [vmem:[%s1 + $0x140] sm:$0xff]
      %v278 = vld [vmem:[%s1 + $0x148] sm:$0xff]
      %v279 = vld [vmem:[%s1 + $0x150] sm:$0xff]
      %v280 = vld [vmem:[%s1 + $0x158] sm:$0xff]
      %v281 = vld [vmem:[%s1 + $0x160] sm:$0xff]
      %v282 = vld [vmem:[%s1 + $0x168] sm:$0xff]
      %v283 = vld [vmem:[%s1 + $0x170] sm:$0xff]
      %v284 = vld [vmem:[%s1 + $0x178] sm:$0xff]
      %v285 = vld [vmem:[%s3] ss:$8 sm:$0x3]
      %v287 = vlaneseq
      %v288 = vshrl.u32 %v287, 7
      %v289 = vsub.s32 0, %v288
      %v290 = vrot.slane %v285, %v289
      %v291 = vlaneseq
      %v292 = vshrl.u32 %v291, 7
      %v293 = vsub.s32 1, %v292
      %v294 = vrot.slane %v285, %v293
      %v301 = vunpack.c.l.b16 %v233
      %v302 = vunpack.c.h.b16 %v233
      %v303 = vunpack.c.l.b16 %v234
      %v304 = vunpack.c.l.b16 %v235
      %v305 = vunpack.c.h.b16 %v235
      %v306 = vunpack.c.l.b16 %v236
      %v307 = vpack.c.b16 %v304, %v301
      %v308 = vpack.c.b16 %v305, %v302
      %v309 = vpack.c.b16 %v306, %v303
      %v361 = vunpack.c.l.b16 %v237
      %v362 = vunpack.c.h.b16 %v237
      %v363 = vunpack.c.l.b16 %v238
      %v364 = vunpack.c.h.b16 %v238
      %v365 = vunpack.c.l.b16 %v239
      %v366 = vunpack.c.h.b16 %v239
      %v367 = vunpack.c.l.b16 %v240
      %v368 = vunpack.c.h.b16 %v240
      %v369 = vunpack.c.l.b16 %v241
      %v370 = vunpack.c.h.b16 %v241
      %v371 = vunpack.c.l.b16 %v242
      %v372 = vunpack.c.h.b16 %v242
      %v373 = vunpack.c.l.b16 %v243
      %v374 = vunpack.c.h.b16 %v243
      %v375 = vunpack.c.l.b16 %v244
      %v376 = vunpack.c.h.b16 %v244
      %v377 = vunpack.c.l.b16 %v245
      %v378 = vunpack.c.h.b16 %v245
      %v379 = vunpack.c.l.b16 %v246
      %v380 = vunpack.c.h.b16 %v246
      %v381 = vunpack.c.l.b16 %v247
      %v382 = vunpack.c.h.b16 %v247
      %v383 = vunpack.c.l.b16 %v248
      %v384 = vunpack.c.h.b16 %v248
      %v385 = vunpack.c.l.b16 %v249
      %v386 = vunpack.c.h.b16 %v249
      %v387 = vunpack.c.l.b16 %v250
      %v388 = vunpack.c.h.b16 %v250
      %v389 = vunpack.c.l.b16 %v251
      %v390 = vunpack.c.h.b16 %v251
      %v391 = vunpack.c.l.b16 %v252
      %v392 = vunpack.c.h.b16 %v252
      %v393 = vunpack.c.l.b16 %v253
      %v394 = vunpack.c.h.b16 %v253
      %v395 = vunpack.c.l.b16 %v254
      %v396 = vunpack.c.h.b16 %v254
      %v397 = vunpack.c.l.b16 %v255
      %v398 = vunpack.c.h.b16 %v255
      %v399 = vunpack.c.l.b16 %v256
      %v400 = vunpack.c.h.b16 %v256
      %v401 = vunpack.c.l.b16 %v257
      %v402 = vunpack.c.h.b16 %v257
      %v403 = vunpack.c.l.b16 %v258
      %v404 = vunpack.c.h.b16 %v258
      %v405 = vunpack.c.l.b16 %v259
      %v406 = vunpack.c.h.b16 %v259
      %v407 = vunpack.c.l.b16 %v260
      %v408 = vunpack.c.h.b16 %v260
      %v409 = vunpack.c.l.b16 %v261
      %v410 = vunpack.c.h.b16 %v261
      %v411 = vunpack.c.l.b16 %v262
      %v412 = vunpack.c.h.b16 %v262
      %v413 = vunpack.c.l.b16 %v263
      %v414 = vunpack.c.h.b16 %v263
      %v415 = vunpack.c.l.b16 %v264
      %v416 = vunpack.c.h.b16 %v264
      %v417 = vunpack.c.l.b16 %v265
      %v418 = vunpack.c.h.b16 %v265
      %v419 = vunpack.c.l.b16 %v266
      %v420 = vunpack.c.h.b16 %v266
      %v421 = vunpack.c.l.b16 %v267
      %v422 = vunpack.c.h.b16 %v267
      %v423 = vunpack.c.l.b16 %v268
      %v424 = vunpack.c.h.b16 %v268
      %v425 = vunpack.c.l.b16 %v269
      %v426 = vunpack.c.h.b16 %v269
      %v427 = vunpack.c.l.b16 %v270
      %v428 = vunpack.c.h.b16 %v270
      %v429 = vunpack.c.l.b16 %v271
      %v430 = vunpack.c.h.b16 %v271
      %v431 = vunpack.c.l.b16 %v272
      %v432 = vunpack.c.h.b16 %v272
      %v433 = vunpack.c.l.b16 %v273
      %v434 = vunpack.c.h.b16 %v273
      %v435 = vunpack.c.l.b16 %v274
      %v436 = vunpack.c.h.b16 %v274
      %v437 = vunpack.c.l.b16 %v275
      %v438 = vunpack.c.h.b16 %v275
      %v439 = vunpack.c.l.b16 %v276
      %v440 = vunpack.c.h.b16 %v276
      %v441 = vunpack.c.l.b16 %v277
      %v442 = vunpack.c.h.b16 %v277
      %v443 = vunpack.c.l.b16 %v278
      %v444 = vunpack.c.h.b16 %v278
      %v445 = vunpack.c.l.b16 %v279
      %v446 = vunpack.c.h.b16 %v279
      %v447 = vunpack.c.l.b16 %v280
      %v448 = vunpack.c.h.b16 %v280
      %v449 = vunpack.c.l.b16 %v281
      %v450 = vunpack.c.h.b16 %v281
      %v451 = vunpack.c.l.b16 %v282
      %v452 = vunpack.c.h.b16 %v282
      %v453 = vunpack.c.l.b16 %v283
      %v454 = vunpack.c.h.b16 %v283
      %v455 = vunpack.c.l.b16 %v284
      %v456 = vunpack.c.h.b16 %v284
      %v457 = vpack.c.b16 %v363, %v361
      %v458 = vpack.c.b16 %v364, %v362
      %v459 = vpack.c.b16 %v367, %v365
      %v460 = vpack.c.b16 %v368, %v366
      %v461 = vpack.c.b16 %v371, %v369
      %v462 = vpack.c.b16 %v372, %v370
      %v463 = vpack.c.b16 %v375, %v373
      %v464 = vpack.c.b16 %v376, %v374
      %v465 = vpack.c.b16 %v379, %v377
      %v466 = vpack.c.b16 %v380, %v378
      %v467 = vpack.c.b16 %v383, %v381
      %v468 = vpack.c.b16 %v384, %v382
      %v469 = vpack.c.b16 %v387, %v385
      %v470 = vpack.c.b16 %v388, %v386
      %v471 = vpack.c.b16 %v391, %v389
      %v472 = vpack.c.b16 %v392, %v390
      %v473 = vpack.c.b16 %v395, %v393
      %v474 = vpack.c.b16 %v396, %v394
      %v475 = vpack.c.b16 %v399, %v397
      %v476 = vpack.c.b16 %v400, %v398
      %v477 = vpack.c.b16 %v403, %v401
      %v478 = vpack.c.b16 %v404, %v402
      %v479 = vpack.c.b16 %v407, %v405
      %v480 = vpack.c.b16 %v408, %v406
      %v481 = vpack.c.b16 %v411, %v409
      %v482 = vpack.c.b16 %v412, %v410
      %v483 = vpack.c.b16 %v415, %v413
      %v484 = vpack.c.b16 %v416, %v414
      %v485 = vpack.c.b16 %v419, %v417
      %v486 = vpack.c.b16 %v420, %v418
      %v487 = vpack.c.b16 %v423, %v421
      %v488 = vpack.c.b16 %v424, %v422
      %v489 = vpack.c.b16 %v427, %v425
      %v490 = vpack.c.b16 %v428, %v426
      %v491 = vpack.c.b16 %v431, %v429
      %v492 = vpack.c.b16 %v432, %v430
      %v493 = vpack.c.b16 %v435, %v433
      %v494 = vpack.c.b16 %v436, %v434
      %v495 = vpack.c.b16 %v439, %v437
      %v496 = vpack.c.b16 %v440, %v438
      %v497 = vpack.c.b16 %v443, %v441
      %v498 = vpack.c.b16 %v444, %v442
      %v499 = vpack.c.b16 %v447, %v445
      %v500 = vpack.c.b16 %v448, %v446
      %v501 = vpack.c.b16 %v451, %v449
      %v502 = vpack.c.b16 %v452, %v450
      %v503 = vpack.c.b16 %v455, %v453
      %v504 = vpack.c.b16 %v456, %v454
      %553 = vmatprep.subr.bf16.mxu0 %v458
      %554 = vmatpush1.bf16.msra.mxu0 %v457
      %555 = vmatprep.subr.bf16.mxu0 %v460
      %556 = vmatpush1.bf16.msra.mxu0 %v459
      %557 = vmatprep.subr.bf16.mxu0 %v462
      %558 = vmatpush1.bf16.msra.mxu0 %v461
      %559 = vmatprep.subr.bf16.mxu0 %v464
      %560 = vmatpush1.bf16.msra.mxu0 %v463
      %561 = vmatprep.subr.bf16.mxu0 %v466
      %562 = vmatpush1.bf16.msra.mxu0 %v465
      %563 = vmatprep.subr.bf16.mxu0 %v468
      %564 = vmatpush1.bf16.msra.mxu0 %v467
      %565 = vmatprep.subr.bf16.mxu0 %v470
      %566 = vmatpush1.bf16.msra.mxu0 %v469
      %567 = vmatprep.subr.bf16.mxu0 %v472
      %568 = vmatpush1.bf16.msra.mxu0 %v471
      %569 = vmatprep.subr.bf16.mxu0 %v474
      %570 = vmatpush1.bf16.msra.mxu0 %v473
      %571 = vmatprep.subr.bf16.mxu0 %v476
      %572 = vmatpush1.bf16.msra.mxu0 %v475
      %573 = vmatprep.subr.bf16.mxu0 %v478
      %574 = vmatpush1.bf16.msra.mxu0 %v477
      %575 = vmatprep.subr.bf16.mxu0 %v480
      %576 = vmatpush1.bf16.msra.mxu0 %v479
      %577 = vmatprep.subr.bf16.mxu0 %v482
      %578 = vmatpush1.bf16.msra.mxu0 %v481
      %579 = vmatprep.subr.bf16.mxu0 %v484
      %580 = vmatpush1.bf16.msra.mxu0 %v483
      %581 = vmatprep.subr.bf16.mxu0 %v486
      %582 = vmatpush1.bf16.msra.mxu0 %v485
      %583 = vmatprep.subr.bf16.mxu0 %v488
      %584 = vmatpush1.bf16.msra.mxu0 %v487
      %585 = vmatprep.mubr.bf16.mxu0 %v308
      %586 = vmatmul.mubr.bf16.gmra.mrb[0].mxu0 %v307
      %v587 = vpop.f32.mrb[0].mxu0
      %v588 = vadd.f32 %v290, %v587
      %v589 = vpop.f32.mrb[0].mxu0
      %v590 = vadd.f32 %v294, %v589
      %v591 = vpop.f32.mrb[0].mxu0
      %v592 = vadd.f32 %v290, %v591
      %v593 = vpop.f32.mrb[0].mxu0
      %v594 = vadd.f32 %v294, %v593
      %595 = vdwg.mxu0
      %596 = vmatprep.subr.bf16.mxu0 %v490
      %597 = vmatpush1.bf16.msra.mxu0 %v489
      %598 = vmatprep.subr.bf16.mxu0 %v492
      %599 = vmatpush1.bf16.msra.mxu0 %v491
      %600 = vmatprep.subr.bf16.mxu0 %v494
      %601 = vmatpush1.bf16.msra.mxu0 %v493
      %602 = vmatprep.subr.bf16.mxu0 %v496
      %603 = vmatpush1.bf16.msra.mxu0 %v495
      %604 = vmatprep.subr.bf16.mxu0 %v498
      %605 = vmatpush1.bf16.msra.mxu0 %v497
      %606 = vmatprep.subr.bf16.mxu0 %v500
      %607 = vmatpush1.bf16.msra.mxu0 %v499
      %608 = vmatprep.subr.bf16.mxu0 %v502
      %609 = vmatpush1.bf16.msra.mxu0 %v501
      %610 = vmatprep.subr.bf16.mxu0 %v504
      %611 = vmatpush1.bf16.msra.mxu0 %v503
      %612 = vmatprep.subr.bf16.mxu0 0
      %613 = vmatpush1.bf16.msra.mxu0 0
      %614 = vmatprep.subr.bf16.mxu0 0
      %615 = vmatpush1.bf16.msra.mxu0 0
      %616 = vmatprep.subr.bf16.mxu0 0
      %617 = vmatpush1.bf16.msra.mxu0 0
      %618 = vmatprep.subr.bf16.mxu0 0
      %619 = vmatpush1.bf16.msra.mxu0 0
      %620 = vmatprep.subr.bf16.mxu0 0
      %621 = vmatpush1.bf16.msra.mxu0 0
      %622 = vmatprep.subr.bf16.mxu0 0
      %623 = vmatpush1.bf16.msra.mxu0 0
      %624 = vmatprep.subr.bf16.mxu0 0
      %625 = vmatpush1.bf16.msra.mxu0 0
      %626 = vmatprep.subr.bf16.mxu0 0
      %627 = vmatpush1.bf16.msra.mxu0 0
      %628 = vmatprep.mubr.bf16.mxu0 0
      %629 = vmatmul.mubr.bf16.gmra.mrb[0].mxu0 %v309
      %v630 = vpop.f32.mrb[0].mxu0
      %v631 = vadd.f32 %v588, %v630
      %v632 = vpop.f32.mrb[0].mxu0
      %v633 = vadd.f32 %v590, %v632
      %v634 = vpop.f32.mrb[0].mxu0
      %v635 = vadd.f32 %v592, %v634
      %v636 = vpop.f32.mrb[0].mxu0
      %v637 = vadd.f32 %v594, %v636
      %638 = vdwg.mxu0
      %v639 = vmax.f32 %v631, 0.0
      %v640 = vmax.f32 %v633, 0.0
      %v641 = vmax.f32 %v635, 0.0
      %v642 = vmax.f32 %v637, 0.0
      %v643 = vld [vmem:[%s2] sm:$0xff]
      %v644 = vld [vmem:[%s2 + $0x8] sm:$0xff]
      %v645 = vld [vmem:[%s2 + $0x10] sm:$0xff]
      %v646 = vld [vmem:[%s2 + $0x18] sm:$0xff]
      %v647 = vld [vmem:[%s2 + $0x20] sm:$0xff]
      %v648 = vld [vmem:[%s2 + $0x28] sm:$0xff]
      %v649 = vld [vmem:[%s2 + $0x30] sm:$0xff]
      %v650 = vld [vmem:[%s2 + $0x38] sm:$0xff]
      %v651 = vld [vmem:[%s2 + $0x40] sm:$0xff]
      %v652 = vld [vmem:[%s2 + $0x48] sm:$0xff]
      %v653 = vld [vmem:[%s2 + $0x50] sm:$0xff]
      %v654 = vld [vmem:[%s2 + $0x58] sm:$0xff]
      %v655 = vld [vmem:[%s2 + $0x60] sm:$0xff]
      %v656 = vld [vmem:[%s2 + $0x68] sm:$0xff]
      %v657 = vld [vmem:[%s2 + $0x70] sm:$0xff]
      %v658 = vld [vmem:[%s2 + $0x78] sm:$0xff]
      %v659 = vld [vmem:[%s2 + $0x80] sm:$0xff]
      %v660 = vld [vmem:[%s2 + $0x88] sm:$0xff]
      %v661 = vld [vmem:[%s2 + $0x90] sm:$0xff]
      %v662 = vld [vmem:[%s2 + $0x98] sm:$0xff]
      %v663 = vld [vmem:[%s2 + $0xa0] sm:$0xff]
      %v664 = vld [vmem:[%s2 + $0xa8] sm:$0xff]
      %v665 = vld [vmem:[%s2 + $0xb0] sm:$0xff]
      %v666 = vld [vmem:[%s2 + $0xb8] sm:$0xff]
      %v667 = vld [vmem:[%s2 + $0xc0] sm:$0xff]
      %v668 = vld [vmem:[%s2 + $0xc8] sm:$0xff]
      %v669 = vld [vmem:[%s2 + $0xd0] sm:$0xff]
      %v670 = vld [vmem:[%s2 + $0xd8] sm:$0xff]
      %v671 = vld [vmem:[%s2 + $0xe0] sm:$0xff]
      %v672 = vld [vmem:[%s2 + $0xe8] sm:$0xff]
      %v673 = vld [vmem:[%s2 + $0xf0] sm:$0xff]
      %v674 = vld [vmem:[%s2 + $0xf8] sm:$0xff]
      %s675 = scalar_lea.vmem %s2, 256
      %v676 = vld [vmem:[%s675] sm:$0xff]
      %v677 = vld [vmem:[%s675 + $0x8] sm:$0xff]
      %v678 = vld [vmem:[%s675 + $0x10] sm:$0xff]
      %v679 = vld [vmem:[%s675 + $0x18] sm:$0xff]
      %v680 = vld [vmem:[%s675 + $0x20] sm:$0xff]
      %v681 = vld [vmem:[%s675 + $0x28] sm:$0xff]
      %v682 = vld [vmem:[%s675 + $0x30] sm:$0xff]
      %v683 = vld [vmem:[%s675 + $0x38] sm:$0xff]
      %v684 = vld [vmem:[%s675 + $0x40] sm:$0xff]
      %v685 = vld [vmem:[%s675 + $0x48] sm:$0xff]
      %v686 = vld [vmem:[%s675 + $0x50] sm:$0xff]
      %v687 = vld [vmem:[%s675 + $0x58] sm:$0xff]
      %v688 = vld [vmem:[%s675 + $0x60] sm:$0xff]
      %v689 = vld [vmem:[%s675 + $0x68] sm:$0xff]
      %v690 = vld [vmem:[%s675 + $0x70] sm:$0xff]
      %v691 = vld [vmem:[%s675 + $0x78] sm:$0xff]
      %v692 = vld [vmem:[%s675 + $0x80] sm:$0xff]
      %v693 = vld [vmem:[%s675 + $0x88] sm:$0xff]
      %v694 = vld [vmem:[%s675 + $0x90] sm:$0xff]
      %v695 = vld [vmem:[%s675 + $0x98] sm:$0xff]
      %v696 = vld [vmem:[%s675 + $0xa0] sm:$0xff]
      %v697 = vld [vmem:[%s675 + $0xa8] sm:$0xff]
      %v698 = vld [vmem:[%s675 + $0xb0] sm:$0xff]
      %v699 = vld [vmem:[%s675 + $0xb8] sm:$0xff]
      %v700 = vld [vmem:[%s675 + $0xc0] sm:$0xff]
      %v701 = vld [vmem:[%s675 + $0xc8] sm:$0xff]
      %v702 = vld [vmem:[%s675 + $0xd0] sm:$0xff]
      %v703 = vld [vmem:[%s675 + $0xd8] sm:$0xff]
      %v704 = vld [vmem:[%s675 + $0xe0] sm:$0xff]
      %v705 = vld [vmem:[%s675 + $0xe8] sm:$0xff]
      %v706 = vld [vmem:[%s675 + $0xf0] sm:$0xff]
      %v707 = vld [vmem:[%s675 + $0xf8] sm:$0xff]
      %s708 = scalar_lea.vmem %s3, 1
      %v709 = vld [vmem:[%s708] ss:$8 sm:$0x3]
      %s710 = scalar_lea.vmem %s3, 2
      %v711 = vld [vmem:[%s710] ss:$8 sm:$0x3]
      %v712 = vpack.c.bf16 %v641, %v639
      %v713 = vpack.c.bf16 %v642, %v640
      %v715 = vlaneseq
      %v716 = vshrl.u32 %v715, 7
      %v717 = vsub.s32 0, %v716
      %v718 = vrot.slane %v709, %v717
      %v719 = vlaneseq
      %v720 = vshrl.u32 %v719, 7
      %v721 = vsub.s32 1, %v720
      %v722 = vrot.slane %v709, %v721
      %v757 = vunpack.c.l.b16 %v643
      %v758 = vunpack.c.h.b16 %v643
      %v759 = vunpack.c.l.b16 %v644
      %v760 = vunpack.c.h.b16 %v644
      %v761 = vunpack.c.l.b16 %v645
      %v762 = vunpack.c.h.b16 %v645
      %v763 = vunpack.c.l.b16 %v646
      %v764 = vunpack.c.h.b16 %v646
      %v765 = vunpack.c.l.b16 %v647
      %v766 = vunpack.c.h.b16 %v647
      %v767 = vunpack.c.l.b16 %v648
      %v768 = vunpack.c.h.b16 %v648
      %v769 = vunpack.c.l.b16 %v649
      %v770 = vunpack.c.h.b16 %v649
      %v771 = vunpack.c.l.b16 %v650
      %v772 = vunpack.c.h.b16 %v650
      %v773 = vunpack.c.l.b16 %v651
      %v774 = vunpack.c.h.b16 %v651
      %v775 = vunpack.c.l.b16 %v652
      %v776 = vunpack.c.h.b16 %v652
      %v777 = vunpack.c.l.b16 %v653
      %v778 = vunpack.c.h.b16 %v653
      %v779 = vunpack.c.l.b16 %v654
      %v780 = vunpack.c.h.b16 %v654
      %v781 = vunpack.c.l.b16 %v655
      %v782 = vunpack.c.h.b16 %v655
      %v783 = vunpack.c.l.b16 %v656
      %v784 = vunpack.c.h.b16 %v656
      %v785 = vunpack.c.l.b16 %v657
      %v786 = vunpack.c.h.b16 %v657
      %v787 = vunpack.c.l.b16 %v658
      %v788 = vunpack.c.h.b16 %v658
      %v789 = vunpack.c.l.b16 %v659
      %v790 = vunpack.c.h.b16 %v659
      %v791 = vunpack.c.l.b16 %v660
      %v792 = vunpack.c.h.b16 %v660
      %v793 = vunpack.c.l.b16 %v661
      %v794 = vunpack.c.h.b16 %v661
      %v795 = vunpack.c.l.b16 %v662
      %v796 = vunpack.c.h.b16 %v662
      %v797 = vunpack.c.l.b16 %v663
      %v798 = vunpack.c.h.b16 %v663
      %v799 = vunpack.c.l.b16 %v664
      %v800 = vunpack.c.h.b16 %v664
      %v801 = vunpack.c.l.b16 %v665
      %v802 = vunpack.c.h.b16 %v665
      %v803 = vunpack.c.l.b16 %v666
      %v804 = vunpack.c.h.b16 %v666
      %v805 = vunpack.c.l.b16 %v667
      %v806 = vunpack.c.h.b16 %v667
      %v807 = vunpack.c.l.b16 %v668
      %v808 = vunpack.c.h.b16 %v668
      %v809 = vunpack.c.l.b16 %v669
      %v810 = vunpack.c.h.b16 %v669
      %v811 = vunpack.c.l.b16 %v670
      %v812 = vunpack.c.h.b16 %v670
      %v813 = vunpack.c.l.b16 %v671
      %v814 = vunpack.c.h.b16 %v671
      %v815 = vunpack.c.l.b16 %v672
      %v816 = vunpack.c.h.b16 %v672
      %v817 = vunpack.c.l.b16 %v673
      %v818 = vunpack.c.h.b16 %v673
      %v819 = vunpack.c.l.b16 %v674
      %v820 = vunpack.c.h.b16 %v674
      %v821 = vpack.c.b16 %v759, %v757
      %v822 = vpack.c.b16 %v760, %v758
      %v823 = vpack.c.b16 %v763, %v761
      %v824 = vpack.c.b16 %v764, %v762
      %v825 = vpack.c.b16 %v767, %v765
      %v826 = vpack.c.b16 %v768, %v766
      %v827 = vpack.c.b16 %v771, %v769
      %v828 = vpack.c.b16 %v772, %v770
      %v829 = vpack.c.b16 %v775, %v773
      %v830 = vpack.c.b16 %v776, %v774
      %v831 = vpack.c.b16 %v779, %v777
      %v832 = vpack.c.b16 %v780, %v778
      %v833 = vpack.c.b16 %v783, %v781
      %v834 = vpack.c.b16 %v784, %v782
      %v835 = vpack.c.b16 %v787, %v785
      %v836 = vpack.c.b16 %v788, %v786
      %v837 = vpack.c.b16 %v791, %v789
      %v838 = vpack.c.b16 %v792, %v790
      %v839 = vpack.c.b16 %v795, %v793
      %v840 = vpack.c.b16 %v796, %v794
      %v841 = vpack.c.b16 %v799, %v797
      %v842 = vpack.c.b16 %v800, %v798
      %v843 = vpack.c.b16 %v803, %v801
      %v844 = vpack.c.b16 %v804, %v802
      %v845 = vpack.c.b16 %v807, %v805
      %v846 = vpack.c.b16 %v808, %v806
      %v847 = vpack.c.b16 %v811, %v809
      %v848 = vpack.c.b16 %v812, %v810
      %v849 = vpack.c.b16 %v815, %v813
      %v850 = vpack.c.b16 %v816, %v814
      %v851 = vpack.c.b16 %v819, %v817
      %v852 = vpack.c.b16 %v820, %v818
      %885 = vmatprep.subr.bf16.mxu0 %v822
      %886 = vmatpush1.bf16.msra.mxu0 %v821
      %887 = vmatprep.subr.bf16.mxu0 %v824
      %888 = vmatpush1.bf16.msra.mxu0 %v823
      %889 = vmatprep.subr.bf16.mxu0 %v826
      %890 = vmatpush1.bf16.msra.mxu0 %v825
      %891 = vmatprep.subr.bf16.mxu0 %v828
      %892 = vmatpush1.bf16.msra.mxu0 %v827
      %893 = vmatprep.subr.bf16.mxu0 %v830
      %894 = vmatpush1.bf16.msra.mxu0 %v829
      %895 = vmatprep.subr.bf16.mxu0 %v832
      %896 = vmatpush1.bf16.msra.mxu0 %v831
      %897 = vmatprep.subr.bf16.mxu0 %v834
      %898 = vmatpush1.bf16.msra.mxu0 %v833
      %899 = vmatprep.subr.bf16.mxu0 %v836
      %900 = vmatpush1.bf16.msra.mxu0 %v835
      %901 = vmatprep.subr.bf16.mxu0 %v838
      %902 = vmatpush1.bf16.msra.mxu0 %v837
      %903 = vmatprep.subr.bf16.mxu0 %v840
      %904 = vmatpush1.bf16.msra.mxu0 %v839
      %905 = vmatprep.subr.bf16.mxu0 %v842
      %906 = vmatpush1.bf16.msra.mxu0 %v841
      %907 = vmatprep.subr.bf16.mxu0 %v844
      %908 = vmatpush1.bf16.msra.mxu0 %v843
      %909 = vmatprep.subr.bf16.mxu0 %v846
      %910 = vmatpush1.bf16.msra.mxu0 %v845
      %911 = vmatprep.subr.bf16.mxu0 %v848
      %912 = vmatpush1.bf16.msra.mxu0 %v847
      %913 = vmatprep.subr.bf16.mxu0 %v850
      %914 = vmatpush1.bf16.msra.mxu0 %v849
      %915 = vmatprep.subr.bf16.mxu0 %v852
      %916 = vmatpush1.bf16.msra.mxu0 %v851
      %917 = vmatprep.mubr.bf16.mxu0 %v713
      %918 = vmatmul.mubr.bf16.gmra.mrb[0].mxu0 %v712
      %v919 = vpop.f32.mrb[0].mxu0
      %v920 = vadd.f32 %v718, %v919
      %v921 = vpop.f32.mrb[0].mxu0
      %v922 = vadd.f32 %v722, %v921
      %v923 = vpop.f32.mrb[0].mxu0
      %v924 = vadd.f32 %v718, %v923
      %v925 = vpop.f32.mrb[0].mxu0
      %v926 = vadd.f32 %v722, %v925
      %927 = vdwg.mxu0
      %v928 = vmax.f32 %v920, 0.0
      %v929 = vmax.f32 %v922, 0.0
      %v930 = vmax.f32 %v924, 0.0
      %v931 = vmax.f32 %v926, 0.0
      %v932 = vpack.c.bf16 %v930, %v928
      %v933 = vpack.c.bf16 %v931, %v929
      %v935 = vlaneseq
      %v936 = vshrl.u32 %v935, 7
      %v937 = vsub.s32 0, %v936
      %v938 = vrot.slane %v711, %v937
      %v939 = vlaneseq
      %v940 = vshrl.u32 %v939, 7
      %v941 = vsub.s32 1, %v940
      %v942 = vrot.slane %v711, %v941
      %v977 = vunpack.c.l.b16 %v676
      %v978 = vunpack.c.h.b16 %v676
      %v979 = vunpack.c.l.b16 %v677
      %v980 = vunpack.c.h.b16 %v677
      %v981 = vunpack.c.l.b16 %v678
      %v982 = vunpack.c.h.b16 %v678
      %v983 = vunpack.c.l.b16 %v679
      %v984 = vunpack.c.h.b16 %v679
      %v985 = vunpack.c.l.b16 %v680
      %v986 = vunpack.c.h.b16 %v680
      %v987 = vunpack.c.l.b16 %v681
      %v988 = vunpack.c.h.b16 %v681
      %v989 = vunpack.c.l.b16 %v682
      %v990 = vunpack.c.h.b16 %v682
      %v991 = vunpack.c.l.b16 %v683
      %v992 = vunpack.c.h.b16 %v683
      %v993 = vunpack.c.l.b16 %v684
      %v994 = vunpack.c.h.b16 %v684
      %v995 = vunpack.c.l.b16 %v685
      %v996 = vunpack.c.h.b16 %v685
      %v997 = vunpack.c.l.b16 %v686
      %v998 = vunpack.c.h.b16 %v686
      %v999 = vunpack.c.l.b16 %v687
      %v1000 = vunpack.c.h.b16 %v687
      %v1001 = vunpack.c.l.b16 %v688
      %v1002 = vunpack.c.h.b16 %v688
      %v1003 = vunpack.c.l.b16 %v689
      %v1004 = vunpack.c.h.b16 %v689
      %v1005 = vunpack.c.l.b16 %v690
      %v1006 = vunpack.c.h.b16 %v690
      %v1007 = vunpack.c.l.b16 %v691
      %v1008 = vunpack.c.h.b16 %v691
      %v1009 = vunpack.c.l.b16 %v692
      %v1010 = vunpack.c.h.b16 %v692
      %v1011 = vunpack.c.l.b16 %v693
      %v1012 = vunpack.c.h.b16 %v693
      %v1013 = vunpack.c.l.b16 %v694
      %v1014 = vunpack.c.h.b16 %v694
      %v1015 = vunpack.c.l.b16 %v695
      %v1016 = vunpack.c.h.b16 %v695
      %v1017 = vunpack.c.l.b16 %v696
      %v1018 = vunpack.c.h.b16 %v696
      %v1019 = vunpack.c.l.b16 %v697
      %v1020 = vunpack.c.h.b16 %v697
      %v1021 = vunpack.c.l.b16 %v698
      %v1022 = vunpack.c.h.b16 %v698
      %v1023 = vunpack.c.l.b16 %v699
      %v1024 = vunpack.c.h.b16 %v699
      %v1025 = vunpack.c.l.b16 %v700
      %v1026 = vunpack.c.h.b16 %v700
      %v1027 = vunpack.c.l.b16 %v701
      %v1028 = vunpack.c.h.b16 %v701
      %v1029 = vunpack.c.l.b16 %v702
      %v1030 = vunpack.c.h.b16 %v702
      %v1031 = vunpack.c.l.b16 %v703
      %v1032 = vunpack.c.h.b16 %v703
      %v1033 = vunpack.c.l.b16 %v704
      %v1034 = vunpack.c.h.b16 %v704
      %v1035 = vunpack.c.l.b16 %v705
      %v1036 = vunpack.c.h.b16 %v705
      %v1037 = vunpack.c.l.b16 %v706
      %v1038 = vunpack.c.h.b16 %v706
      %v1039 = vunpack.c.l.b16 %v707
      %v1040 = vunpack.c.h.b16 %v707
      %v1041 = vpack.c.b16 %v979, %v977
      %v1042 = vpack.c.b16 %v980, %v978
      %v1043 = vpack.c.b16 %v983, %v981
      %v1044 = vpack.c.b16 %v984, %v982
      %v1045 = vpack.c.b16 %v987, %v985
      %v1046 = vpack.c.b16 %v988, %v986
      %v1047 = vpack.c.b16 %v991, %v989
      %v1048 = vpack.c.b16 %v992, %v990
      %v1049 = vpack.c.b16 %v995, %v993
      %v1050 = vpack.c.b16 %v996, %v994
      %v1051 = vpack.c.b16 %v999, %v997
      %v1052 = vpack.c.b16 %v1000, %v998
      %v1053 = vpack.c.b16 %v1003, %v1001
      %v1054 = vpack.c.b16 %v1004, %v1002
      %v1055 = vpack.c.b16 %v1007, %v1005
      %v1056 = vpack.c.b16 %v1008, %v1006
      %v1057 = vpack.c.b16 %v1011, %v1009
      %v1058 = vpack.c.b16 %v1012, %v1010
      %v1059 = vpack.c.b16 %v1015, %v1013
      %v1060 = vpack.c.b16 %v1016, %v1014
      %v1061 = vpack.c.b16 %v1019, %v1017
      %v1062 = vpack.c.b16 %v1020, %v1018
      %v1063 = vpack.c.b16 %v1023, %v1021
      %v1064 = vpack.c.b16 %v1024, %v1022
      %v1065 = vpack.c.b16 %v1027, %v1025
      %v1066 = vpack.c.b16 %v1028, %v1026
      %v1067 = vpack.c.b16 %v1031, %v1029
      %v1068 = vpack.c.b16 %v1032, %v1030
      %v1069 = vpack.c.b16 %v1035, %v1033
      %v1070 = vpack.c.b16 %v1036, %v1034
      %v1071 = vpack.c.b16 %v1039, %v1037
      %v1072 = vpack.c.b16 %v1040, %v1038
      %1105 = vmatprep.subr.bf16.mxu0 %v1042
      %1106 = vmatpush1.bf16.msra.mxu0 %v1041
      %1107 = vmatprep.subr.bf16.mxu0 %v1044
      %1108 = vmatpush1.bf16.msra.mxu0 %v1043
      %1109 = vmatprep.subr.bf16.mxu0 %v1046
      %1110 = vmatpush1.bf16.msra.mxu0 %v1045
      %1111 = vmatprep.subr.bf16.mxu0 %v1048
      %1112 = vmatpush1.bf16.msra.mxu0 %v1047
      %1113 = vmatprep.subr.bf16.mxu0 %v1050
      %1114 = vmatpush1.bf16.msra.mxu0 %v1049
      %1115 = vmatprep.subr.bf16.mxu0 %v1052
      %1116 = vmatpush1.bf16.msra.mxu0 %v1051
      %1117 = vmatprep.subr.bf16.mxu0 %v1054
      %1118 = vmatpush1.bf16.msra.mxu0 %v1053
      %1119 = vmatprep.subr.bf16.mxu0 %v1056
      %1120 = vmatpush1.bf16.msra.mxu0 %v1055
      %1121 = vmatprep.subr.bf16.mxu0 %v1058
      %1122 = vmatpush1.bf16.msra.mxu0 %v1057
      %1123 = vmatprep.subr.bf16.mxu0 %v1060
      %1124 = vmatpush1.bf16.msra.mxu0 %v1059
      %1125 = vmatprep.subr.bf16.mxu0 %v1062
      %1126 = vmatpush1.bf16.msra.mxu0 %v1061
      %1127 = vmatprep.subr.bf16.mxu0 %v1064
      %1128 = vmatpush1.bf16.msra.mxu0 %v1063
      %1129 = vmatprep.subr.bf16.mxu0 %v1066
      %1130 = vmatpush1.bf16.msra.mxu0 %v1065
      %1131 = vmatprep.subr.bf16.mxu0 %v1068
      %1132 = vmatpush1.bf16.msra.mxu0 %v1067
      %1133 = vmatprep.subr.bf16.mxu0 %v1070
      %1134 = vmatpush1.bf16.msra.mxu0 %v1069
      %1135 = vmatprep.subr.bf16.mxu0 %v1072
      %1136 = vmatpush1.bf16.msra.mxu0 %v1071
      %1137 = vmatprep.mubr.bf16.mxu0 %v933
      %1138 = vmatmul.mubr.bf16.gmra.mrb[0].mxu0 %v932
      %v1139 = vpop.f32.mrb[0].mxu0
      %v1140 = vadd.f32 %v938, %v1139
      %v1141 = vpop.f32.mrb[0].mxu0
      %v1142 = vadd.f32 %v942, %v1141
      %v1143 = vpop.f32.mrb[0].mxu0
      %v1144 = vadd.f32 %v938, %v1143
      %v1145 = vpop.f32.mrb[0].mxu0
      %v1146 = vadd.f32 %v942, %v1145
      %1147 = vdwg.mxu0
      %v1148 = vadd.f32 %v1140, %v639
      %v1149 = vadd.f32 %v1142, %v640
      %v1150 = vadd.f32 %v1144, %v641
      %v1151 = vadd.f32 %v1146, %v642
      %v1152 = vmax.f32 %v1148, 0.0
      %v1153 = vmax.f32 %v1149, 0.0
      %v1154 = vmax.f32 %v1150, 0.0
      %v1155 = vmax.f32 %v1151, 0.0
      %s1156 = scalar_lea.vmem %s2, 512
      %v1157 = vld [vmem:[%s1156] sm:$0xff]
      %v1158 = vld [vmem:[%s1156 + $0x8] sm:$0xff]
      %v1159 = vld [vmem:[%s1156 + $0x10] sm:$0xff]
      %v1160 = vld [vmem:[%s1156 + $0x18] sm:$0xff]
      %v1161 = vld [vmem:[%s1156 + $0x20] sm:$0xff]
      %v1162 = vld [vmem:[%s1156 + $0x28] sm:$0xff]
      %v1163 = vld [vmem:[%s1156 + $0x30] sm:$0xff]
      %v1164 = vld [vmem:[%s1156 + $0x38] sm:$0xff]
      %v1165 = vld [vmem:[%s1156 + $0x40] sm:$0xff]
      %v1166 = vld [vmem:[%s1156 + $0x48] sm:$0xff]
      %v1167 = vld [vmem:[%s1156 + $0x50] sm:$0xff]
      %v1168 = vld [vmem:[%s1156 + $0x58] sm:$0xff]
      %v1169 = vld [vmem:[%s1156 + $0x60] sm:$0xff]
      %v1170 = vld [vmem:[%s1156 + $0x68] sm:$0xff]
      %v1171 = vld [vmem:[%s1156 + $0x70] sm:$0xff]
      %v1172 = vld [vmem:[%s1156 + $0x78] sm:$0xff]
      %v1173 = vld [vmem:[%s1156 + $0x80] sm:$0xff]
      %v1174 = vld [vmem:[%s1156 + $0x88] sm:$0xff]
      %v1175 = vld [vmem:[%s1156 + $0x90] sm:$0xff]
      %v1176 = vld [vmem:[%s1156 + $0x98] sm:$0xff]
      %v1177 = vld [vmem:[%s1156 + $0xa0] sm:$0xff]
      %v1178 = vld [vmem:[%s1156 + $0xa8] sm:$0xff]
      %v1179 = vld [vmem:[%s1156 + $0xb0] sm:$0xff]
      %v1180 = vld [vmem:[%s1156 + $0xb8] sm:$0xff]
      %v1181 = vld [vmem:[%s1156 + $0xc0] sm:$0xff]
      %v1182 = vld [vmem:[%s1156 + $0xc8] sm:$0xff]
      %v1183 = vld [vmem:[%s1156 + $0xd0] sm:$0xff]
      %v1184 = vld [vmem:[%s1156 + $0xd8] sm:$0xff]
      %v1185 = vld [vmem:[%s1156 + $0xe0] sm:$0xff]
      %v1186 = vld [vmem:[%s1156 + $0xe8] sm:$0xff]
      %v1187 = vld [vmem:[%s1156 + $0xf0] sm:$0xff]
      %v1188 = vld [vmem:[%s1156 + $0xf8] sm:$0xff]
      %s1189 = scalar_lea.vmem %s2, 768
      %v1190 = vld [vmem:[%s1189] sm:$0xff]
      %v1191 = vld [vmem:[%s1189 + $0x8] sm:$0xff]
      %v1192 = vld [vmem:[%s1189 + $0x10] sm:$0xff]
      %v1193 = vld [vmem:[%s1189 + $0x18] sm:$0xff]
      %v1194 = vld [vmem:[%s1189 + $0x20] sm:$0xff]
      %v1195 = vld [vmem:[%s1189 + $0x28] sm:$0xff]
      %v1196 = vld [vmem:[%s1189 + $0x30] sm:$0xff]
      %v1197 = vld [vmem:[%s1189 + $0x38] sm:$0xff]
      %v1198 = vld [vmem:[%s1189 + $0x40] sm:$0xff]
      %v1199 = vld [vmem:[%s1189 + $0x48] sm:$0xff]
      %v1200 = vld [vmem:[%s1189 + $0x50] sm:$0xff]
      %v1201 = vld [vmem:[%s1189 + $0x58] sm:$0xff]
      %v1202 = vld [vmem:[%s1189 + $0x60] sm:$0xff]
      %v1203 = vld [vmem:[%s1189 + $0x68] sm:$0xff]
      %v1204 = vld [vmem:[%s1189 + $0x70] sm:$0xff]
      %v1205 = vld [vmem:[%s1189 + $0x78] sm:$0xff]
      %v1206 = vld [vmem:[%s1189 + $0x80] sm:$0xff]
      %v1207 = vld [vmem:[%s1189 + $0x88] sm:$0xff]
      %v1208 = vld [vmem:[%s1189 + $0x90] sm:$0xff]
      %v1209 = vld [vmem:[%s1189 + $0x98] sm:$0xff]
      %v1210 = vld [vmem:[%s1189 + $0xa0] sm:$0xff]
      %v1211 = vld [vmem:[%s1189 + $0xa8] sm:$0xff]
      %v1212 = vld [vmem:[%s1189 + $0xb0] sm:$0xff]
      %v1213 = vld [vmem:[%s1189 + $0xb8] sm:$0xff]
      %v1214 = vld [vmem:[%s1189 + $0xc0] sm:$0xff]
      %v1215 = vld [vmem:[%s1189 + $0xc8] sm:$0xff]
      %v1216 = vld [vmem:[%s1189 + $0xd0] sm:$0xff]
      %v1217 = vld [vmem:[%s1189 + $0xd8] sm:$0xff]
      %v1218 = vld [vmem:[%s1189 + $0xe0] sm:$0xff]
      %v1219 = vld [vmem:[%s1189 + $0xe8] sm:$0xff]
      %v1220 = vld [vmem:[%s1189 + $0xf0] sm:$0xff]
      %v1221 = vld [vmem:[%s1189 + $0xf8] sm:$0xff]
      %s1222 = scalar_lea.vmem %s3, 3
      %v1223 = vld [vmem:[%s1222] ss:$8 sm:$0x3]
      %s1224 = scalar_lea.vmem %s3, 4
      %v1225 = vld [vmem:[%s1224] ss:$8 sm:$0x3]
      %v1226 = vpack.c.bf16 %v1154, %v1152
      %v1227 = vpack.c.bf16 %v1155, %v1153
      %v1229 = vlaneseq
      %v1230 = vshrl.u32 %v1229, 7
      %v1231 = vsub.s32 0, %v1230
      %v1232 = vrot.slane %v1223, %v1231
      %v1233 = vlaneseq
      %v1234 = vshrl.u32 %v1233, 7
      %v1235 = vsub.s32 1, %v1234
      %v1236 = vrot.slane %v1223, %v1235
      %v1271 = vunpack.c.l.b16 %v1157
      %v1272 = vunpack.c.h.b16 %v1157
      %v1273 = vunpack.c.l.b16 %v1158
      %v1274 = vunpack.c.h.b16 %v1158
      %v1275 = vunpack.c.l.b16 %v1159
      %v1276 = vunpack.c.h.b16 %v1159
      %v1277 = vunpack.c.l.b16 %v1160
      %v1278 = vunpack.c.h.b16 %v1160
      %v1279 = vunpack.c.l.b16 %v1161
      %v1280 = vunpack.c.h.b16 %v1161
      %v1281 = vunpack.c.l.b16 %v1162
      %v1282 = vunpack.c.h.b16 %v1162
      %v1283 = vunpack.c.l.b16 %v1163
      %v1284 = vunpack.c.h.b16 %v1163
      %v1285 = vunpack.c.l.b16 %v1164
      %v1286 = vunpack.c.h.b16 %v1164
      %v1287 = vunpack.c.l.b16 %v1165
      %v1288 = vunpack.c.h.b16 %v1165
      %v1289 = vunpack.c.l.b16 %v1166
      %v1290 = vunpack.c.h.b16 %v1166
      %v1291 = vunpack.c.l.b16 %v1167
      %v1292 = vunpack.c.h.b16 %v1167
      %v1293 = vunpack.c.l.b16 %v1168
      %v1294 = vunpack.c.h.b16 %v1168
      %v1295 = vunpack.c.l.b16 %v1169
      %v1296 = vunpack.c.h.b16 %v1169
      %v1297 = vunpack.c.l.b16 %v1170
      %v1298 = vunpack.c.h.b16 %v1170
      %v1299 = vunpack.c.l.b16 %v1171
      %v1300 = vunpack.c.h.b16 %v1171
      %v1301 = vunpack.c.l.b16 %v1172
      %v1302 = vunpack.c.h.b16 %v1172
      %v1303 = vunpack.c.l.b16 %v1173
      %v1304 = vunpack.c.h.b16 %v1173
      %v1305 = vunpack.c.l.b16 %v1174
      %v1306 = vunpack.c.h.b16 %v1174
      %v1307 = vunpack.c.l.b16 %v1175
      %v1308 = vunpack.c.h.b16 %v1175
      %v1309 = vunpack.c.l.b16 %v1176
      %v1310 = vunpack.c.h.b16 %v1176
      %v1311 = vunpack.c.l.b16 %v1177
      %v1312 = vunpack.c.h.b16 %v1177
      %v1313 = vunpack.c.l.b16 %v1178
      %v1314 = vunpack.c.h.b16 %v1178
      %v1315 = vunpack.c.l.b16 %v1179
      %v1316 = vunpack.c.h.b16 %v1179
      %v1317 = vunpack.c.l.b16 %v1180
      %v1318 = vunpack.c.h.b16 %v1180
      %v1319 = vunpack.c.l.b16 %v1181
      %v1320 = vunpack.c.h.b16 %v1181
      %v1321 = vunpack.c.l.b16 %v1182
      %v1322 = vunpack.c.h.b16 %v1182
      %v1323 = vunpack.c.l.b16 %v1183
      %v1324 = vunpack.c.h.b16 %v1183
      %v1325 = vunpack.c.l.b16 %v1184
      %v1326 = vunpack.c.h.b16 %v1184
      %v1327 = vunpack.c.l.b16 %v1185
      %v1328 = vunpack.c.h.b16 %v1185
      %v1329 = vunpack.c.l.b16 %v1186
      %v1330 = vunpack.c.h.b16 %v1186
      %v1331 = vunpack.c.l.b16 %v1187
      %v1332 = vunpack.c.h.b16 %v1187
      %v1333 = vunpack.c.l.b16 %v1188
      %v1334 = vunpack.c.h.b16 %v1188
      %v1335 = vpack.c.b16 %v1273, %v1271
      %v1336 = vpack.c.b16 %v1274, %v1272
      %v1337 = vpack.c.b16 %v1277, %v1275
      %v1338 = vpack.c.b16 %v1278, %v1276
      %v1339 = vpack.c.b16 %v1281, %v1279
      %v1340 = vpack.c.b16 %v1282, %v1280
      %v1341 = vpack.c.b16 %v1285, %v1283
      %v1342 = vpack.c.b16 %v1286, %v1284
      %v1343 = vpack.c.b16 %v1289, %v1287
      %v1344 = vpack.c.b16 %v1290, %v1288
      %v1345 = vpack.c.b16 %v1293, %v1291
      %v1346 = vpack.c.b16 %v1294, %v1292
      %v1347 = vpack.c.b16 %v1297, %v1295
      %v1348 = vpack.c.b16 %v1298, %v1296
      %v1349 = vpack.c.b16 %v1301, %v1299
      %v1350 = vpack.c.b16 %v1302, %v1300
      %v1351 = vpack.c.b16 %v1305, %v1303
      %v1352 = vpack.c.b16 %v1306, %v1304
      %v1353 = vpack.c.b16 %v1309, %v1307
      %v1354 = vpack.c.b16 %v1310, %v1308
      %v1355 = vpack.c.b16 %v1313, %v1311
      %v1356 = vpack.c.b16 %v1314, %v1312
      %v1357 = vpack.c.b16 %v1317, %v1315
      %v1358 = vpack.c.b16 %v1318, %v1316
      %v1359 = vpack.c.b16 %v1321, %v1319
      %v1360 = vpack.c.b16 %v1322, %v1320
      %v1361 = vpack.c.b16 %v1325, %v1323
      %v1362 = vpack.c.b16 %v1326, %v1324
      %v1363 = vpack.c.b16 %v1329, %v1327
      %v1364 = vpack.c.b16 %v1330, %v1328
      %v1365 = vpack.c.b16 %v1333, %v1331
      %v1366 = vpack.c.b16 %v1334, %v1332
      %1399 = vmatprep.subr.bf16.mxu0 %v1336
      %1400 = vmatpush1.bf16.msra.mxu0 %v1335
      %1401 = vmatprep.subr.bf16.mxu0 %v1338
      %1402 = vmatpush1.bf16.msra.mxu0 %v1337
      %1403 = vmatprep.subr.bf16.mxu0 %v1340
      %1404 = vmatpush1.bf16.msra.mxu0 %v1339
      %1405 = vmatprep.subr.bf16.mxu0 %v1342
      %1406 = vmatpush1.bf16.msra.mxu0 %v1341
      %1407 = vmatprep.subr.bf16.mxu0 %v1344
      %1408 = vmatpush1.bf16.msra.mxu0 %v1343
      %1409 = vmatprep.subr.bf16.mxu0 %v1346
      %1410 = vmatpush1.bf16.msra.mxu0 %v1345
      %1411 = vmatprep.subr.bf16.mxu0 %v1348
      %1412 = vmatpush1.bf16.msra.mxu0 %v1347
      %1413 = vmatprep.subr.bf16.mxu0 %v1350
      %1414 = vmatpush1.bf16.msra.mxu0 %v1349
      %1415 = vmatprep.subr.bf16.mxu0 %v1352
      %1416 = vmatpush1.bf16.msra.mxu0 %v1351
      %1417 = vmatprep.subr.bf16.mxu0 %v1354
      %1418 = vmatpush1.bf16.msra.mxu0 %v1353
      %1419 = vmatprep.subr.bf16.mxu0 %v1356
      %1420 = vmatpush1.bf16.msra.mxu0 %v1355
      %1421 = vmatprep.subr.bf16.mxu0 %v1358
      %1422 = vmatpush1.bf16.msra.mxu0 %v1357
      %1423 = vmatprep.subr.bf16.mxu0 %v1360
      %1424 = vmatpush1.bf16.msra.mxu0 %v1359
      %1425 = vmatprep.subr.bf16.mxu0 %v1362
      %1426 = vmatpush1.bf16.msra.mxu0 %v1361
      %1427 = vmatprep.subr.bf16.mxu0 %v1364
      %1428 = vmatpush1.bf16.msra.mxu0 %v1363
      %1429 = vmatprep.subr.bf16.mxu0 %v1366
      %1430 = vmatpush1.bf16.msra.mxu0 %v1365
      %1431 = vmatprep.mubr.bf16.mxu0 %v1227
      %1432 = vmatmul.mubr.bf16.gmra.mrb[0].mxu0 %v1226
      %v1433 = vpop.f32.mrb[0].mxu0
      %v1434 = vadd.f32 %v1232, %v1433
      %v1435 = vpop.f32.mrb[0].mxu0
      %v1436 = vadd.f32 %v1236, %v1435
      %v1437 = vpop.f32.mrb[0].mxu0
      %v1438 = vadd.f32 %v1232, %v1437
      %v1439 = vpop.f32.mrb[0].mxu0
      %v1440 = vadd.f32 %v1236, %v1439
      %1441 = vdwg.mxu0
      %v1442 = vmax.f32 %v1434, 0.0
      %v1443 = vmax.f32 %v1436, 0.0
      %v1444 = vmax.f32 %v1438, 0.0
      %v1445 = vmax.f32 %v1440, 0.0
      %v1446 = vpack.c.bf16 %v1444, %v1442
      %v1447 = vpack.c.bf16 %v1445, %v1443
      %v1449 = vlaneseq
      %v1450 = vshrl.u32 %v1449, 7
      %v1451 = vsub.s32 0, %v1450
      %v1452 = vrot.slane %v1225, %v1451
      %v1453 = vlaneseq
      %v1454 = vshrl.u32 %v1453, 7
      %v1455 = vsub.s32 1, %v1454
      %v1456 = vrot.slane %v1225, %v1455
      %v1491 = vunpack.c.l.b16 %v1190
      %v1492 = vunpack.c.h.b16 %v1190
      %v1493 = vunpack.c.l.b16 %v1191
      %v1494 = vunpack.c.h.b16 %v1191
      %v1495 = vunpack.c.l.b16 %v1192
      %v1496 = vunpack.c.h.b16 %v1192
      %v1497 = vunpack.c.l.b16 %v1193
      %v1498 = vunpack.c.h.b16 %v1193
      %v1499 = vunpack.c.l.b16 %v1194
      %v1500 = vunpack.c.h.b16 %v1194
      %v1501 = vunpack.c.l.b16 %v1195
      %v1502 = vunpack.c.h.b16 %v1195
      %v1503 = vunpack.c.l.b16 %v1196
      %v1504 = vunpack.c.h.b16 %v1196
      %v1505 = vunpack.c.l.b16 %v1197
      %v1506 = vunpack.c.h.b16 %v1197
      %v1507 = vunpack.c.l.b16 %v1198
      %v1508 = vunpack.c.h.b16 %v1198
      %v1509 = vunpack.c.l.b16 %v1199
      %v1510 = vunpack.c.h.b16 %v1199
      %v1511 = vunpack.c.l.b16 %v1200
      %v1512 = vunpack.c.h.b16 %v1200
      %v1513 = vunpack.c.l.b16 %v1201
      %v1514 = vunpack.c.h.b16 %v1201
      %v1515 = vunpack.c.l.b16 %v1202
      %v1516 = vunpack.c.h.b16 %v1202
      %v1517 = vunpack.c.l.b16 %v1203
      %v1518 = vunpack.c.h.b16 %v1203
      %v1519 = vunpack.c.l.b16 %v1204
      %v1520 = vunpack.c.h.b16 %v1204
      %v1521 = vunpack.c.l.b16 %v1205
      %v1522 = vunpack.c.h.b16 %v1205
      %v1523 = vunpack.c.l.b16 %v1206
      %v1524 = vunpack.c.h.b16 %v1206
      %v1525 = vunpack.c.l.b16 %v1207
      %v1526 = vunpack.c.h.b16 %v1207
      %v1527 = vunpack.c.l.b16 %v1208
      %v1528 = vunpack.c.h.b16 %v1208
      %v1529 = vunpack.c.l.b16 %v1209
      %v1530 = vunpack.c.h.b16 %v1209
      %v1531 = vunpack.c.l.b16 %v1210
      %v1532 = vunpack.c.h.b16 %v1210
      %v1533 = vunpack.c.l.b16 %v1211
      %v1534 = vunpack.c.h.b16 %v1211
      %v1535 = vunpack.c.l.b16 %v1212
      %v1536 = vunpack.c.h.b16 %v1212
      %v1537 = vunpack.c.l.b16 %v1213
      %v1538 = vunpack.c.h.b16 %v1213
      %v1539 = vunpack.c.l.b16 %v1214
      %v1540 = vunpack.c.h.b16 %v1214
      %v1541 = vunpack.c.l.b16 %v1215
      %v1542 = vunpack.c.h.b16 %v1215
      %v1543 = vunpack.c.l.b16 %v1216
      %v1544 = vunpack.c.h.b16 %v1216
      %v1545 = vunpack.c.l.b16 %v1217
      %v1546 = vunpack.c.h.b16 %v1217
      %v1547 = vunpack.c.l.b16 %v1218
      %v1548 = vunpack.c.h.b16 %v1218
      %v1549 = vunpack.c.l.b16 %v1219
      %v1550 = vunpack.c.h.b16 %v1219
      %v1551 = vunpack.c.l.b16 %v1220
      %v1552 = vunpack.c.h.b16 %v1220
      %v1553 = vunpack.c.l.b16 %v1221
      %v1554 = vunpack.c.h.b16 %v1221
      %v1555 = vpack.c.b16 %v1493, %v1491
      %v1556 = vpack.c.b16 %v1494, %v1492
      %v1557 = vpack.c.b16 %v1497, %v1495
      %v1558 = vpack.c.b16 %v1498, %v1496
      %v1559 = vpack.c.b16 %v1501, %v1499
      %v1560 = vpack.c.b16 %v1502, %v1500
      %v1561 = vpack.c.b16 %v1505, %v1503
      %v1562 = vpack.c.b16 %v1506, %v1504
      %v1563 = vpack.c.b16 %v1509, %v1507
      %v1564 = vpack.c.b16 %v1510, %v1508
      %v1565 = vpack.c.b16 %v1513, %v1511
      %v1566 = vpack.c.b16 %v1514, %v1512
      %v1567 = vpack.c.b16 %v1517, %v1515
      %v1568 = vpack.c.b16 %v1518, %v1516
      %v1569 = vpack.c.b16 %v1521, %v1519
      %v1570 = vpack.c.b16 %v1522, %v1520
      %v1571 = vpack.c.b16 %v1525, %v1523
      %v1572 = vpack.c.b16 %v1526, %v1524
      %v1573 = vpack.c.b16 %v1529, %v1527
      %v1574 = vpack.c.b16 %v1530, %v1528
      %v1575 = vpack.c.b16 %v1533, %v1531
      %v1576 = vpack.c.b16 %v1534, %v1532
      %v1577 = vpack.c.b16 %v1537, %v1535
      %v1578 = vpack.c.b16 %v1538, %v1536
      %v1579 = vpack.c.b16 %v1541, %v1539
      %v1580 = vpack.c.b16 %v1542, %v1540
      %v1581 = vpack.c.b16 %v1545, %v1543
      %v1582 = vpack.c.b16 %v1546, %v1544
      %v1583 = vpack.c.b16 %v1549, %v1547
      %v1584 = vpack.c.b16 %v1550, %v1548
      %v1585 = vpack.c.b16 %v1553, %v1551
      %v1586 = vpack.c.b16 %v1554, %v1552
      %1619 = vmatprep.subr.bf16.mxu0 %v1556
      %1620 = vmatpush1.bf16.msra.mxu0 %v1555
      %1621 = vmatprep.subr.bf16.mxu0 %v1558
      %1622 = vmatpush1.bf16.msra.mxu0 %v1557
      %1623 = vmatprep.subr.bf16.mxu0 %v1560
      %1624 = vmatpush1.bf16.msra.mxu0 %v1559
      %1625 = vmatprep.subr.bf16.mxu0 %v1562
      %1626 = vmatpush1.bf16.msra.mxu0 %v1561
      %1627 = vmatprep.subr.bf16.mxu0 %v1564
      %1628 = vmatpush1.bf16.msra.mxu0 %v1563
      %1629 = vmatprep.subr.bf16.mxu0 %v1566
      %1630 = vmatpush1.bf16.msra.mxu0 %v1565
      %1631 = vmatprep.subr.bf16.mxu0 %v1568
      %1632 = vmatpush1.bf16.msra.mxu0 %v1567
      %1633 = vmatprep.subr.bf16.mxu0 %v1570
      %1634 = vmatpush1.bf16.msra.mxu0 %v1569
      %1635 = vmatprep.subr.bf16.mxu0 %v1572
      %1636 = vmatpush1.bf16.msra.mxu0 %v1571
      %1637 = vmatprep.subr.bf16.mxu0 %v1574
      %1638 = vmatpush1.bf16.msra.mxu0 %v1573
      %1639 = vmatprep.subr.bf16.mxu0 %v1576
      %1640 = vmatpush1.bf16.msra.mxu0 %v1575
      %1641 = vmatprep.subr.bf16.mxu0 %v1578
      %1642 = vmatpush1.bf16.msra.mxu0 %v1577
      %1643 = vmatprep.subr.bf16.mxu0 %v1580
      %1644 = vmatpush1.bf16.msra.mxu0 %v1579
      %1645 = vmatprep.subr.bf16.mxu0 %v1582
      %1646 = vmatpush1.bf16.msra.mxu0 %v1581
      %1647 = vmatprep.subr.bf16.mxu0 %v1584
      %1648 = vmatpush1.bf16.msra.mxu0 %v1583
      %1649 = vmatprep.subr.bf16.mxu0 %v1586
      %1650 = vmatpush1.bf16.msra.mxu0 %v1585
      %1651 = vmatprep.mubr.bf16.mxu0 %v1447
      %1652 = vmatmul.mubr.bf16.gmra.mrb[0].mxu0 %v1446
      %v1653 = vpop.f32.mrb[0].mxu0
      %v1654 = vadd.f32 %v1452, %v1653
      %v1655 = vpop.f32.mrb[0].mxu0
      %v1656 = vadd.f32 %v1456, %v1655
      %v1657 = vpop.f32.mrb[0].mxu0
      %v1658 = vadd.f32 %v1452, %v1657
      %v1659 = vpop.f32.mrb[0].mxu0
      %v1660 = vadd.f32 %v1456, %v1659
      %1661 = vdwg.mxu0
      %v1662 = vadd.f32 %v1654, %v1152
      %v1663 = vadd.f32 %v1656, %v1153
      %v1664 = vadd.f32 %v1658, %v1154
      %v1665 = vadd.f32 %v1660, %v1155
      %v1666 = vmax.f32 %v1662, 0.0
      %v1667 = vmax.f32 %v1663, 0.0
      %v1668 = vmax.f32 %v1664, 0.0
      %v1669 = vmax.f32 %v1665, 0.0
      %p1670 = scmp.eq.s32.totalorder %s20, 0
      // Predicated region
      $region37: #{forward.3} parent=35 // pred_check
        %p1671 = pneg %p1670
      $region38: #{forward.3} parent=35 // pred_check_branch
        %1673 = sbr.rel (%p1671) target = $region40
      $region39: #{forward.3} parent=35 // pred_region
        %1674 = vst [vmem:[#allocation2] sm:$0xff] %v1666
        %1675 = vst [vmem:[#allocation2 + $0x8] sm:$0xff] %v1667
        %1676 = vst [vmem:[#allocation2 + $0x10] sm:$0xff] %v1668
        %1677 = vst [vmem:[#allocation2 + $0x18] sm:$0xff] %v1669
      $region40: #{forward.3} parent=35 // pred_fallthru
        _
      %p1678 = scmp.gt.s32.totalorder %s20, 0
      // Predicated region
      $region41: #{forward.3} parent=35 // pred_check
        %p1679 = pneg %p1678
      $region42: #{forward.3} parent=35 // pred_check_branch
        %1681 = sbr.rel (%p1679) target = $region44
      $region43: #{forward.3} parent=35 // pred_region
        %v1682 = vld [vmem:[#allocation2] sm:$0xff]
        %v1683 = vld [vmem:[#allocation2 + $0x8] sm:$0xff]
        %v1684 = vld [vmem:[#allocation2 + $0x10] sm:$0xff]
        %v1685 = vld [vmem:[#allocation2 + $0x18] sm:$0xff]
        %v1686 = vmax.f32 %v1682, %v1666
        %v1687 = vmax.f32 %v1683, %v1667
        %v1688 = vmax.f32 %v1684, %v1668
        %v1689 = vmax.f32 %v1685, %v1669
        %1690 = vst [vmem:[#allocation2] sm:$0xff] %v1686
        %1691 = vst [vmem:[#allocation2 + $0x8] sm:$0xff] %v1687
        %1692 = vst [vmem:[#allocation2 + $0x10] sm:$0xff] %v1688
        %1693 = vst [vmem:[#allocation2 + $0x18] sm:$0xff] %v1689
      $region44: #{forward.3} parent=35 // pred_fallthru
        _
      %p1694 = scmp.eq.s32.totalorder %s20, 3
      // Predicated region
      $region45: #{forward.3} parent=35 // pred_check
        %p1695 = pneg %p1694
      $region46: #{forward.3} parent=35 // pred_check_branch
        %1697 = sbr.rel (%p1695) target = $region48
      $region47: #{forward.3} parent=35 // pred_region
        %v1698 = vld [vmem:[#allocation2] sm:$0xff]
        %v1699 = vld [vmem:[#allocation2 + $0x8] sm:$0xff]
        %v1700 = vld [vmem:[#allocation2 + $0x10] sm:$0xff]
        %v1701 = vld [vmem:[#allocation2 + $0x18] sm:$0xff]
        %s1702 = scalar_lea.vmem %s2, 1024
        %v1703 = vld [vmem:[%s1702] sm:$0xff]
        %v1704 = vld [vmem:[%s1702 + $0x8] sm:$0xff]
        %v1705 = vld [vmem:[%s1702 + $0x10] sm:$0xff]
        %v1706 = vld [vmem:[%s1702 + $0x18] sm:$0xff]
        %v1707 = vld [vmem:[%s1702 + $0x20] sm:$0xff]
        %v1708 = vld [vmem:[%s1702 + $0x28] sm:$0xff]
        %v1709 = vld [vmem:[%s1702 + $0x30] sm:$0xff]
        %v1710 = vld [vmem:[%s1702 + $0x38] sm:$0xff]
        %v1711 = vld [vmem:[%s1702 + $0x40] sm:$0xff]
        %v1712 = vld [vmem:[%s1702 + $0x48] sm:$0xff]
        %v1713 = vld [vmem:[%s1702 + $0x50] sm:$0xff]
        %v1714 = vld [vmem:[%s1702 + $0x58] sm:$0xff]
        %v1715 = vld [vmem:[%s1702 + $0x60] sm:$0xff]
        %v1716 = vld [vmem:[%s1702 + $0x68] sm:$0xff]
        %v1717 = vld [vmem:[%s1702 + $0x70] sm:$0xff]
        %v1718 = vld [vmem:[%s1702 + $0x78] sm:$0xff]
        %v1719 = vld [vmem:[%s1702 + $0x80] sm:$0xff]
        %v1720 = vld [vmem:[%s1702 + $0x88] sm:$0xff]
        %v1721 = vld [vmem:[%s1702 + $0x90] sm:$0xff]
        %v1722 = vld [vmem:[%s1702 + $0x98] sm:$0xff]
        %v1723 = vld [vmem:[%s1702 + $0xa0] sm:$0xff]
        %v1724 = vld [vmem:[%s1702 + $0xa8] sm:$0xff]
        %v1725 = vld [vmem:[%s1702 + $0xb0] sm:$0xff]
        %v1726 = vld [vmem:[%s1702 + $0xb8] sm:$0xff]
        %v1727 = vld [vmem:[%s1702 + $0xc0] sm:$0xff]
        %v1728 = vld [vmem:[%s1702 + $0xc8] sm:$0xff]
        %v1729 = vld [vmem:[%s1702 + $0xd0] sm:$0xff]
        %v1730 = vld [vmem:[%s1702 + $0xd8] sm:$0xff]
        %v1731 = vld [vmem:[%s1702 + $0xe0] sm:$0xff]
        %v1732 = vld [vmem:[%s1702 + $0xe8] sm:$0xff]
        %v1733 = vld [vmem:[%s1702 + $0xf0] sm:$0xff]
        %v1734 = vld [vmem:[%s1702 + $0xf8] sm:$0xff]
        %s1735 = scalar_lea.vmem %s2, 1280
        %v1736 = vld [vmem:[%s1735] sm:$0xff]
        %v1737 = vld [vmem:[%s1735 + $0x8] sm:$0xff]
        %v1738 = vld [vmem:[%s1735 + $0x10] sm:$0xff]
        %v1739 = vld [vmem:[%s1735 + $0x18] sm:$0xff]
        %v1740 = vld [vmem:[%s1735 + $0x20] sm:$0xff]
        %v1741 = vld [vmem:[%s1735 + $0x28] sm:$0xff]
        %v1742 = vld [vmem:[%s1735 + $0x30] sm:$0xff]
        %v1743 = vld [vmem:[%s1735 + $0x38] sm:$0xff]
        %v1744 = vld [vmem:[%s1735 + $0x40] sm:$0xff]
        %v1745 = vld [vmem:[%s1735 + $0x48] sm:$0xff]
        %v1746 = vld [vmem:[%s1735 + $0x50] sm:$0xff]
        %v1747 = vld [vmem:[%s1735 + $0x58] sm:$0xff]
        %v1748 = vld [vmem:[%s1735 + $0x60] sm:$0xff]
        %v1749 = vld [vmem:[%s1735 + $0x68] sm:$0xff]
        %v1750 = vld [vmem:[%s1735 + $0x70] sm:$0xff]
        %v1751 = vld [vmem:[%s1735 + $0x78] sm:$0xff]
        %v1752 = vld [vmem:[%s1735 + $0x80] sm:$0xff]
        %v1753 = vld [vmem:[%s1735 + $0x88] sm:$0xff]
        %v1754 = vld [vmem:[%s1735 + $0x90] sm:$0xff]
        %v1755 = vld [vmem:[%s1735 + $0x98] sm:$0xff]
        %v1756 = vld [vmem:[%s1735 + $0xa0] sm:$0xff]
        %v1757 = vld [vmem:[%s1735 + $0xa8] sm:$0xff]
        %v1758 = vld [vmem:[%s1735 + $0xb0] sm:$0xff]
        %v1759 = vld [vmem:[%s1735 + $0xb8] sm:$0xff]
        %v1760 = vld [vmem:[%s1735 + $0xc0] sm:$0xff]
        %v1761 = vld [vmem:[%s1735 + $0xc8] sm:$0xff]
        %v1762 = vld [vmem:[%s1735 + $0xd0] sm:$0xff]
        %v1763 = vld [vmem:[%s1735 + $0xd8] sm:$0xff]
        %v1764 = vld [vmem:[%s1735 + $0xe0] sm:$0xff]
        %v1765 = vld [vmem:[%s1735 + $0xe8] sm:$0xff]
        %v1766 = vld [vmem:[%s1735 + $0xf0] sm:$0xff]
        %v1767 = vld [vmem:[%s1735 + $0xf8] sm:$0xff]
        %s1768 = scalar_lea.vmem %s3, 5
        %v1769 = vld [vmem:[%s1768] ss:$8 sm:$0x3]
        %s1770 = scalar_lea.vmem %s3, 6
        %v1771 = vld [vmem:[%s1770] ss:$8 sm:$0x3]
        %v1772 = vpack.c.bf16 %v1700, %v1698
        %v1773 = vpack.c.bf16 %v1701, %v1699
        %v1775 = vlaneseq
        %v1776 = vshrl.u32 %v1775, 7
        %v1777 = vsub.s32 0, %v1776
        %v1778 = vrot.slane %v1769, %v1777
        %v1779 = vlaneseq
        %v1780 = vshrl.u32 %v1779, 7
        %v1781 = vsub.s32 1, %v1780
        %v1782 = vrot.slane %v1769, %v1781
        %v1817 = vunpack.c.l.b16 %v1703
        %v1818 = vunpack.c.h.b16 %v1703
        %v1819 = vunpack.c.l.b16 %v1704
        %v1820 = vunpack.c.h.b16 %v1704
        %v1821 = vunpack.c.l.b16 %v1705
        %v1822 = vunpack.c.h.b16 %v1705
        %v1823 = vunpack.c.l.b16 %v1706
        %v1824 = vunpack.c.h.b16 %v1706
        %v1825 = vunpack.c.l.b16 %v1707
        %v1826 = vunpack.c.h.b16 %v1707
        %v1827 = vunpack.c.l.b16 %v1708
        %v1828 = vunpack.c.h.b16 %v1708
        %v1829 = vunpack.c.l.b16 %v1709
        %v1830 = vunpack.c.h.b16 %v1709
        %v1831 = vunpack.c.l.b16 %v1710
        %v1832 = vunpack.c.h.b16 %v1710
        %v1833 = vunpack.c.l.b16 %v1711
        %v1834 = vunpack.c.h.b16 %v1711
        %v1835 = vunpack.c.l.b16 %v1712
        %v1836 = vunpack.c.h.b16 %v1712
        %v1837 = vunpack.c.l.b16 %v1713
        %v1838 = vunpack.c.h.b16 %v1713
        %v1839 = vunpack.c.l.b16 %v1714
        %v1840 = vunpack.c.h.b16 %v1714
        %v1841 = vunpack.c.l.b16 %v1715
        %v1842 = vunpack.c.h.b16 %v1715
        %v1843 = vunpack.c.l.b16 %v1716
        %v1844 = vunpack.c.h.b16 %v1716
        %v1845 = vunpack.c.l.b16 %v1717
        %v1846 = vunpack.c.h.b16 %v1717
        %v1847 = vunpack.c.l.b16 %v1718
        %v1848 = vunpack.c.h.b16 %v1718
        %v1849 = vunpack.c.l.b16 %v1719
        %v1850 = vunpack.c.h.b16 %v1719
        %v1851 = vunpack.c.l.b16 %v1720
        %v1852 = vunpack.c.h.b16 %v1720
        %v1853 = vunpack.c.l.b16 %v1721
        %v1854 = vunpack.c.h.b16 %v1721
        %v1855 = vunpack.c.l.b16 %v1722
        %v1856 = vunpack.c.h.b16 %v1722
        %v1857 = vunpack.c.l.b16 %v1723
        %v1858 = vunpack.c.h.b16 %v1723
        %v1859 = vunpack.c.l.b16 %v1724
        %v1860 = vunpack.c.h.b16 %v1724
        %v1861 = vunpack.c.l.b16 %v1725
        %v1862 = vunpack.c.h.b16 %v1725
        %v1863 = vunpack.c.l.b16 %v1726
        %v1864 = vunpack.c.h.b16 %v1726
        %v1865 = vunpack.c.l.b16 %v1727
        %v1866 = vunpack.c.h.b16 %v1727
        %v1867 = vunpack.c.l.b16 %v1728
        %v1868 = vunpack.c.h.b16 %v1728
        %v1869 = vunpack.c.l.b16 %v1729
        %v1870 = vunpack.c.h.b16 %v1729
        %v1871 = vunpack.c.l.b16 %v1730
        %v1872 = vunpack.c.h.b16 %v1730
        %v1873 = vunpack.c.l.b16 %v1731
        %v1874 = vunpack.c.h.b16 %v1731
        %v1875 = vunpack.c.l.b16 %v1732
        %v1876 = vunpack.c.h.b16 %v1732
        %v1877 = vunpack.c.l.b16 %v1733
        %v1878 = vunpack.c.h.b16 %v1733
        %v1879 = vunpack.c.l.b16 %v1734
        %v1880 = vunpack.c.h.b16 %v1734
        %v1881 = vpack.c.b16 %v1819, %v1817
        %v1882 = vpack.c.b16 %v1820, %v1818
        %v1883 = vpack.c.b16 %v1823, %v1821
        %v1884 = vpack.c.b16 %v1824, %v1822
        %v1885 = vpack.c.b16 %v1827, %v1825
        %v1886 = vpack.c.b16 %v1828, %v1826
        %v1887 = vpack.c.b16 %v1831, %v1829
        %v1888 = vpack.c.b16 %v1832, %v1830
        %v1889 = vpack.c.b16 %v1835, %v1833
        %v1890 = vpack.c.b16 %v1836, %v1834
        %v1891 = vpack.c.b16 %v1839, %v1837
        %v1892 = vpack.c.b16 %v1840, %v1838
        %v1893 = vpack.c.b16 %v1843, %v1841
        %v1894 = vpack.c.b16 %v1844, %v1842
        %v1895 = vpack.c.b16 %v1847, %v1845
        %v1896 = vpack.c.b16 %v1848, %v1846
        %v1897 = vpack.c.b16 %v1851, %v1849
        %v1898 = vpack.c.b16 %v1852, %v1850
        %v1899 = vpack.c.b16 %v1855, %v1853
        %v1900 = vpack.c.b16 %v1856, %v1854
        %v1901 = vpack.c.b16 %v1859, %v1857
        %v1902 = vpack.c.b16 %v1860, %v1858
        %v1903 = vpack.c.b16 %v1863, %v1861
        %v1904 = vpack.c.b16 %v1864, %v1862
        %v1905 = vpack.c.b16 %v1867, %v1865
        %v1906 = vpack.c.b16 %v1868, %v1866
        %v1907 = vpack.c.b16 %v1871, %v1869
        %v1908 = vpack.c.b16 %v1872, %v1870
        %v1909 = vpack.c.b16 %v1875, %v1873
        %v1910 = vpack.c.b16 %v1876, %v1874
        %v1911 = vpack.c.b16 %v1879, %v1877
        %v1912 = vpack.c.b16 %v1880, %v1878
        %1945 = vmatprep.subr.bf16.mxu0 %v1882
        %1946 = vmatpush1.bf16.msra.mxu0 %v1881
        %1947 = vmatprep.subr.bf16.mxu0 %v1884
        %1948 = vmatpush1.bf16.msra.mxu0 %v1883
        %1949 = vmatprep.subr.bf16.mxu0 %v1886
        %1950 = vmatpush1.bf16.msra.mxu0 %v1885
        %1951 = vmatprep.subr.bf16.mxu0 %v1888
        %1952 = vmatpush1.bf16.msra.mxu0 %v1887
        %1953 = vmatprep.subr.bf16.mxu0 %v1890
        %1954 = vmatpush1.bf16.msra.mxu0 %v1889
        %1955 = vmatprep.subr.bf16.mxu0 %v1892
        %1956 = vmatpush1.bf16.msra.mxu0 %v1891
        %1957 = vmatprep.subr.bf16.mxu0 %v1894
        %1958 = vmatpush1.bf16.msra.mxu0 %v1893
        %1959 = vmatprep.subr.bf16.mxu0 %v1896
        %1960 = vmatpush1.bf16.msra.mxu0 %v1895
        %1961 = vmatprep.subr.bf16.mxu0 %v1898
        %1962 = vmatpush1.bf16.msra.mxu0 %v1897
        %1963 = vmatprep.subr.bf16.mxu0 %v1900
        %1964 = vmatpush1.bf16.msra.mxu0 %v1899
        %1965 = vmatprep.subr.bf16.mxu0 %v1902
        %1966 = vmatpush1.bf16.msra.mxu0 %v1901
        %1967 = vmatprep.subr.bf16.mxu0 %v1904
        %1968 = vmatpush1.bf16.msra.mxu0 %v1903
        %1969 = vmatprep.subr.bf16.mxu0 %v1906
        %1970 = vmatpush1.bf16.msra.mxu0 %v1905
        %1971 = vmatprep.subr.bf16.mxu0 %v1908
        %1972 = vmatpush1.bf16.msra.mxu0 %v1907
        %1973 = vmatprep.subr.bf16.mxu0 %v1910
        %1974 = vmatpush1.bf16.msra.mxu0 %v1909
        %1975 = vmatprep.subr.bf16.mxu0 %v1912
        %1976 = vmatpush1.bf16.msra.mxu0 %v1911
        %1977 = vmatprep.mubr.bf16.mxu0 %v1773
        %1978 = vmatmul.mubr.bf16.gmra.mrb[0].mxu0 %v1772
        %v1979 = vpop.f32.mrb[0].mxu0
        %v1980 = vadd.f32 %v1778, %v1979
        %v1981 = vpop.f32.mrb[0].mxu0
        %v1982 = vadd.f32 %v1782, %v1981
        %v1983 = vpop.f32.mrb[0].mxu0
        %v1984 = vadd.f32 %v1778, %v1983
        %v1985 = vpop.f32.mrb[0].mxu0
        %v1986 = vadd.f32 %v1782, %v1985
        %1987 = vdwg.mxu0
        %v1988 = vmax.f32 %v1980, 0.0
        %v1989 = vmax.f32 %v1982, 0.0
        %v1990 = vmax.f32 %v1984, 0.0
        %v1991 = vmax.f32 %v1986, 0.0
        %v1992 = vpack.c.bf16 %v1990, %v1988
        %v1993 = vpack.c.bf16 %v1991, %v1989
        %v1995 = vlaneseq
        %v1996 = vshrl.u32 %v1995, 7
        %v1997 = vsub.s32 0, %v1996
        %v1998 = vrot.slane %v1771, %v1997
        %v1999 = vlaneseq
        %v2000 = vshrl.u32 %v1999, 7
        %v2001 = vsub.s32 1, %v2000
        %v2002 = vrot.slane %v1771, %v2001
        %v2037 = vunpack.c.l.b16 %v1736
        %v2038 = vunpack.c.h.b16 %v1736
        %v2039 = vunpack.c.l.b16 %v1737
        %v2040 = vunpack.c.h.b16 %v1737
        %v2041 = vunpack.c.l.b16 %v1738
        %v2042 = vunpack.c.h.b16 %v1738
        %v2043 = vunpack.c.l.b16 %v1739
        %v2044 = vunpack.c.h.b16 %v1739
        %v2045 = vunpack.c.l.b16 %v1740
        %v2046 = vunpack.c.h.b16 %v1740
        %v2047 = vunpack.c.l.b16 %v1741
        %v2048 = vunpack.c.h.b16 %v1741
        %v2049 = vunpack.c.l.b16 %v1742
        %v2050 = vunpack.c.h.b16 %v1742
        %v2051 = vunpack.c.l.b16 %v1743
        %v2052 = vunpack.c.h.b16 %v1743
        %v2053 = vunpack.c.l.b16 %v1744
        %v2054 = vunpack.c.h.b16 %v1744
        %v2055 = vunpack.c.l.b16 %v1745
        %v2056 = vunpack.c.h.b16 %v1745
        %v2057 = vunpack.c.l.b16 %v1746
        %v2058 = vunpack.c.h.b16 %v1746
        %v2059 = vunpack.c.l.b16 %v1747
        %v2060 = vunpack.c.h.b16 %v1747
        %v2061 = vunpack.c.l.b16 %v1748
        %v2062 = vunpack.c.h.b16 %v1748
        %v2063 = vunpack.c.l.b16 %v1749
        %v2064 = vunpack.c.h.b16 %v1749
        %v2065 = vunpack.c.l.b16 %v1750
        %v2066 = vunpack.c.h.b16 %v1750
        %v2067 = vunpack.c.l.b16 %v1751
        %v2068 = vunpack.c.h.b16 %v1751
        %v2069 = vunpack.c.l.b16 %v1752
        %v2070 = vunpack.c.h.b16 %v1752
        %v2071 = vunpack.c.l.b16 %v1753
        %v2072 = vunpack.c.h.b16 %v1753
        %v2073 = vunpack.c.l.b16 %v1754
        %v2074 = vunpack.c.h.b16 %v1754
        %v2075 = vunpack.c.l.b16 %v1755
        %v2076 = vunpack.c.h.b16 %v1755
        %v2077 = vunpack.c.l.b16 %v1756
        %v2078 = vunpack.c.h.b16 %v1756
        %v2079 = vunpack.c.l.b16 %v1757
        %v2080 = vunpack.c.h.b16 %v1757
        %v2081 = vunpack.c.l.b16 %v1758
        %v2082 = vunpack.c.h.b16 %v1758
        %v2083 = vunpack.c.l.b16 %v1759
        %v2084 = vunpack.c.h.b16 %v1759
        %v2085 = vunpack.c.l.b16 %v1760
        %v2086 = vunpack.c.h.b16 %v1760
        %v2087 = vunpack.c.l.b16 %v1761
        %v2088 = vunpack.c.h.b16 %v1761
        %v2089 = vunpack.c.l.b16 %v1762
        %v2090 = vunpack.c.h.b16 %v1762
        %v2091 = vunpack.c.l.b16 %v1763
        %v2092 = vunpack.c.h.b16 %v1763
        %v2093 = vunpack.c.l.b16 %v1764
        %v2094 = vunpack.c.h.b16 %v1764
        %v2095 = vunpack.c.l.b16 %v1765
        %v2096 = vunpack.c.h.b16 %v1765
        %v2097 = vunpack.c.l.b16 %v1766
        %v2098 = vunpack.c.h.b16 %v1766
        %v2099 = vunpack.c.l.b16 %v1767
        %v2100 = vunpack.c.h.b16 %v1767
        %v2101 = vpack.c.b16 %v2039, %v2037
        %v2102 = vpack.c.b16 %v2040, %v2038
        %v2103 = vpack.c.b16 %v2043, %v2041
        %v2104 = vpack.c.b16 %v2044, %v2042
        %v2105 = vpack.c.b16 %v2047, %v2045
        %v2106 = vpack.c.b16 %v2048, %v2046
        %v2107 = vpack.c.b16 %v2051, %v2049
        %v2108 = vpack.c.b16 %v2052, %v2050
        %v2109 = vpack.c.b16 %v2055, %v2053
        %v2110 = vpack.c.b16 %v2056, %v2054
        %v2111 = vpack.c.b16 %v2059, %v2057
        %v2112 = vpack.c.b16 %v2060, %v2058
        %v2113 = vpack.c.b16 %v2063, %v2061
        %v2114 = vpack.c.b16 %v2064, %v2062
        %v2115 = vpack.c.b16 %v2067, %v2065
        %v2116 = vpack.c.b16 %v2068, %v2066
        %v2117 = vpack.c.b16 %v2071, %v2069
        %v2118 = vpack.c.b16 %v2072, %v2070
        %v2119 = vpack.c.b16 %v2075, %v2073
        %v2120 = vpack.c.b16 %v2076, %v2074
        %v2121 = vpack.c.b16 %v2079, %v2077
        %v2122 = vpack.c.b16 %v2080, %v2078
        %v2123 = vpack.c.b16 %v2083, %v2081
        %v2124 = vpack.c.b16 %v2084, %v2082
        %v2125 = vpack.c.b16 %v2087, %v2085
        %v2126 = vpack.c.b16 %v2088, %v2086
        %v2127 = vpack.c.b16 %v2091, %v2089
        %v2128 = vpack.c.b16 %v2092, %v2090
        %v2129 = vpack.c.b16 %v2095, %v2093
        %v2130 = vpack.c.b16 %v2096, %v2094
        %v2131 = vpack.c.b16 %v2099, %v2097
        %v2132 = vpack.c.b16 %v2100, %v2098
        %2165 = vmatprep.subr.bf16.mxu0 %v2102
        %2166 = vmatpush1.bf16.msra.mxu0 %v2101
        %2167 = vmatprep.subr.bf16.mxu0 %v2104
        %2168 = vmatpush1.bf16.msra.mxu0 %v2103
        %2169 = vmatprep.subr.bf16.mxu0 %v2106
        %2170 = vmatpush1.bf16.msra.mxu0 %v2105
        %2171 = vmatprep.subr.bf16.mxu0 %v2108
        %2172 = vmatpush1.bf16.msra.mxu0 %v2107
        %2173 = vmatprep.subr.bf16.mxu0 %v2110
        %2174 = vmatpush1.bf16.msra.mxu0 %v2109
        %2175 = vmatprep.subr.bf16.mxu0 %v2112
        %2176 = vmatpush1.bf16.msra.mxu0 %v2111
        %2177 = vmatprep.subr.bf16.mxu0 %v2114
        %2178 = vmatpush1.bf16.msra.mxu0 %v2113
        %2179 = vmatprep.subr.bf16.mxu0 %v2116
        %2180 = vmatpush1.bf16.msra.mxu0 %v2115
        %2181 = vmatprep.subr.bf16.mxu0 %v2118
        %2182 = vmatpush1.bf16.msra.mxu0 %v2117
        %2183 = vmatprep.subr.bf16.mxu0 %v2120
        %2184 = vmatpush1.bf16.msra.mxu0 %v2119
        %2185 = vmatprep.subr.bf16.mxu0 %v2122
        %2186 = vmatpush1.bf16.msra.mxu0 %v2121
        %2187 = vmatprep.subr.bf16.mxu0 %v2124
        %2188 = vmatpush1.bf16.msra.mxu0 %v2123
        %2189 = vmatprep.subr.bf16.mxu0 %v2126
        %2190 = vmatpush1.bf16.msra.mxu0 %v2125
        %2191 = vmatprep.subr.bf16.mxu0 %v2128
        %2192 = vmatpush1.bf16.msra.mxu0 %v2127
        %2193 = vmatprep.subr.bf16.mxu0 %v2130
        %2194 = vmatpush1.bf16.msra.mxu0 %v2129
        %2195 = vmatprep.subr.bf16.mxu0 %v2132
        %2196 = vmatpush1.bf16.msra.mxu0 %v2131
        %2197 = vmatprep.mubr.bf16.mxu0 %v1993
        %2198 = vmatmul.mubr.bf16.gmra.mrb[0].mxu0 %v1992
        %v2199 = vpop.f32.mrb[0].mxu0
        %v2200 = vadd.f32 %v1998, %v2199
        %v2201 = vpop.f32.mrb[0].mxu0
        %v2202 = vadd.f32 %v2002, %v2201
        %v2203 = vpop.f32.mrb[0].mxu0
        %v2204 = vadd.f32 %v1998, %v2203
        %v2205 = vpop.f32.mrb[0].mxu0
        %v2206 = vadd.f32 %v2002, %v2205
        %2207 = vdwg.mxu0
        %v2208 = vadd.f32 %v2200, %v1698
        %v2209 = vadd.f32 %v2202, %v1699
        %v2210 = vadd.f32 %v2204, %v1700
        %v2211 = vadd.f32 %v2206, %v1701
        %v2212 = vmax.f32 %v2208, 0.0
        %v2213 = vmax.f32 %v2209, 0.0
        %v2214 = vmax.f32 %v2210, 0.0
        %v2215 = vmax.f32 %v2211, 0.0
        %s2216 = scalar_lea.vmem %s2, 1536
        %v2217 = vld [vmem:[%s2216] sm:$0xff]
        %v2218 = vld [vmem:[%s2216 + $0x8] sm:$0xff]
        %v2219 = vld [vmem:[%s2216 + $0x10] sm:$0xff]
        %v2220 = vld [vmem:[%s2216 + $0x18] sm:$0xff]
        %v2221 = vld [vmem:[%s2216 + $0x20] sm:$0xff]
        %v2222 = vld [vmem:[%s2216 + $0x28] sm:$0xff]
        %v2223 = vld [vmem:[%s2216 + $0x30] sm:$0xff]
        %v2224 = vld [vmem:[%s2216 + $0x38] sm:$0xff]
        %v2225 = vld [vmem:[%s2216 + $0x40] sm:$0xff]
        %v2226 = vld [vmem:[%s2216 + $0x48] sm:$0xff]
        %v2227 = vld [vmem:[%s2216 + $0x50] sm:$0xff]
        %v2228 = vld [vmem:[%s2216 + $0x58] sm:$0xff]
        %v2229 = vld [vmem:[%s2216 + $0x60] sm:$0xff]
        %v2230 = vld [vmem:[%s2216 + $0x68] sm:$0xff]
        %v2231 = vld [vmem:[%s2216 + $0x70] sm:$0xff]
        %v2232 = vld [vmem:[%s2216 + $0x78] sm:$0xff]
        %v2233 = vld [vmem:[%s2216 + $0x80] sm:$0xff]
        %v2234 = vld [vmem:[%s2216 + $0x88] sm:$0xff]
        %v2235 = vld [vmem:[%s2216 + $0x90] sm:$0xff]
        %v2236 = vld [vmem:[%s2216 + $0x98] sm:$0xff]
        %v2237 = vld [vmem:[%s2216 + $0xa0] sm:$0xff]
        %v2238 = vld [vmem:[%s2216 + $0xa8] sm:$0xff]
        %v2239 = vld [vmem:[%s2216 + $0xb0] sm:$0xff]
        %v2240 = vld [vmem:[%s2216 + $0xb8] sm:$0xff]
        %v2241 = vld [vmem:[%s2216 + $0xc0] sm:$0xff]
        %v2242 = vld [vmem:[%s2216 + $0xc8] sm:$0xff]
        %v2243 = vld [vmem:[%s2216 + $0xd0] sm:$0xff]
        %v2244 = vld [vmem:[%s2216 + $0xd8] sm:$0xff]
        %v2245 = vld [vmem:[%s2216 + $0xe0] sm:$0xff]
        %v2246 = vld [vmem:[%s2216 + $0xe8] sm:$0xff]
        %v2247 = vld [vmem:[%s2216 + $0xf0] sm:$0xff]
        %v2248 = vld [vmem:[%s2216 + $0xf8] sm:$0xff]
        %s2249 = scalar_lea.vmem %s2, 1792
        %v2250 = vld [vmem:[%s2249] sm:$0xff]
        %v2251 = vld [vmem:[%s2249 + $0x8] sm:$0xff]
        %v2252 = vld [vmem:[%s2249 + $0x10] sm:$0xff]
        %v2253 = vld [vmem:[%s2249 + $0x18] sm:$0xff]
        %v2254 = vld [vmem:[%s2249 + $0x20] sm:$0xff]
        %v2255 = vld [vmem:[%s2249 + $0x28] sm:$0xff]
        %v2256 = vld [vmem:[%s2249 + $0x30] sm:$0xff]
        %v2257 = vld [vmem:[%s2249 + $0x38] sm:$0xff]
        %v2258 = vld [vmem:[%s2249 + $0x40] sm:$0xff]
        %v2259 = vld [vmem:[%s2249 + $0x48] sm:$0xff]
        %v2260 = vld [vmem:[%s2249 + $0x50] sm:$0xff]
        %v2261 = vld [vmem:[%s2249 + $0x58] sm:$0xff]
        %v2262 = vld [vmem:[%s2249 + $0x60] sm:$0xff]
        %v2263 = vld [vmem:[%s2249 + $0x68] sm:$0xff]
        %v2264 = vld [vmem:[%s2249 + $0x70] sm:$0xff]
        %v2265 = vld [vmem:[%s2249 + $0x78] sm:$0xff]
        %v2266 = vld [vmem:[%s2249 + $0x80] sm:$0xff]
        %v2267 = vld [vmem:[%s2249 + $0x88] sm:$0xff]
        %v2268 = vld [vmem:[%s2249 + $0x90] sm:$0xff]
        %v2269 = vld [vmem:[%s2249 + $0x98] sm:$0xff]
        %v2270 = vld [vmem:[%s2249 + $0xa0] sm:$0xff]
        %v2271 = vld [vmem:[%s2249 + $0xa8] sm:$0xff]
        %v2272 = vld [vmem:[%s2249 + $0xb0] sm:$0xff]
        %v2273 = vld [vmem:[%s2249 + $0xb8] sm:$0xff]
        %v2274 = vld [vmem:[%s2249 + $0xc0] sm:$0xff]
        %v2275 = vld [vmem:[%s2249 + $0xc8] sm:$0xff]
        %v2276 = vld [vmem:[%s2249 + $0xd0] sm:$0xff]
        %v2277 = vld [vmem:[%s2249 + $0xd8] sm:$0xff]
        %v2278 = vld [vmem:[%s2249 + $0xe0] sm:$0xff]
        %v2279 = vld [vmem:[%s2249 + $0xe8] sm:$0xff]
        %v2280 = vld [vmem:[%s2249 + $0xf0] sm:$0xff]
        %v2281 = vld [vmem:[%s2249 + $0xf8] sm:$0xff]
        %s2282 = scalar_lea.vmem %s3, 7
        %v2283 = vld [vmem:[%s2282] ss:$8 sm:$0x3]
        %s2284 = scalar_lea.vmem %s3, 16
        %v2285 = vld [vmem:[%s2284] ss:$8 sm:$0x3]
        %v2286 = vpack.c.bf16 %v2214, %v2212
        %v2287 = vpack.c.bf16 %v2215, %v2213
        %v2289 = vlaneseq
        %v2290 = vshrl.u32 %v2289, 7
        %v2291 = vsub.s32 0, %v2290
        %v2292 = vrot.slane %v2283, %v2291
        %v2293 = vlaneseq
        %v2294 = vshrl.u32 %v2293, 7
        %v2295 = vsub.s32 1, %v2294
        %v2296 = vrot.slane %v2283, %v2295
        %v2331 = vunpack.c.l.b16 %v2217
        %v2332 = vunpack.c.h.b16 %v2217
        %v2333 = vunpack.c.l.b16 %v2218
        %v2334 = vunpack.c.h.b16 %v2218
        %v2335 = vunpack.c.l.b16 %v2219
        %v2336 = vunpack.c.h.b16 %v2219
        %v2337 = vunpack.c.l.b16 %v2220
        %v2338 = vunpack.c.h.b16 %v2220
        %v2339 = vunpack.c.l.b16 %v2221
        %v2340 = vunpack.c.h.b16 %v2221
        %v2341 = vunpack.c.l.b16 %v2222
        %v2342 = vunpack.c.h.b16 %v2222
        %v2343 = vunpack.c.l.b16 %v2223
        %v2344 = vunpack.c.h.b16 %v2223
        %v2345 = vunpack.c.l.b16 %v2224
        %v2346 = vunpack.c.h.b16 %v2224
        %v2347 = vunpack.c.l.b16 %v2225
        %v2348 = vunpack.c.h.b16 %v2225
        %v2349 = vunpack.c.l.b16 %v2226
        %v2350 = vunpack.c.h.b16 %v2226
        %v2351 = vunpack.c.l.b16 %v2227
        %v2352 = vunpack.c.h.b16 %v2227
        %v2353 = vunpack.c.l.b16 %v2228
        %v2354 = vunpack.c.h.b16 %v2228
        %v2355 = vunpack.c.l.b16 %v2229
        %v2356 = vunpack.c.h.b16 %v2229
        %v2357 = vunpack.c.l.b16 %v2230
        %v2358 = vunpack.c.h.b16 %v2230
        %v2359 = vunpack.c.l.b16 %v2231
        %v2360 = vunpack.c.h.b16 %v2231
        %v2361 = vunpack.c.l.b16 %v2232
        %v2362 = vunpack.c.h.b16 %v2232
        %v2363 = vunpack.c.l.b16 %v2233
        %v2364 = vunpack.c.h.b16 %v2233
        %v2365 = vunpack.c.l.b16 %v2234
        %v2366 = vunpack.c.h.b16 %v2234
        %v2367 = vunpack.c.l.b16 %v2235
        %v2368 = vunpack.c.h.b16 %v2235
        %v2369 = vunpack.c.l.b16 %v2236
        %v2370 = vunpack.c.h.b16 %v2236
        %v2371 = vunpack.c.l.b16 %v2237
        %v2372 = vunpack.c.h.b16 %v2237
        %v2373 = vunpack.c.l.b16 %v2238
        %v2374 = vunpack.c.h.b16 %v2238
        %v2375 = vunpack.c.l.b16 %v2239
        %v2376 = vunpack.c.h.b16 %v2239
        %v2377 = vunpack.c.l.b16 %v2240
        %v2378 = vunpack.c.h.b16 %v2240
        %v2379 = vunpack.c.l.b16 %v2241
        %v2380 = vunpack.c.h.b16 %v2241
        %v2381 = vunpack.c.l.b16 %v2242
        %v2382 = vunpack.c.h.b16 %v2242
        %v2383 = vunpack.c.l.b16 %v2243
        %v2384 = vunpack.c.h.b16 %v2243
        %v2385 = vunpack.c.l.b16 %v2244
        %v2386 = vunpack.c.h.b16 %v2244
        %v2387 = vunpack.c.l.b16 %v2245
        %v2388 = vunpack.c.h.b16 %v2245
        %v2389 = vunpack.c.l.b16 %v2246
        %v2390 = vunpack.c.h.b16 %v2246
        %v2391 = vunpack.c.l.b16 %v2247
        %v2392 = vunpack.c.h.b16 %v2247
        %v2393 = vunpack.c.l.b16 %v2248
        %v2394 = vunpack.c.h.b16 %v2248
        %v2395 = vpack.c.b16 %v2333, %v2331
        %v2396 = vpack.c.b16 %v2334, %v2332
        %v2397 = vpack.c.b16 %v2337, %v2335
        %v2398 = vpack.c.b16 %v2338, %v2336
        %v2399 = vpack.c.b16 %v2341, %v2339
        %v2400 = vpack.c.b16 %v2342, %v2340
        %v2401 = vpack.c.b16 %v2345, %v2343
        %v2402 = vpack.c.b16 %v2346, %v2344
        %v2403 = vpack.c.b16 %v2349, %v2347
        %v2404 = vpack.c.b16 %v2350, %v2348
        %v2405 = vpack.c.b16 %v2353, %v2351
        %v2406 = vpack.c.b16 %v2354, %v2352
        %v2407 = vpack.c.b16 %v2357, %v2355
        %v2408 = vpack.c.b16 %v2358, %v2356
        %v2409 = vpack.c.b16 %v2361, %v2359
        %v2410 = vpack.c.b16 %v2362, %v2360
        %v2411 = vpack.c.b16 %v2365, %v2363
        %v2412 = vpack.c.b16 %v2366, %v2364
        %v2413 = vpack.c.b16 %v2369, %v2367
        %v2414 = vpack.c.b16 %v2370, %v2368
        %v2415 = vpack.c.b16 %v2373, %v2371
        %v2416 = vpack.c.b16 %v2374, %v2372
        %v2417 = vpack.c.b16 %v2377, %v2375
        %v2418 = vpack.c.b16 %v2378, %v2376
        %v2419 = vpack.c.b16 %v2381, %v2379
        %v2420 = vpack.c.b16 %v2382, %v2380
        %v2421 = vpack.c.b16 %v2385, %v2383
        %v2422 = vpack.c.b16 %v2386, %v2384
        %v2423 = vpack.c.b16 %v2389, %v2387
        %v2424 = vpack.c.b16 %v2390, %v2388
        %v2425 = vpack.c.b16 %v2393, %v2391
        %v2426 = vpack.c.b16 %v2394, %v2392
        %2459 = vmatprep.subr.bf16.mxu0 %v2396
        %2460 = vmatpush1.bf16.msra.mxu0 %v2395
        %2461 = vmatprep.subr.bf16.mxu0 %v2398
        %2462 = vmatpush1.bf16.msra.mxu0 %v2397
        %2463 = vmatprep.subr.bf16.mxu0 %v2400
        %2464 = vmatpush1.bf16.msra.mxu0 %v2399
        %2465 = vmatprep.subr.bf16.mxu0 %v2402
        %2466 = vmatpush1.bf16.msra.mxu0 %v2401
        %2467 = vmatprep.subr.bf16.mxu0 %v2404
        %2468 = vmatpush1.bf16.msra.mxu0 %v2403
        %2469 = vmatprep.subr.bf16.mxu0 %v2406
        %2470 = vmatpush1.bf16.msra.mxu0 %v2405
        %2471 = vmatprep.subr.bf16.mxu0 %v2408
        %2472 = vmatpush1.bf16.msra.mxu0 %v2407
        %2473 = vmatprep.subr.bf16.mxu0 %v2410
        %2474 = vmatpush1.bf16.msra.mxu0 %v2409
        %2475 = vmatprep.subr.bf16.mxu0 %v2412
        %2476 = vmatpush1.bf16.msra.mxu0 %v2411
        %2477 = vmatprep.subr.bf16.mxu0 %v2414
        %2478 = vmatpush1.bf16.msra.mxu0 %v2413
        %2479 = vmatprep.subr.bf16.mxu0 %v2416
        %2480 = vmatpush1.bf16.msra.mxu0 %v2415
        %2481 = vmatprep.subr.bf16.mxu0 %v2418
        %2482 = vmatpush1.bf16.msra.mxu0 %v2417
        %2483 = vmatprep.subr.bf16.mxu0 %v2420
        %2484 = vmatpush1.bf16.msra.mxu0 %v2419
        %2485 = vmatprep.subr.bf16.mxu0 %v2422
        %2486 = vmatpush1.bf16.msra.mxu0 %v2421
        %2487 = vmatprep.subr.bf16.mxu0 %v2424
        %2488 = vmatpush1.bf16.msra.mxu0 %v2423
        %2489 = vmatprep.subr.bf16.mxu0 %v2426
        %2490 = vmatpush1.bf16.msra.mxu0 %v2425
        %2491 = vmatprep.mubr.bf16.mxu0 %v2287
        %2492 = vmatmul.mubr.bf16.gmra.mrb[0].mxu0 %v2286
        %v2493 = vpop.f32.mrb[0].mxu0
        %v2494 = vadd.f32 %v2292, %v2493
        %v2495 = vpop.f32.mrb[0].mxu0
        %v2496 = vadd.f32 %v2296, %v2495
        %v2497 = vpop.f32.mrb[0].mxu0
        %v2498 = vadd.f32 %v2292, %v2497
        %v2499 = vpop.f32.mrb[0].mxu0
        %v2500 = vadd.f32 %v2296, %v2499
        %2501 = vdwg.mxu0
        %v2502 = vmax.f32 %v2494, 0.0
        %v2503 = vmax.f32 %v2496, 0.0
        %v2504 = vmax.f32 %v2498, 0.0
        %v2505 = vmax.f32 %v2500, 0.0
        %v2506 = vpack.c.bf16 %v2504, %v2502
        %v2507 = vpack.c.bf16 %v2505, %v2503
        %v2509 = vlaneseq
        %v2510 = vshrl.u32 %v2509, 7
        %v2511 = vsub.s32 0, %v2510
        %v2512 = vrot.slane %v2285, %v2511
        %v2513 = vlaneseq
        %v2514 = vshrl.u32 %v2513, 7
        %v2515 = vsub.s32 1, %v2514
        %v2516 = vrot.slane %v2285, %v2515
        %v2551 = vunpack.c.l.b16 %v2250
        %v2552 = vunpack.c.h.b16 %v2250
        %v2553 = vunpack.c.l.b16 %v2251
        %v2554 = vunpack.c.h.b16 %v2251
        %v2555 = vunpack.c.l.b16 %v2252
        %v2556 = vunpack.c.h.b16 %v2252
        %v2557 = vunpack.c.l.b16 %v2253
        %v2558 = vunpack.c.h.b16 %v2253
        %v2559 = vunpack.c.l.b16 %v2254
        %v2560 = vunpack.c.h.b16 %v2254
        %v2561 = vunpack.c.l.b16 %v2255
        %v2562 = vunpack.c.h.b16 %v2255
        %v2563 = vunpack.c.l.b16 %v2256
        %v2564 = vunpack.c.h.b16 %v2256
        %v2565 = vunpack.c.l.b16 %v2257
        %v2566 = vunpack.c.h.b16 %v2257
        %v2567 = vunpack.c.l.b16 %v2258
        %v2568 = vunpack.c.h.b16 %v2258
        %v2569 = vunpack.c.l.b16 %v2259
        %v2570 = vunpack.c.h.b16 %v2259
        %v2571 = vunpack.c.l.b16 %v2260
        %v2572 = vunpack.c.h.b16 %v2260
        %v2573 = vunpack.c.l.b16 %v2261
        %v2574 = vunpack.c.h.b16 %v2261
        %v2575 = vunpack.c.l.b16 %v2262
        %v2576 = vunpack.c.h.b16 %v2262
        %v2577 = vunpack.c.l.b16 %v2263
        %v2578 = vunpack.c.h.b16 %v2263
        %v2579 = vunpack.c.l.b16 %v2264
        %v2580 = vunpack.c.h.b16 %v2264
        %v2581 = vunpack.c.l.b16 %v2265
        %v2582 = vunpack.c.h.b16 %v2265
        %v2583 = vunpack.c.l.b16 %v2266
        %v2584 = vunpack.c.h.b16 %v2266
        %v2585 = vunpack.c.l.b16 %v2267
        %v2586 = vunpack.c.h.b16 %v2267
        %v2587 = vunpack.c.l.b16 %v2268
        %v2588 = vunpack.c.h.b16 %v2268
        %v2589 = vunpack.c.l.b16 %v2269
        %v2590 = vunpack.c.h.b16 %v2269
        %v2591 = vunpack.c.l.b16 %v2270
        %v2592 = vunpack.c.h.b16 %v2270
        %v2593 = vunpack.c.l.b16 %v2271
        %v2594 = vunpack.c.h.b16 %v2271
        %v2595 = vunpack.c.l.b16 %v2272
        %v2596 = vunpack.c.h.b16 %v2272
        %v2597 = vunpack.c.l.b16 %v2273
        %v2598 = vunpack.c.h.b16 %v2273
        %v2599 = vunpack.c.l.b16 %v2274
        %v2600 = vunpack.c.h.b16 %v2274
        %v2601 = vunpack.c.l.b16 %v2275
        %v2602 = vunpack.c.h.b16 %v2275
        %v2603 = vunpack.c.l.b16 %v2276
        %v2604 = vunpack.c.h.b16 %v2276
        %v2605 = vunpack.c.l.b16 %v2277
        %v2606 = vunpack.c.h.b16 %v2277
        %v2607 = vunpack.c.l.b16 %v2278
        %v2608 = vunpack.c.h.b16 %v2278
        %v2609 = vunpack.c.l.b16 %v2279
        %v2610 = vunpack.c.h.b16 %v2279
        %v2611 = vunpack.c.l.b16 %v2280
        %v2612 = vunpack.c.h.b16 %v2280
        %v2613 = vunpack.c.l.b16 %v2281
        %v2614 = vunpack.c.h.b16 %v2281
        %v2615 = vpack.c.b16 %v2553, %v2551
        %v2616 = vpack.c.b16 %v2554, %v2552
        %v2617 = vpack.c.b16 %v2557, %v2555
        %v2618 = vpack.c.b16 %v2558, %v2556
        %v2619 = vpack.c.b16 %v2561, %v2559
        %v2620 = vpack.c.b16 %v2562, %v2560
        %v2621 = vpack.c.b16 %v2565, %v2563
        %v2622 = vpack.c.b16 %v2566, %v2564
        %v2623 = vpack.c.b16 %v2569, %v2567
        %v2624 = vpack.c.b16 %v2570, %v2568
        %v2625 = vpack.c.b16 %v2573, %v2571
        %v2626 = vpack.c.b16 %v2574, %v2572
        %v2627 = vpack.c.b16 %v2577, %v2575
        %v2628 = vpack.c.b16 %v2578, %v2576
        %v2629 = vpack.c.b16 %v2581, %v2579
        %v2630 = vpack.c.b16 %v2582, %v2580
        %v2631 = vpack.c.b16 %v2585, %v2583
        %v2632 = vpack.c.b16 %v2586, %v2584
        %v2633 = vpack.c.b16 %v2589, %v2587
        %v2634 = vpack.c.b16 %v2590, %v2588
        %v2635 = vpack.c.b16 %v2593, %v2591
        %v2636 = vpack.c.b16 %v2594, %v2592
        %v2637 = vpack.c.b16 %v2597, %v2595
        %v2638 = vpack.c.b16 %v2598, %v2596
        %v2639 = vpack.c.b16 %v2601, %v2599
        %v2640 = vpack.c.b16 %v2602, %v2600
        %v2641 = vpack.c.b16 %v2605, %v2603
        %v2642 = vpack.c.b16 %v2606, %v2604
        %v2643 = vpack.c.b16 %v2609, %v2607
        %v2644 = vpack.c.b16 %v2610, %v2608
        %v2645 = vpack.c.b16 %v2613, %v2611
        %v2646 = vpack.c.b16 %v2614, %v2612
        %2679 = vmatprep.subr.bf16.mxu0 %v2616
        %2680 = vmatpush1.bf16.msra.mxu0 %v2615
        %2681 = vmatprep.subr.bf16.mxu0 %v2618
        %2682 = vmatpush1.bf16.msra.mxu0 %v2617
        %2683 = vmatprep.subr.bf16.mxu0 %v2620
        %2684 = vmatpush1.bf16.msra.mxu0 %v2619
        %2685 = vmatprep.subr.bf16.mxu0 %v2622
        %2686 = vmatpush1.bf16.msra.mxu0 %v2621
        %2687 = vmatprep.subr.bf16.mxu0 %v2624
        %2688 = vmatpush1.bf16.msra.mxu0 %v2623
        %2689 = vmatprep.subr.bf16.mxu0 %v2626
        %2690 = vmatpush1.bf16.msra.mxu0 %v2625
        %2691 = vmatprep.subr.bf16.mxu0 %v2628
        %2692 = vmatpush1.bf16.msra.mxu0 %v2627
        %2693 = vmatprep.subr.bf16.mxu0 %v2630
        %2694 = vmatpush1.bf16.msra.mxu0 %v2629
        %2695 = vmatprep.subr.bf16.mxu0 %v2632
        %2696 = vmatpush1.bf16.msra.mxu0 %v2631
        %2697 = vmatprep.subr.bf16.mxu0 %v2634
        %2698 = vmatpush1.bf16.msra.mxu0 %v2633
        %2699 = vmatprep.subr.bf16.mxu0 %v2636
        %2700 = vmatpush1.bf16.msra.mxu0 %v2635
        %2701 = vmatprep.subr.bf16.mxu0 %v2638
        %2702 = vmatpush1.bf16.msra.mxu0 %v2637
        %2703 = vmatprep.subr.bf16.mxu0 %v2640
        %2704 = vmatpush1.bf16.msra.mxu0 %v2639
        %2705 = vmatprep.subr.bf16.mxu0 %v2642
        %2706 = vmatpush1.bf16.msra.mxu0 %v2641
        %2707 = vmatprep.subr.bf16.mxu0 %v2644
        %2708 = vmatpush1.bf16.msra.mxu0 %v2643
        %2709 = vmatprep.subr.bf16.mxu0 %v2646
        %2710 = vmatpush1.bf16.msra.mxu0 %v2645
        %2711 = vmatprep.mubr.bf16.mxu0 %v2507
        %2712 = vmatmul.mubr.bf16.gmra.mrb[0].mxu0 %v2506
        %v2713 = vpop.f32.mrb[0].mxu0
        %v2714 = vadd.f32 %v2512, %v2713
        %v2715 = vpop.f32.mrb[0].mxu0
        %v2716 = vadd.f32 %v2516, %v2715
        %v2717 = vpop.f32.mrb[0].mxu0
        %v2718 = vadd.f32 %v2512, %v2717
        %v2719 = vpop.f32.mrb[0].mxu0
        %v2720 = vadd.f32 %v2516, %v2719
        %2721 = vdwg.mxu0
        %v2722 = vadd.f32 %v2714, %v2212
        %v2723 = vadd.f32 %v2716, %v2213
        %v2724 = vadd.f32 %v2718, %v2214
        %v2725 = vadd.f32 %v2720, %v2215
        %v2726 = vmax.f32 %v2722, 0.0
        %v2727 = vmax.f32 %v2723, 0.0
        %v2728 = vmax.f32 %v2724, 0.0
        %v2729 = vmax.f32 %v2725, 0.0
        %v2730 = vpack.c.bf16 %v2728, %v2726
        %v2731 = vpack.c.bf16 %v2729, %v2727
        %v2734 = vunpack.c.l.b16 %v2730
        %v2735 = vunpack.c.l.b16 %v2731
        %v2736 = vunpack.c.h.b16 %v2730
        %v2737 = vunpack.c.h.b16 %v2731
        %v2738 = vpack.c.b16 %v2735, %v2734
        %v2739 = vpack.c.b16 %v2737, %v2736
        %2742 = vst [vmem:[%s230] sm:$0xff] %v2738
        %2743 = vst [vmem:[%s230 + $0x8] sm:$0xff] %v2739
      $region48: #{forward.3} parent=35 // pred_fallthru
        _
      %s2744 = smul.u32 2, %s19
      %p2745 = scmp.lt.s32.totalorder %s2744, 1
      %s2746 = scalar_select %p2745, %s2744, 1
      %s2747 = smul.addr %s2746, 2
      %s2748 = smul.addr %s2747, 4
      %s2749 = scalar_lea.vmem %s4, %s2748
      // Predicated region
      $region49: #{forward.3} parent=35 // pred_check
        %p2750 = pneg %p136
      $region50: #{forward.3} parent=35 // pred_check_branch
        %2752 = sbr.rel (%p2750) target = $region52
      $region51: #{forward.3} parent=35 // pred_region
        %s2753 = smul.u32 2, %s19
      $region52: #{forward.3} parent=35 // pred_fallthru
        _
      // Predicated region
      $region53: #{forward.3} parent=35 // pred_check
        %p2754 = pneg %p136
      $region54: #{forward.3} parent=35 // pred_check_branch
        %2756 = sbr.rel (%p2754) target = $region56
      $region55: #{forward.3} parent=35 // pred_region
        %s2757 = smul.u32 2, %s19
        %p2758 = scmp.lt.s32.totalorder %s2757, 1
        %s2759 = scalar_select %p2758, %s2757, 1
        %s2760 = smul.addr %s2759, 2
        %s2761 = smul.addr %s2760, 4
        %s2762 = scalar_lea.vmem %s4, %s2761
      $region56: #{forward.3} parent=35 // pred_fallthru
        _
    $region36: #{forward.3} parent=5 // pred_fallthru
      _
    %p2763 = scmp.le.s32.totalorder 2, %s10
    // Predicated region
    $region57: #{forward.3} parent=5 // pred_check
      %p2764 = pneg %p2763
    $region58: #{forward.3} parent=5 // pred_check_branch
      %2766 = sbr.rel (%p2764) target = $region60
    $region59: #{forward.3} parent=5 // pred_region
      %s2767 = ssub.s32 %s10, 2
    $region60: #{forward.3} parent=5 // pred_fallthru
      _
  $region6: #{forward.3} parent=0 // loop_footer
    %s14 = sadd.s32 1, %s10
  $region7: #{forward.3} parent=0 // loop_footer_branch
    %9 = sbr.rel target = $region3
  $region8: #{forward.3} parent=0 // loop_exit
    _

</llo_original>
